<compile_context>
chip_gen: v7x
topology: tpu7x:2x2x1
jax: 0.10.0
libtpu: 0.0.40
codegen_flags: <defaults>
</compile_context>

<pallas_src>
import math
import functools

import jax
import jax.numpy as jnp
from jax.experimental import pallas as pl
from jax.experimental.pallas import tpu as pltpu

EPS = 1e-6  # Decoder(eps=1e-06) default

# MXU operand dtype: bf16 runs the MXU at full rate on v5e/v6e/v7x and halves
# weight / intermediate HBM + VMEM bytes.  Set to jnp.float32 for bit-parity tests.
MXU_DTYPE = jnp.bfloat16


# ----------------------------------------------------------------------------
# Per-generation tile targets, VMEM budgets and shape helpers
# ----------------------------------------------------------------------------

@functools.lru_cache(maxsize=None)
def _vmem_capacity():
    vmem = 64 << 20
    try:
        info = pltpu.get_tpu_info()
        vmem = int(getattr(info, "vmem_capacity_bytes", vmem) or vmem)
    except Exception:
        pass
    return vmem


def _tile_targets():
    """(row_target, col_target): bigger tiles on 128 MiB chips (v5e/v6e), smaller on v7x."""
    if _vmem_capacity() >= (100 << 20):
        return 512, 1024
    return 256, 512


def _round_up(x, m):
    return ((x + m - 1) // m) * m


def _row_tile(m, target=None):
    """Row tile: multiple of 8, capped at target.  Callers pad rows to a multiple,
    so an awkward M can never produce one enormous un-tiled block."""
    if target is None:
        target = _tile_targets()[0]
    return min(_round_up(max(m, 1), 8), max(8, (target // 8) * 8))


def _divisor_tile(n, target=None, unit=128):
    """Largest tile <= target that is a multiple of `unit` and divides n (else n).
    Used for weight/output columns and sequence tiles, which are normally nice
    multiples of 128; the full-dim fallback is still a legal block shape."""
    if target is None:
        target = _tile_targets()[1]
    if n <= target:
        return n
    t = (target // unit) * unit
    while t >= unit:
        if n % t == 0:
            return t
        t -= unit
    return n


def _pad_rows(x2d, tm):
    pad = (-x2d.shape[0]) % tm
    if pad:
        x2d = jnp.pad(x2d, ((0, pad), (0, 0)))
    return x2d


def _cparams(dim_sems, tiles, scratch=()):
    """CompilerParams with an explicit VMEM budget derived from the block working
    set (double-buffered) + persistent scratch + headroom, capped per chip."""
    blk = sum(math.prod(s) * jnp.dtype(d).itemsize for s, d in tiles)
    scr = sum(math.prod(s) * jnp.dtype(d).itemsize for s, d in scratch)
    cap = int(_vmem_capacity() * 3 // 4)
    limit = int(max(4 << 20, min(2 * blk + scr + (2 << 20), cap)))
    return pltpu.CompilerParams(dimension_semantics=dim_sems,
                                vmem_limit_bytes=limit)


# ----------------------------------------------------------------------------
# LayerNorm (only used standalone for the final output_norm)
# ----------------------------------------------------------------------------

def _layernorm_kernel(x_ref, g_ref, b_ref, o_ref, *, eps):
    x = x_ref[...].astype(jnp.float32)
    mean = jnp.mean(x, axis=-1, keepdims=True)
    var = jnp.mean(jnp.square(x - mean), axis=-1, keepdims=True)
    y = (x - mean) * jax.lax.rsqrt(var + eps)
    o_ref[...] = (y * g_ref[...] + b_ref[...]).astype(o_ref.dtype)


def layernorm(x2d, gamma, beta, eps=EPS):
    M, D = x2d.shape
    tm = _row_tile(M)
    xp = _pad_rows(x2d, tm)
    Mp = xp.shape[0]
    out = pl.pallas_call(
        functools.partial(_layernorm_kernel, eps=eps),
        out_shape=jax.ShapeDtypeStruct((Mp, D), x2d.dtype),
        grid=(Mp // tm,),
        in_specs=[
            pl.BlockSpec((tm, D), lambda i: (i, 0)),
            pl.BlockSpec((1, D), lambda i: (0, 0)),
            pl.BlockSpec((1, D), lambda i: (0, 0)),
        ],
        out_specs=pl.BlockSpec((tm, D), lambda i: (i, 0)),
        compiler_params=_cparams(
            ("parallel",),
            [((tm, D), x2d.dtype), ((1, D), jnp.float32), ((1, D), jnp.float32),
             ((tm, D), x2d.dtype)]),
    )(xp, gamma.reshape(1, D), beta.reshape(1, D))
    return out[:M]


# ----------------------------------------------------------------------------
# Fused LayerNorm -> projection (N-tiled; LN cached in VMEM scratch)
# ----------------------------------------------------------------------------

def _ln_matmul_kernel(x_ref, g_ref, b_ref, w_ref, bias_ref, o_ref, nx_sc, *, eps):
    j = pl.program_id(1)

    @pl.when(j == 0)
    def _():
        x = x_ref[...].astype(jnp.float32)
        mean = jnp.mean(x, axis=-1, keepdims=True)
        var = jnp.mean(jnp.square(x - mean), axis=-1, keepdims=True)
        nx = (x - mean) * jax.lax.rsqrt(var + eps) * g_ref[...] + b_ref[...]
        nx_sc[...] = nx.astype(nx_sc.dtype)          # cached for all N tiles

    y = jnp.dot(nx_sc[...], w_ref[...], preferred_element_type=jnp.float32)
    o_ref[...] = (y + bias_ref[...]).astype(o_ref.dtype)


def ln_matmul(x2d, gamma, beta, w, bias, eps=EPS, out_dtype=None):
    M, D = x2d.shape
    N = w.shape[1]
    out_dtype = out_dtype or x2d.dtype
    tm = _row_tile(M)
    tn = _divisor_tile(N)
    xp = _pad_rows(x2d, tm)
    Mp = xp.shape[0]
    out = pl.pallas_call(
        functools.partial(_ln_matmul_kernel, eps=eps),
        out_shape=jax.ShapeDtypeStruct((Mp, N), out_dtype),
        grid=(Mp // tm, N // tn),
        in_specs=[
            pl.BlockSpec((tm, D), lambda i, j: (i, 0)),
            pl.BlockSpec((1, D), lambda i, j: (0, 0)),
            pl.BlockSpec((1, D), lambda i, j: (0, 0)),
            pl.BlockSpec((D, tn), lambda i, j: (0, j)),
            pl.BlockSpec((1, tn), lambda i, j: (0, j)),
        ],
        out_specs=pl.BlockSpec((tm, tn), lambda i, j: (i, j)),
        scratch_shapes=[pltpu.VMEM((tm, D), MXU_DTYPE)],
        compiler_params=_cparams(
            ("parallel", "arbitrary"),
            [((tm, D), x2d.dtype), ((1, D), jnp.float32), ((1, D), jnp.float32),
             ((D, tn), w.dtype), ((1, tn), bias.dtype), ((tm, tn), out_dtype)],
            [((tm, D), MXU_DTYPE)]),
    )(xp, gamma.reshape(1, D), beta.reshape(1, D), w, bias.reshape(1, N))
    return out[:M]


# ----------------------------------------------------------------------------
# Generic tiled linear (cross-attention KV projection of the encoder memory)
# ----------------------------------------------------------------------------

def _linear_kernel(x_ref, w_ref, b_ref, o_ref, acc_ref):
    k = pl.program_id(2)

    @pl.when(k == 0)
    def _():
        acc_ref[...] = jnp.zeros_like(acc_ref)

    acc_ref[...] += jnp.dot(x_ref[...], w_ref[...], preferred_element_type=jnp.float32)

    @pl.when(k == pl.num_programs(2) - 1)
    def _():
        o_ref[...] = (acc_ref[...] + b_ref[...]).astype(o_ref.dtype)


def linear(x2d, w, b, out_dtype=None):
    M, K = x2d.shape
    K2, N = w.shape
    assert K == K2
    out_dtype = out_dtype or x2d.dtype
    tm = _row_tile(M)
    tn = _divisor_tile(N)
    tk = _divisor_tile(K)
    xp = _pad_rows(x2d, tm)
    Mp = xp.shape[0]
    # TODO(synk): if DMA is exposed streaming the (tk, tn) weight tile on v5e/v6e,
    # raise that BlockSpec to pipeline_mode=pl.Buffered(3).
    out = pl.pallas_call(
        _linear_kernel,
        out_shape=jax.ShapeDtypeStruct((Mp, N), out_dtype),
        grid=(Mp // tm, N // tn, K // tk),
        in_specs=[
            pl.BlockSpec((tm, tk), lambda i, j, k: (i, k)),
            pl.BlockSpec((tk, tn), lambda i, j, k: (k, j)),
            pl.BlockSpec((1, tn), lambda i, j, k: (0, j)),
        ],
        out_specs=pl.BlockSpec((tm, tn), lambda i, j, k: (i, j)),
        scratch_shapes=[pltpu.VMEM((tm, tn), jnp.float32)],
        compiler_params=_cparams(
            ("parallel", "parallel", "arbitrary"),
            [((tm, tk), x2d.dtype), ((tk, tn), w.dtype), ((1, tn), b.dtype),
             ((tm, tn), out_dtype)],
            [((tm, tn), jnp.float32)]),
    )(xp, w, b.reshape(1, N))
    return out[:M]


# ----------------------------------------------------------------------------
# Output projection fused with residual add (N-tiled)
# ----------------------------------------------------------------------------

def _matmul_res_kernel(x_ref, w_ref, b_ref, r_ref, o_ref):
    # out = residual + x @ W + b
    y = jnp.dot(x_ref[...], w_ref[...], preferred_element_type=jnp.float32)
    o_ref[...] = (r_ref[...].astype(jnp.float32) + y + b_ref[...]).astype(o_ref.dtype)


def matmul_residual(x2d, w, b, residual2d):
    M, K = x2d.shape
    N = w.shape[1]
    tm = _row_tile(M)
    tn = _divisor_tile(N)
    xp = _pad_rows(x2d, tm)
    rp = _pad_rows(residual2d, tm)
    Mp = xp.shape[0]
    out = pl.pallas_call(
        _matmul_res_kernel,
        out_shape=jax.ShapeDtypeStruct((Mp, N), residual2d.dtype),
        grid=(Mp // tm, N // tn),
        in_specs=[
            pl.BlockSpec((tm, K), lambda i, j: (i, 0)),
            pl.BlockSpec((K, tn), lambda i, j: (0, j)),
            pl.BlockSpec((1, tn), lambda i, j: (0, j)),
            pl.BlockSpec((tm, tn), lambda i, j: (i, j)),
        ],
        out_specs=pl.BlockSpec((tm, tn), lambda i, j: (i, j)),
        compiler_params=_cparams(
            ("parallel", "parallel"),
            [((tm, K), x2d.dtype), ((K, tn), w.dtype), ((1, tn), b.dtype),
             ((tm, tn), residual2d.dtype), ((tm, tn), residual2d.dtype)]),
    )(xp, w, b.reshape(1, N), rp)
    return out[:M]


# ----------------------------------------------------------------------------
# Fused LN + FFN + residual (hidden dim is an in-kernel reduction)
# ----------------------------------------------------------------------------

def _ffn_kernel(x_ref, g_ref, bta_ref, w1_ref, b1_ref, w2_ref, b2_ref,
                o_ref, nx_sc, acc_sc, *, eps):
    j = pl.program_id(1)

    @pl.when(j == 0)
    def _():
        x = x_ref[...].astype(jnp.float32)
        mean = jnp.mean(x, axis=-1, keepdims=True)
        var = jnp.mean(jnp.square(x - mean), axis=-1, keepdims=True)
        nx = (x - mean) * jax.lax.rsqrt(var + eps) * g_ref[...] + bta_ref[...]
        nx_sc[...] = nx.astype(nx_sc.dtype)
        acc_sc[...] = jnp.zeros_like(acc_sc)

    h = jnp.dot(nx_sc[...], w1_ref[...], preferred_element_type=jnp.float32) + b1_ref[...]
    h = jnp.maximum(h, 0.0).astype(w2_ref.dtype)
    acc_sc[...] += jnp.dot(h, w2_ref[...], preferred_element_type=jnp.float32)

    @pl.when(j == pl.num_programs(1) - 1)
    def _():
        o_ref[...] = (x_ref[...].astype(jnp.float32) + acc_sc[...] + b2_ref[...]
                      ).astype(o_ref.dtype)


def ffn_fused(x2d, gamma, beta, w1, b1, w2, b2, eps=EPS):
    M, D = x2d.shape
    H = w1.shape[1]
    tm = _row_tile(M)
    th = _divisor_tile(H)
    xp = _pad_rows(x2d, tm)
    Mp = xp.shape[0]
    out = pl.pallas_call(
        functools.partial(_ffn_kernel, eps=eps),
        out_shape=jax.ShapeDtypeStruct((Mp, D), x2d.dtype),
        grid=(Mp // tm, H // th),
        in_specs=[
            pl.BlockSpec((tm, D), lambda i, j: (i, 0)),
            pl.BlockSpec((1, D), lambda i, j: (0, 0)),
            pl.BlockSpec((1, D), lambda i, j: (0, 0)),
            pl.BlockSpec((D, th), lambda i, j: (0, j)),
            pl.BlockSpec((1, th), lambda i, j: (0, j)),
            pl.BlockSpec((th, D), lambda i, j: (j, 0)),
            pl.BlockSpec((1, D), lambda i, j: (0, 0)),
        ],
        out_specs=pl.BlockSpec((tm, D), lambda i, j: (i, 0)),
        scratch_shapes=[pltpu.VMEM((tm, D), MXU_DTYPE),
                        pltpu.VMEM((tm, D), jnp.float32)],
        compiler_params=_cparams(
            ("parallel", "arbitrary"),
            [((tm, D), x2d.dtype), ((1, D), jnp.float32), ((1, D), jnp.float32),
             ((D, th), w1.dtype), ((1, th), b1.dtype), ((th, D), w2.dtype),
             ((1, D), b2.dtype), ((tm, D), x2d.dtype)],
            [((tm, D), MXU_DTYPE), ((tm, D), jnp.float32)]),
    )(xp, gamma.reshape(1, D), beta.reshape(1, D),
      w1, b1.reshape(1, H), w2, b2.reshape(1, D))
    return out[:M]


# ----------------------------------------------------------------------------
# Multi-head attention (query-tiled; reads fused qkv/kv buffers directly)
# ----------------------------------------------------------------------------

def _attn_kernel(q_ref, k_ref, v_ref, *rest, num_heads, scale, causal, has_mask):
    if has_mask:
        m_ref, o_ref = rest
    else:
        (o_ref,) = rest
    tq, S, D = q_ref.shape[1], k_ref.shape[1], q_ref.shape[2]
    dh = D // num_heads

    q = q_ref[0]                                     # (tq, D)
    k = k_ref[0]                                     # (S, D)
    v = v_ref[0]                                     # (S, D)

    if causal:
        # Causal mask built in-kernel (zero HBM mask traffic).
        base = pl.program_id(1) * tq
        row = jax.lax.broadcasted_iota(jnp.int32, (tq, S), 0) + base
        col = jax.lax.broadcasted_iota(jnp.int32, (tq, S), 1)
        keep = col <= row
    elif has_mask:
        keep = m_ref[0] != 0                         # (tq, S), nonzero = keep
    else:
        keep = None

    out_heads = []
    for h in range(num_heads):                       # static loop over heads
        sl = slice(h * dh, (h + 1) * dh)
        qh, kh, vh = q[:, sl], k[:, sl], v[:, sl]    # lane slices
        s = jax.lax.dot_general(qh, kh, (((1,), (1,)), ((), ())),
                                preferred_element_type=jnp.float32) * scale
        if keep is not None:
            s = jnp.where(keep, s, -1e9)
        s = s - jnp.max(s, axis=-1, keepdims=True)
        p = jnp.exp(s)
        p = p * pl.reciprocal(jnp.sum(p, axis=-1, keepdims=True), approx=True)
        oh = jnp.dot(p.astype(vh.dtype), vh, preferred_element_type=jnp.float32)
        if dh % 128 == 0:
            # Lane-aligned direct per-head store: bounds live ranges, no concat.
            o_ref[0, :, sl] = oh.astype(o_ref.dtype)
        else:
            out_heads.append(oh)
    if dh % 128 != 0:
        o_ref[0] = jnp.concatenate(out_heads, axis=-1).astype(o_ref.dtype)


def attention(q_arr, k_arr, v_arr, *, num_heads, d_model, q_blk, k_blk, v_blk,
              causal=False, mask=None, out_dtype=None):
    """q_arr/k_arr/v_arr may be the SAME fused projection array (e.g. (B,T,3D) qkv);
    q_blk/k_blk/v_blk pick the D-wide block along the last dim, so q/k/v slices
    are never materialized in HBM.  causal=True builds the mask in-kernel;
    mask=None means fully visible; an explicit (B,T,S) mask (nonzero=keep,
    int8 recommended) is also supported."""
    B, T = q_arr.shape[0], q_arr.shape[1]
    S = k_arr.shape[1]
    D = d_model
    scale = 1.0 / math.sqrt(D // num_heads)
    out_dtype = out_dtype or q_arr.dtype
    tq = _divisor_tile(T, target=_tile_targets()[0], unit=8)

    kernel = functools.partial(_attn_kernel, num_heads=num_heads, scale=scale,
                               causal=causal, has_mask=mask is not None)
    in_specs = [
        pl.BlockSpec((1, tq, D), lambda b, qi: (b, qi, q_blk)),
        pl.BlockSpec((1, S, D), lambda b, qi: (b, 0, k_blk)),   # reused across qi
        pl.BlockSpec((1, S, D), lambda b, qi: (b, 0, v_blk)),
    ]
    args = [q_arr, k_arr, v_arr]
    tiles = [((1, tq, D), q_arr.dtype), ((1, S, D), k_arr.dtype),
             ((1, S, D), v_arr.dtype), ((1, tq, D), out_dtype)]
    if mask is not None:
        in_specs.append(pl.BlockSpec((1, tq, S), lambda b, qi: (b, qi, 0)))
        args.append(mask)
        tiles.append(((1, tq, S), mask.dtype))

    # TODO(synk): for very long S add a kv-tile reduction axis with online softmax
    # (flash pattern) so K/V need not be fully VMEM-resident per batch.
    return pl.pallas_call(
        kernel,
        out_shape=jax.ShapeDtypeStruct((B, T, D), out_dtype),
        grid=(B, T // tq),
        in_specs=in_specs,
        out_specs=pl.BlockSpec((1, tq, D), lambda b, qi: (b, qi, 0)),
        compiler_params=_cparams(("parallel", "arbitrary"), tiles),
    )(*args)


# ----------------------------------------------------------------------------
# Decoder forward (glue reshapes in plain JAX, all math in Pallas kernels)
# ----------------------------------------------------------------------------

def decoder_forward(params, tokens, memory, src_mask=None, tgt_mask=None,
                    *, num_heads, num_layers, eps=EPS):
    B, T = tokens.shape
    D = params["embedding"].shape[1]
    S = memory.shape[1]

    # Masks: "causal" -> built in-kernel; None -> fully visible; array -> explicit.
    if isinstance(tgt_mask, str):
        assert tgt_mask == "causal"
        tgt_causal, tgt_m = True, None
    else:
        tgt_causal, tgt_m = False, tgt_mask

    # Embedding (padding_idx=0 row zeroed) * sqrt(d_model) + sinusoidal PE.
    # TODO(synk): embedding gather + PE add kept as plain-JAX glue (tiny gather).
    x = jnp.take(params["embedding"], tokens, axis=0) * math.sqrt(D)
    x = x + params["pe"][:T][None, :, :]
    # dropout: identity (inference / eval semantics)

    # Encoder memory cast once to the MXU dtype; reused by every layer's KV proj.
    mem2 = memory.astype(MXU_DTYPE).reshape(B * S, D)

    for i in range(num_layers):
        lp = params["layers"][i]

        # --- masked self-attention: fused LN+QKV (one bf16 (B,T,3D) buffer,
        #     never sliced in HBM), in-kernel causal mask, fused Wo+residual ---
        x2 = x.reshape(B * T, D)
        sa = lp["self_attn"]
        qkv = ln_matmul(x2, lp["attn_norm_g"], lp["attn_norm_b"],
                        sa["wqkv"], sa["bqkv"], eps=eps,
                        out_dtype=MXU_DTYPE).reshape(B, T, 3 * D)
        o = attention(qkv, qkv, qkv, num_heads=num_heads, d_model=D,
                      q_blk=0, k_blk=1, v_blk=2, causal=tgt_causal, mask=tgt_m)
        x = matmul_residual(o.reshape(B * T, D), sa["wo"], sa["bo"],
                            x2).reshape(B, T, D)

        # --- cross-attention: fused LN+Q, fused KV projection of memory
        #     ((B,S,2D) bf16, never sliced in HBM), fused Wo+residual ---
        x2 = x.reshape(B * T, D)
        ca = lp["cross_attn"]
        q = ln_matmul(x2, lp["cross_norm_g"], lp["cross_norm_b"],
                      ca["wq"], ca["bq"], eps=eps,
                      out_dtype=MXU_DTYPE).reshape(B, T, D)
        kv = linear(mem2, ca["wkv"], ca["bkv"],
                    out_dtype=MXU_DTYPE).reshape(B, S, 2 * D)
        o = attention(q, kv, kv, num_heads=num_heads, d_model=D,
                      q_blk=0, k_blk=0, v_blk=1, causal=False, mask=src_mask)
        x = matmul_residual(o.reshape(B * T, D), ca["wo"], ca["bo"],
                            x2).reshape(B, T, D)

        # --- feed-forward: fused LN + W1/ReLU/W2 + residual; (M,4D) stays in VMEM ---
        x2 = x.reshape(B * T, D)
        x = ffn_fused(x2, lp["ffn_norm_g"], lp["ffn_norm_b"],
                      lp["ffn_w1"], lp["ffn_b1"], lp["ffn_w2"], lp["ffn_b2"],
                      eps=eps).reshape(B, T, D)

    return layernorm(x.reshape(B * T, D),
                     params["out_norm_g"], params["out_norm_b"],
                     eps).reshape(B, T, D)


# ----------------------------------------------------------------------------
# Deterministic parameter init (QKV / KV weights pre-fused; matmul weights bf16)
# ----------------------------------------------------------------------------

def sinusoidal_pe(max_len, d_model):
    pos = jnp.arange(max_len, dtype=jnp.float32)[:, None]
    i = jnp.arange(0, d_model, 2, dtype=jnp.float32)
    div = jnp.exp(-math.log(10000.0) * i / d_model)
    pe = jnp.zeros((max_len, d_model), jnp.float32)
    pe = pe.at[:, 0::2].set(jnp.sin(pos * div))
    pe = pe.at[:, 1::2].set(jnp.cos(pos * div))
    return pe


def init_params(key, vocab_size, d_model, num_heads, num_layers, max_seq_len,
                mxu_dtype=MXU_DTYPE):
    def dense(k, fan_in, fan_out):
        kw, kb = jax.random.split(k)
        w = jax.random.normal(kw, (fan_in, fan_out), jnp.float32) * 0.02
        b = jax.random.normal(kb, (fan_out,), jnp.float32) * 0.02
        return w, b

    keys = jax.random.split(key, 2 + num_layers)
    emb = jax.random.normal(keys[0], (vocab_size, d_model), jnp.float32) * 0.02
    emb = emb.at[0].set(0.0)  # padding_idx=0

    def mha(k):
        ks = jax.random.split(k, 4)
        wq, bq = dense(ks[0], d_model, d_model)
        wk, bk = dense(ks[1], d_model, d_model)
        wv, bv = dense(ks[2], d_model, d_model)
        wo, bo = dense(ks[3], d_model, d_model)
        # MXU operands stored in bf16; biases stay f32.
        return dict(
            wq=wq.astype(mxu_dtype), bq=bq,
            wo=wo.astype(mxu_dtype), bo=bo,
            wqkv=jnp.concatenate([wq, wk, wv], axis=1).astype(mxu_dtype),
            bqkv=jnp.concatenate([bq, bk, bv]),
            wkv=jnp.concatenate([wk, wv], axis=1).astype(mxu_dtype),
            bkv=jnp.concatenate([bk, bv]),
        )

    layers = []
    for li in range(num_layers):
        lk = jax.random.split(keys[2 + li], 4)
        w1, b1 = dense(lk[2], d_model, 4 * d_model)
        w2, b2 = dense(lk[3], 4 * d_model, d_model)
        layers.append(dict(
            self_attn=mha(lk[0]),
            cross_attn=mha(lk[1]),
            ffn_w1=w1.astype(mxu_dtype), ffn_b1=b1,
            ffn_w2=w2.astype(mxu_dtype), ffn_b2=b2,
            attn_norm_g=jnp.ones((d_model,), jnp.float32),
            attn_norm_b=jnp.zeros((d_model,), jnp.float32),
            cross_norm_g=jnp.ones((d_model,), jnp.float32),
            cross_norm_b=jnp.zeros((d_model,), jnp.float32),
            ffn_norm_g=jnp.ones((d_model,), jnp.float32),
            ffn_norm_b=jnp.zeros((d_model,), jnp.float32),
        ))

    return dict(
        embedding=emb,
        pe=sinusoidal_pe(max_seq_len, d_model),
        layers=layers,
        out_norm_g=jnp.ones((d_model,), jnp.float32),
        out_norm_b=jnp.zeros((d_model,), jnp.float32),
    )


# ----------------------------------------------------------------------------
# Main
# ----------------------------------------------------------------------------

if __name__ == "__main__":
    vocab_size, d_model, num_heads, num_layers = 64, 128, 4, 2
    B, T, S, max_seq_len = 2, 8, 8, 16

    params = init_params(jax.random.PRNGKey(0), vocab_size, d_model,
                         num_heads, num_layers, max_seq_len)

    k_tok, k_mem = jax.random.split(jax.random.PRNGKey(0))
    tokens = jax.random.randint(k_tok, (B, T), 0, vocab_size, dtype=jnp.int32)
    memory = jax.random.normal(k_mem, (B, S, d_model), jnp.float32)

    # tgt: causal mask built inside the attention kernel (no HBM mask traffic);
    # src: fully visible (mask=None), equivalent to an all-ones mask.
    fwd = jax.jit(functools.partial(decoder_forward, tgt_mask="causal",
                                    num_heads=num_heads, num_layers=num_layers))
    out = fwd(params, tokens, memory)
    out = jax.block_until_ready(out)

    assert out.shape == (B, T, d_model) and out.dtype == jnp.float32
    assert bool(jnp.all(jnp.isfinite(out)))
    print("KERNEL_OK")
</pallas_src>

<mosaic_0001>
module attributes {stable_mosaic.version = 11 : i64} {
  func.func @_matmul_res_kernel(%arg0: i32, %arg1: i32, %arg2: memref<16x128xbf16, #tpu.memory_space<vmem>>, %arg3: memref<128x128xbf16, #tpu.memory_space<vmem>>, %arg4: memref<1x128xf32, #tpu.memory_space<vmem>>, %arg5: memref<16x128xf32, #tpu.memory_space<vmem>>, %arg6: memref<16x128xf32, #tpu.memory_space<vmem>>) attributes {dimension_semantics = [#tpu.dimension_semantics<parallel>, #tpu.dimension_semantics<parallel>], iteration_bounds = array<i64: 1, 1>, scalar_prefetch = 0 : i64, scratch_operands = 0 : i64, tpu.core_type = #tpu.core_type<tc>, window_params = [{transform_indices = @transform_0, window_bounds = array<i64: 16, 128>}, {transform_indices = @transform_1, window_bounds = array<i64: 128, 128>}, {transform_indices = @transform_2, window_bounds = array<i64: 1, 128>}, {transform_indices = @transform_3, window_bounds = array<i64: 16, 128>}, {transform_indices = @transform_4, window_bounds = array<i64: 16, 128>}]} {
    %c0 = arith.constant 0 : index
    %c0_0 = arith.constant 0 : index
    %0 = vector.load %arg2[%c0, %c0_0] : memref<16x128xbf16, #tpu.memory_space<vmem>>, vector<16x128xbf16>
    %c0_1 = arith.constant 0 : index
    %c0_2 = arith.constant 0 : index
    %1 = vector.load %arg3[%c0_1, %c0_2] : memref<128x128xbf16, #tpu.memory_space<vmem>>, vector<128x128xbf16>
    %cst = arith.constant dense<0.000000e+00> : vector<16x128xf32>
    %2 = tpu.matmul %0, %1, %cst {dimension_numbers = #tpu.dot_dimension_numbers<[1], [0], [0], [1], [0, 0, 1, 1], [], []>} : vector<16x128xbf16>, vector<128x128xbf16>, vector<16x128xf32> -> vector<16x128xf32>
    %c0_3 = arith.constant 0 : index
    %c0_4 = arith.constant 0 : index
    %3 = vector.load %arg5[%c0_3, %c0_4] : memref<16x128xf32, #tpu.memory_space<vmem>>, vector<16x128xf32>
    %4 = arith.addf %3, %2 : vector<16x128xf32>
    %c0_5 = arith.constant 0 : index
    %c0_6 = arith.constant 0 : index
    %5 = vector.load %arg4[%c0_5, %c0_6] : memref<1x128xf32, #tpu.memory_space<vmem>>, vector<1x128xf32>
    %6 = vector.broadcast %5 : vector<1x128xf32> to vector<16x128xf32>
    %7 = arith.addf %4, %6 : vector<16x128xf32>
    %c0_7 = arith.constant 0 : index
    %c0_8 = arith.constant 0 : index
    %8 = vector.load %arg6[%c0_7, %c0_8] : memref<16x128xf32, #tpu.memory_space<vmem>>, vector<16x128xf32>
    tpu.vector_store %arg6[%c0_7, %c0_8], %7 {strides = array<i32>} : memref<16x128xf32, #tpu.memory_space<vmem>>, vector<16x128xf32>,
    return
  }
  func.func @transform_0(%arg0: i32, %arg1: i32) -> (i32, i32) {
    %c0_i32 = arith.constant 0 : i32
    %c0_i32_0 = arith.constant 0 : i32
    return %arg0, %c0_i32 : i32, i32
  }
  func.func @transform_1(%arg0: i32, %arg1: i32) -> (i32, i32) {
    %c0_i32 = arith.constant 0 : i32
    %c0_i32_0 = arith.constant 0 : i32
    return %c0_i32, %arg1 : i32, i32
  }
  func.func @transform_2(%arg0: i32, %arg1: i32) -> (i32, i32) {
    %c0_i32 = arith.constant 0 : i32
    %c0_i32_0 = arith.constant 0 : i32
    return %c0_i32, %arg1 : i32, i32
  }
  func.func @transform_3(%arg0: i32, %arg1: i32) -> (i32, i32) {
    %c0_i32 = arith.constant 0 : i32
    return %arg0, %arg1 : i32, i32
  }
  func.func @transform_4(%arg0: i32, %arg1: i32) -> (i32, i32) {
    %c0_i32 = arith.constant 0 : i32
    return %arg0, %arg1 : i32, i32
  }
}

module attributes {stable_mosaic.version = 11 : i64} {
  func.func @_ln_matmul_kernel(%arg0: i32, %arg1: i32, %arg2: memref<16x128xf32, #tpu.memory_space<vmem>>, %arg3: memref<1x128xf32, #tpu.memory_space<vmem>>, %arg4: memref<1x128xf32, #tpu.memory_space<vmem>>, %arg5: memref<128x384xbf16, #tpu.memory_space<vmem>>, %arg6: memref<1x384xf32, #tpu.memory_space<vmem>>, %arg7: memref<16x384xbf16, #tpu.memory_space<vmem>>, %arg8: memref<16x128xbf16, #tpu.memory_space<vmem>>) attributes {dimension_semantics = [#tpu.dimension_semantics<parallel>, #tpu.dimension_semantics<arbitrary>], iteration_bounds = array<i64: 1, 1>, scalar_prefetch = 0 : i64, scratch_operands = 1 : i64, tpu.core_type = #tpu.core_type<tc>, window_params = [{transform_indices = @transform_0, window_bounds = array<i64: 16, 128>}, {pipeline_mode = #tpu.pipeline_mode<synchronous>, transform_indices = @transform_1, window_bounds = array<i64: 1, 128>}, {pipeline_mode = #tpu.pipeline_mode<synchronous>, transform_indices = @transform_2, window_bounds = array<i64: 1, 128>}, {transform_indices = @transform_3, window_bounds = array<i64: 128, 384>}, {transform_indices = @transform_4, window_bounds = array<i64: 1, 384>}, {transform_indices = @transform_5, window_bounds = array<i64: 16, 384>}]} {
    %c0_i32 = arith.constant 0 : i32
    %0 = arith.cmpi eq, %arg1, %c0_i32 : i32
    %1 = arith.extui %0 : i1 to i32
    %c0_i32_0 = arith.constant 0 : i32
    %2 = arith.cmpi ne, %1, %c0_i32_0 : i32
    scf.if %2 {
      %c0_8 = arith.constant 0 : index
      %c0_9 = arith.constant 0 : index
      %11 = vector.load %arg2[%c0_8, %c0_9] : memref<16x128xf32, #tpu.memory_space<vmem>>, vector<16x128xf32>
      %cst_10 = arith.constant dense<0.000000e+00> : vector<16xf32>
      %12 = vector.multi_reduction <add>, %11, %cst_10 [1] : vector<16x128xf32> to vector<16xf32>
      %13 = vector.shape_cast %12 : vector<16xf32> to vector<16x1xf32>
      %cst_11 = arith.constant 1.280000e+02 : f32
      %14 = vector.broadcast %cst_11 : f32 to vector<16x1xf32>
      %15 = arith.divf %13, %14 : vector<16x1xf32>
      %16 = vector.broadcast %15 : vector<16x1xf32> to vector<16x128xf32>
      %17 = arith.subf %11, %16 : vector<16x128xf32>
      %18 = arith.mulf %17, %17 : vector<16x128xf32>
      %cst_12 = arith.constant dense<0.000000e+00> : vector<16xf32>
      %19 = vector.multi_reduction <add>, %18, %cst_12 [1] : vector<16x128xf32> to vector<16xf32>
      %20 = vector.shape_cast %19 : vector<16xf32> to vector<16x1xf32>
      %cst_13 = arith.constant 1.280000e+02 : f32
      %21 = vector.broadcast %cst_13 : f32 to vector<16x1xf32>
      %22 = arith.divf %20, %21 : vector<16x1xf32>
      %23 = vector.broadcast %15 : vector<16x1xf32> to vector<16x128xf32>
      %24 = arith.subf %11, %23 : vector<16x128xf32>
      %cst_14 = arith.constant 9.99999997E-7 : f32
      %25 = vector.broadcast %cst_14 : f32 to vector<16x1xf32>
      %26 = arith.addf %22, %25 : vector<16x1xf32>
      %27 = math.rsqrt %26 : vector<16x1xf32>
      %28 = vector.broadcast %27 : vector<16x1xf32> to vector<16x128xf32>
      %29 = arith.mulf %24, %28 : vector<16x128xf32>
      %c0_15 = arith.constant 0 : index
      %c0_16 = arith.constant 0 : index
      %30 = vector.load %arg3[%c0_15, %c0_16] : memref<1x128xf32, #tpu.memory_space<vmem>>, vector<1x128xf32>
      %31 = vector.broadcast %30 : vector<1x128xf32> to vector<16x128xf32>
      %32 = arith.mulf %29, %31 : vector<16x128xf32>
      %c0_17 = arith.constant 0 : index
      %c0_18 = arith.constant 0 : index
      %33 = vector.load %arg4[%c0_17, %c0_18] : memref<1x128xf32, #tpu.memory_space<vmem>>, vector<1x128xf32>
      %34 = vector.broadcast %33 : vector<1x128xf32> to vector<16x128xf32>
      %35 = arith.addf %32, %34 : vector<16x128xf32>
      %36 = arith.truncf %35 : vector<16x128xf32> to vector<16x128xbf16>
      %c0_19 = arith.constant 0 : index
      %c0_20 = arith.constant 0 : index
      %37 = vector.load %arg8[%c0_19, %c0_20] : memref<16x128xbf16, #tpu.memory_space<vmem>>, vector<16x128xbf16>
      tpu.vector_store %arg8[%c0_19, %c0_20], %36 {strides = array<i32>} : memref<16x128xbf16, #tpu.memory_space<vmem>>, vector<16x128xbf16>,
    } else {
    }
    %c0 = arith.constant 0 : index
    %c0_1 = arith.constant 0 : index
    %3 = vector.load %arg8[%c0, %c0_1] : memref<16x128xbf16, #tpu.memory_space<vmem>>, vector<16x128xbf16>
    %c0_2 = arith.constant 0 : index
    %c0_3 = arith.constant 0 : index
    %4 = vector.load %arg5[%c0_2, %c0_3] : memref<128x384xbf16, #tpu.memory_space<vmem>>, vector<128x384xbf16>
    %cst = arith.constant dense<0.000000e+00> : vector<16x384xf32>
    %5 = tpu.matmul %3, %4, %cst {dimension_numbers = #tpu.dot_dimension_numbers<[1], [0], [0], [1], [0, 0, 1, 1], [], []>} : vector<16x128xbf16>, vector<128x384xbf16>, vector<16x384xf32> -> vector<16x384xf32>
    %c0_4 = arith.constant 0 : index
    %c0_5 = arith.constant 0 : index
    %6 = vector.load %arg6[%c0_4, %c0_5] : memref<1x384xf32, #tpu.memory_space<vmem>>, vector<1x384xf32>
    %7 = vector.broadcast %6 : vector<1x384xf32> to vector<16x384xf32>
    %8 = arith.addf %5, %7 : vector<16x384xf32>
    %9 = arith.truncf %8 : vector<16x384xf32> to vector<16x384xbf16>
    %c0_6 = arith.constant 0 : index
    %c0_7 = arith.constant 0 : index
    %10 = vector.load %arg7[%c0_6, %c0_7] : memref<16x384xbf16, #tpu.memory_space<vmem>>, vector<16x384xbf16>
    tpu.vector_store %arg7[%c0_6, %c0_7], %9 {strides = array<i32>} : memref<16x384xbf16, #tpu.memory_space<vmem>>, vector<16x384xbf16>,
    return
  }
  func.func @transform_0(%arg0: i32, %arg1: i32) -> (i32, i32) {
    %c0_i32 = arith.constant 0 : i32
    %c0_i32_0 = arith.constant 0 : i32
    return %arg0, %c0_i32 : i32, i32
  }
  func.func @transform_1(%arg0: i32, %arg1: i32) -> (i32, i32) {
    %c0_i32 = arith.constant 0 : i32
    %c0_i32_0 = arith.constant 0 : i32
    %c0_i32_1 = arith.constant 0 : i32
    return %c0_i32, %c0_i32_0 : i32, i32
  }
  func.func @transform_2(%arg0: i32, %arg1: i32) -> (i32, i32) {
    %c0_i32 = arith.constant 0 : i32
    %c0_i32_0 = arith.constant 0 : i32
    %c0_i32_1 = arith.constant 0 : i32
    return %c0_i32, %c0_i32_0 : i32, i32
  }
  func.func @transform_3(%arg0: i32, %arg1: i32) -> (i32, i32) {
    %c0_i32 = arith.constant 0 : i32
    %c0_i32_0 = arith.constant 0 : i32
    return %c0_i32, %arg1 : i32, i32
  }
  func.func @transform_4(%arg0: i32, %arg1: i32) -> (i32, i32) {
    %c0_i32 = arith.constant 0 : i32
    %c0_i32_0 = arith.constant 0 : i32
    return %c0_i32, %arg1 : i32, i32
  }
  func.func @transform_5(%arg0: i32, %arg1: i32) -> (i32, i32) {
    %c0_i32 = arith.constant 0 : i32
    return %arg0, %arg1 : i32, i32
  }
}

module attributes {stable_mosaic.version = 11 : i64} {
  func.func @_ln_matmul_kernel(%arg0: i32, %arg1: i32, %arg2: memref<16x128xf32, #tpu.memory_space<vmem>>, %arg3: memref<1x128xf32, #tpu.memory_space<vmem>>, %arg4: memref<1x128xf32, #tpu.memory_space<vmem>>, %arg5: memref<128x128xbf16, #tpu.memory_space<vmem>>, %arg6: memref<1x128xf32, #tpu.memory_space<vmem>>, %arg7: memref<16x128xbf16, #tpu.memory_space<vmem>>, %arg8: memref<16x128xbf16, #tpu.memory_space<vmem>>) attributes {dimension_semantics = [#tpu.dimension_semantics<parallel>, #tpu.dimension_semantics<arbitrary>], iteration_bounds = array<i64: 1, 1>, scalar_prefetch = 0 : i64, scratch_operands = 1 : i64, tpu.core_type = #tpu.core_type<tc>, window_params = [{transform_indices = @transform_0, window_bounds = array<i64: 16, 128>}, {pipeline_mode = #tpu.pipeline_mode<synchronous>, transform_indices = @transform_1, window_bounds = array<i64: 1, 128>}, {pipeline_mode = #tpu.pipeline_mode<synchronous>, transform_indices = @transform_2, window_bounds = array<i64: 1, 128>}, {transform_indices = @transform_3, window_bounds = array<i64: 128, 128>}, {transform_indices = @transform_4, window_bounds = array<i64: 1, 128>}, {transform_indices = @transform_5, window_bounds = array<i64: 16, 128>}]} {
    %c0_i32 = arith.constant 0 : i32
    %0 = arith.cmpi eq, %arg1, %c0_i32 : i32
    %1 = arith.extui %0 : i1 to i32
    %c0_i32_0 = arith.constant 0 : i32
    %2 = arith.cmpi ne, %1, %c0_i32_0 : i32
    scf.if %2 {
      %c0_8 = arith.constant 0 : index
      %c0_9 = arith.constant 0 : index
      %11 = vector.load %arg2[%c0_8, %c0_9] : memref<16x128xf32, #tpu.memory_space<vmem>>, vector<16x128xf32>
      %cst_10 = arith.constant dense<0.000000e+00> : vector<16xf32>
      %12 = vector.multi_reduction <add>, %11, %cst_10 [1] : vector<16x128xf32> to vector<16xf32>
      %13 = vector.shape_cast %12 : vector<16xf32> to vector<16x1xf32>
      %cst_11 = arith.constant 1.280000e+02 : f32
      %14 = vector.broadcast %cst_11 : f32 to vector<16x1xf32>
      %15 = arith.divf %13, %14 : vector<16x1xf32>
      %16 = vector.broadcast %15 : vector<16x1xf32> to vector<16x128xf32>
      %17 = arith.subf %11, %16 : vector<16x128xf32>
      %18 = arith.mulf %17, %17 : vector<16x128xf32>
      %cst_12 = arith.constant dense<0.000000e+00> : vector<16xf32>
      %19 = vector.multi_reduction <add>, %18, %cst_12 [1] : vector<16x128xf32> to vector<16xf32>
      %20 = vector.shape_cast %19 : vector<16xf32> to vector<16x1xf32>
      %cst_13 = arith.constant 1.280000e+02 : f32
      %21 = vector.broadcast %cst_13 : f32 to vector<16x1xf32>
      %22 = arith.divf %20, %21 : vector<16x1xf32>
      %23 = vector.broadcast %15 : vector<16x1xf32> to vector<16x128xf32>
      %24 = arith.subf %11, %23 : vector<16x128xf32>
      %cst_14 = arith.constant 9.99999997E-7 : f32
      %25 = vector.broadcast %cst_14 : f32 to vector<16x1xf32>
      %26 = arith.addf %22, %25 : vector<16x1xf32>
      %27 = math.rsqrt %26 : vector<16x1xf32>
      %28 = vector.broadcast %27 : vector<16x1xf32> to vector<16x128xf32>
      %29 = arith.mulf %24, %28 : vector<16x128xf32>
      %c0_15 = arith.constant 0 : index
      %c0_16 = arith.constant 0 : index
      %30 = vector.load %arg3[%c0_15, %c0_16] : memref<1x128xf32, #tpu.memory_space<vmem>>, vector<1x128xf32>
      %31 = vector.broadcast %30 : vector<1x128xf32> to vector<16x128xf32>
      %32 = arith.mulf %29, %31 : vector<16x128xf32>
      %c0_17 = arith.constant 0 : index
      %c0_18 = arith.constant 0 : index
      %33 = vector.load %arg4[%c0_17, %c0_18] : memref<1x128xf32, #tpu.memory_space<vmem>>, vector<1x128xf32>
      %34 = vector.broadcast %33 : vector<1x128xf32> to vector<16x128xf32>
      %35 = arith.addf %32, %34 : vector<16x128xf32>
      %36 = arith.truncf %35 : vector<16x128xf32> to vector<16x128xbf16>
      %c0_19 = arith.constant 0 : index
      %c0_20 = arith.constant 0 : index
      %37 = vector.load %arg8[%c0_19, %c0_20] : memref<16x128xbf16, #tpu.memory_space<vmem>>, vector<16x128xbf16>
      tpu.vector_store %arg8[%c0_19, %c0_20], %36 {strides = array<i32>} : memref<16x128xbf16, #tpu.memory_space<vmem>>, vector<16x128xbf16>,
    } else {
    }
    %c0 = arith.constant 0 : index
    %c0_1 = arith.constant 0 : index
    %3 = vector.load %arg8[%c0, %c0_1] : memref<16x128xbf16, #tpu.memory_space<vmem>>, vector<16x128xbf16>
    %c0_2 = arith.constant 0 : index
    %c0_3 = arith.constant 0 : index
    %4 = vector.load %arg5[%c0_2, %c0_3] : memref<128x128xbf16, #tpu.memory_space<vmem>>, vector<128x128xbf16>
    %cst = arith.constant dense<0.000000e+00> : vector<16x128xf32>
    %5 = tpu.matmul %3, %4, %cst {dimension_numbers = #tpu.dot_dimension_numbers<[1], [0], [0], [1], [0, 0, 1, 1], [], []>} : vector<16x128xbf16>, vector<128x128xbf16>, vector<16x128xf32> -> vector<16x128xf32>
    %c0_4 = arith.constant 0 : index
    %c0_5 = arith.constant 0 : index
    %6 = vector.load %arg6[%c0_4, %c0_5] : memref<1x128xf32, #tpu.memory_space<vmem>>, vector<1x128xf32>
    %7 = vector.broadcast %6 : vector<1x128xf32> to vector<16x128xf32>
    %8 = arith.addf %5, %7 : vector<16x128xf32>
    %9 = arith.truncf %8 : vector<16x128xf32> to vector<16x128xbf16>
    %c0_6 = arith.constant 0 : index
    %c0_7 = arith.constant 0 : index
    %10 = vector.load %arg7[%c0_6, %c0_7] : memref<16x128xbf16, #tpu.memory_space<vmem>>, vector<16x128xbf16>
    tpu.vector_store %arg7[%c0_6, %c0_7], %9 {strides = array<i32>} : memref<16x128xbf16, #tpu.memory_space<vmem>>, vector<16x128xbf16>,
    return
  }
  func.func @transform_0(%arg0: i32, %arg1: i32) -> (i32, i32) {
    %c0_i32 = arith.constant 0 : i32
    %c0_i32_0 = arith.constant 0 : i32
    return %arg0, %c0_i32 : i32, i32
  }
  func.func @transform_1(%arg0: i32, %arg1: i32) -> (i32, i32) {
    %c0_i32 = arith.constant 0 : i32
    %c0_i32_0 = arith.constant 0 : i32
    %c0_i32_1 = arith.constant 0 : i32
    return %c0_i32, %c0_i32_0 : i32, i32
  }
  func.func @transform_2(%arg0: i32, %arg1: i32) -> (i32, i32) {
    %c0_i32 = arith.constant 0 : i32
    %c0_i32_0 = arith.constant 0 : i32
    %c0_i32_1 = arith.constant 0 : i32
    return %c0_i32, %c0_i32_0 : i32, i32
  }
  func.func @transform_3(%arg0: i32, %arg1: i32) -> (i32, i32) {
    %c0_i32 = arith.constant 0 : i32
    %c0_i32_0 = arith.constant 0 : i32
    return %c0_i32, %arg1 : i32, i32
  }
  func.func @transform_4(%arg0: i32, %arg1: i32) -> (i32, i32) {
    %c0_i32 = arith.constant 0 : i32
    %c0_i32_0 = arith.constant 0 : i32
    return %c0_i32, %arg1 : i32, i32
  }
  func.func @transform_5(%arg0: i32, %arg1: i32) -> (i32, i32) {
    %c0_i32 = arith.constant 0 : i32
    return %arg0, %arg1 : i32, i32
  }
}

module attributes {stable_mosaic.version = 11 : i64} {
  func.func @_attn_kernel(%arg0: i32, %arg1: i32, %arg2: memref<1x8x128xbf16, #tpu.memory_space<vmem>>, %arg3: memref<1x8x128xbf16, #tpu.memory_space<vmem>>, %arg4: memref<1x8x128xbf16, #tpu.memory_space<vmem>>, %arg5: memref<1x8x128xbf16, #tpu.memory_space<vmem>>) attributes {dimension_semantics = [#tpu.dimension_semantics<parallel>, #tpu.dimension_semantics<arbitrary>], iteration_bounds = array<i64: 2, 1>, scalar_prefetch = 0 : i64, scratch_operands = 0 : i64, tpu.core_type = #tpu.core_type<tc>, window_params = [{transform_indices = @transform_0, window_bounds = array<i64: 1, 8, 128>}, {transform_indices = @transform_1, window_bounds = array<i64: 1, 8, 128>}, {transform_indices = @transform_2, window_bounds = array<i64: 1, 8, 128>}, {transform_indices = @transform_3, window_bounds = array<i64: 1, 8, 128>}]} {
    %c0 = arith.constant 0 : index
    %c0_0 = arith.constant 0 : index
    %c0_1 = arith.constant 0 : index
    %0 = vector.load %arg2[%c0, %c0_0, %c0_1] : memref<1x8x128xbf16, #tpu.memory_space<vmem>>, vector<1x8x128xbf16>
    %1 = vector.shape_cast %0 : vector<1x8x128xbf16> to vector<8x128xbf16>
    %c0_2 = arith.constant 0 : index
    %c0_3 = arith.constant 0 : index
    %c0_4 = arith.constant 0 : index
    %2 = vector.load %arg3[%c0_2, %c0_3, %c0_4] : memref<1x8x128xbf16, #tpu.memory_space<vmem>>, vector<1x8x128xbf16>
    %3 = vector.shape_cast %2 : vector<1x8x128xbf16> to vector<8x128xbf16>
    %c0_5 = arith.constant 0 : index
    %c0_6 = arith.constant 0 : index
    %c0_7 = arith.constant 0 : index
    %4 = vector.load %arg4[%c0_5, %c0_6, %c0_7] : memref<1x8x128xbf16, #tpu.memory_space<vmem>>, vector<1x8x128xbf16>
    %5 = vector.shape_cast %4 : vector<1x8x128xbf16> to vector<8x128xbf16>
    %c8_i32 = arith.constant 8 : i32
    %6 = arith.muli %arg1, %c8_i32 : i32
    %7 = tpu.iota {dimensions = array<i32: 0>} : vector<8x8xi32>
    %8 = vector.broadcast %6 : i32 to vector<8x8xi32>
    %9 = arith.addi %7, %8 : vector<8x8xi32>
    %10 = tpu.iota {dimensions = array<i32: 1>} : vector<8x8xi32>
    %11 = arith.cmpi sle, %10, %9 : vector<8x8xi32>
    %12 = vector.extract_strided_slice %1 {offsets = [0, 0], sizes = [8, 32], strides = [1, 1]} : vector<8x128xbf16> to vector<8x32xbf16>
    %13 = vector.extract_strided_slice %3 {offsets = [0, 0], sizes = [8, 32], strides = [1, 1]} : vector<8x128xbf16> to vector<8x32xbf16>
    %14 = vector.extract_strided_slice %5 {offsets = [0, 0], sizes = [8, 32], strides = [1, 1]} : vector<8x128xbf16> to vector<8x32xbf16>
    %cst = arith.constant dense<0.000000e+00> : vector<8x8xf32>
    %15 = tpu.matmul %12, %13, %cst {dimension_numbers = #tpu.dot_dimension_numbers<[1], [1], [0], [0], [0, 0, 1, 0], [], []>} : vector<8x32xbf16>, vector<8x32xbf16>, vector<8x8xf32> -> vector<8x8xf32>
    %cst_8 = arith.constant 0.176776692 : f32
    %16 = vector.broadcast %cst_8 : f32 to vector<8x8xf32>
    %17 = arith.mulf %15, %16 : vector<8x8xf32>
    %cst_9 = arith.constant -1.000000e+09 : f32
    %18 = vector.broadcast %cst_9 : f32 to vector<8x8xf32>
    %19 = arith.select %11, %17, %18 : vector<8x8xi1>, vector<8x8xf32>
    %cst_10 = arith.constant dense<0xFF800000> : vector<8xf32>
    %20 = vector.multi_reduction <maximumf>, %19, %cst_10 [1] : vector<8x8xf32> to vector<8xf32>
    %21 = vector.shape_cast %20 : vector<8xf32> to vector<8x1xf32>
    %22 = vector.broadcast %21 : vector<8x1xf32> to vector<8x8xf32>
    %23 = arith.subf %19, %22 : vector<8x8xf32>
    %24 = math.exp %23 : vector<8x8xf32>
    %cst_11 = arith.constant dense<0.000000e+00> : vector<8xf32>
    %25 = vector.multi_reduction <add>, %24, %cst_11 [1] : vector<8x8xf32> to vector<8xf32>
    %26 = vector.shape_cast %25 : vector<8xf32> to vector<8x1xf32>
    %27 = tpu.reciprocal %26 {approx = true} : vector<8x1xf32> -> vector<8x1xf32>
    %28 = vector.broadcast %27 : vector<8x1xf32> to vector<8x8xf32>
    %29 = arith.mulf %24, %28 : vector<8x8xf32>
    %30 = arith.truncf %29 : vector<8x8xf32> to vector<8x8xbf16>
    %cst_12 = arith.constant dense<0.000000e+00> : vector<8x32xf32>
    %31 = tpu.matmul %30, %14, %cst_12 {dimension_numbers = #tpu.dot_dimension_numbers<[1], [0], [0], [1], [0, 0, 1, 1], [], []>} : vector<8x8xbf16>, vector<8x32xbf16>, vector<8x32xf32> -> vector<8x32xf32>
    %32 = vector.extract_strided_slice %1 {offsets = [0, 32], sizes = [8, 32], strides = [1, 1]} : vector<8x128xbf16> to vector<8x32xbf16>
    %33 = vector.extract_strided_slice %3 {offsets = [0, 32], sizes = [8, 32], strides = [1, 1]} : vector<8x128xbf16> to vector<8x32xbf16>
    %34 = vector.extract_strided_slice %5 {offsets = [0, 32], sizes = [8, 32], strides = [1, 1]} : vector<8x128xbf16> to vector<8x32xbf16>
    %cst_13 = arith.constant dense<0.000000e+00> : vector<8x8xf32>
    %35 = tpu.matmul %32, %33, %cst_13 {dimension_numbers = #tpu.dot_dimension_numbers<[1], [1], [0], [0], [0, 0, 1, 0], [], []>} : vector<8x32xbf16>, vector<8x32xbf16>, vector<8x8xf32> -> vector<8x8xf32>
    %cst_14 = arith.constant 0.176776692 : f32
    %36 = vector.broadcast %cst_14 : f32 to vector<8x8xf32>
    %37 = arith.mulf %35, %36 : vector<8x8xf32>
    %cst_15 = arith.constant -1.000000e+09 : f32
    %38 = vector.broadcast %cst_15 : f32 to vector<8x8xf32>
    %39 = arith.select %11, %37, %38 : vector<8x8xi1>, vector<8x8xf32>
    %cst_16 = arith.constant dense<0xFF800000> : vector<8xf32>
    %40 = vector.multi_reduction <maximumf>, %39, %cst_16 [1] : vector<8x8xf32> to vector<8xf32>
    %41 = vector.shape_cast %40 : vector<8xf32> to vector<8x1xf32>
    %42 = vector.broadcast %41 : vector<8x1xf32> to vector<8x8xf32>
    %43 = arith.subf %39, %42 : vector<8x8xf32>
    %44 = math.exp %43 : vector<8x8xf32>
    %cst_17 = arith.constant dense<0.000000e+00> : vector<8xf32>
    %45 = vector.multi_reduction <add>, %44, %cst_17 [1] : vector<8x8xf32> to vector<8xf32>
    %46 = vector.shape_cast %45 : vector<8xf32> to vector<8x1xf32>
    %47 = tpu.reciprocal %46 {approx = true} : vector<8x1xf32> -> vector<8x1xf32>
    %48 = vector.broadcast %47 : vector<8x1xf32> to vector<8x8xf32>
    %49 = arith.mulf %44, %48 : vector<8x8xf32>
    %50 = arith.truncf %49 : vector<8x8xf32> to vector<8x8xbf16>
    %cst_18 = arith.constant dense<0.000000e+00> : vector<8x32xf32>
    %51 = tpu.matmul %50, %34, %cst_18 {dimension_numbers = #tpu.dot_dimension_numbers<[1], [0], [0], [1], [0, 0, 1, 1], [], []>} : vector<8x8xbf16>, vector<8x32xbf16>, vector<8x32xf32> -> vector<8x32xf32>
    %52 = vector.extract_strided_slice %1 {offsets = [0, 64], sizes = [8, 32], strides = [1, 1]} : vector<8x128xbf16> to vector<8x32xbf16>
    %53 = vector.extract_strided_slice %3 {offsets = [0, 64], sizes = [8, 32], strides = [1, 1]} : vector<8x128xbf16> to vector<8x32xbf16>
    %54 = vector.extract_strided_slice %5 {offsets = [0, 64], sizes = [8, 32], strides = [1, 1]} : vector<8x128xbf16> to vector<8x32xbf16>
    %cst_19 = arith.constant dense<0.000000e+00> : vector<8x8xf32>
    %55 = tpu.matmul %52, %53, %cst_19 {dimension_numbers = #tpu.dot_dimension_numbers<[1], [1], [0], [0], [0, 0, 1, 0], [], []>} : vector<8x32xbf16>, vector<8x32xbf16>, vector<8x8xf32> -> vector<8x8xf32>
    %cst_20 = arith.constant 0.176776692 : f32
    %56 = vector.broadcast %cst_20 : f32 to vector<8x8xf32>
    %57 = arith.mulf %55, %56 : vector<8x8xf32>
    %cst_21 = arith.constant -1.000000e+09 : f32
    %58 = vector.broadcast %cst_21 : f32 to vector<8x8xf32>
    %59 = arith.select %11, %57, %58 : vector<8x8xi1>, vector<8x8xf32>
    %cst_22 = arith.constant dense<0xFF800000> : vector<8xf32>
    %60 = vector.multi_reduction <maximumf>, %59, %cst_22 [1] : vector<8x8xf32> to vector<8xf32>
    %61 = vector.shape_cast %60 : vector<8xf32> to vector<8x1xf32>
    %62 = vector.broadcast %61 : vector<8x1xf32> to vector<8x8xf32>
    %63 = arith.subf %59, %62 : vector<8x8xf32>
    %64 = math.exp %63 : vector<8x8xf32>
    %cst_23 = arith.constant dense<0.000000e+00> : vector<8xf32>
    %65 = vector.multi_reduction <add>, %64, %cst_23 [1] : vector<8x8xf32> to vector<8xf32>
    %66 = vector.shape_cast %65 : vector<8xf32> to vector<8x1xf32>
    %67 = tpu.reciprocal %66 {approx = true} : vector<8x1xf32> -> vector<8x1xf32>
    %68 = vector.broadcast %67 : vector<8x1xf32> to vector<8x8xf32>
    %69 = arith.mulf %64, %68 : vector<8x8xf32>
    %70 = arith.truncf %69 : vector<8x8xf32> to vector<8x8xbf16>
    %cst_24 = arith.constant dense<0.000000e+00> : vector<8x32xf32>
    %71 = tpu.matmul %70, %54, %cst_24 {dimension_numbers = #tpu.dot_dimension_numbers<[1], [0], [0], [1], [0, 0, 1, 1], [], []>} : vector<8x8xbf16>, vector<8x32xbf16>, vector<8x32xf32> -> vector<8x32xf32>
    %72 = vector.extract_strided_slice %1 {offsets = [0, 96], sizes = [8, 32], strides = [1, 1]} : vector<8x128xbf16> to vector<8x32xbf16>
    %73 = vector.extract_strided_slice %3 {offsets = [0, 96], sizes = [8, 32], strides = [1, 1]} : vector<8x128xbf16> to vector<8x32xbf16>
    %74 = vector.extract_strided_slice %5 {offsets = [0, 96], sizes = [8, 32], strides = [1, 1]} : vector<8x128xbf16> to vector<8x32xbf16>
    %cst_25 = arith.constant dense<0.000000e+00> : vector<8x8xf32>
    %75 = tpu.matmul %72, %73, %cst_25 {dimension_numbers = #tpu.dot_dimension_numbers<[1], [1], [0], [0], [0, 0, 1, 0], [], []>} : vector<8x32xbf16>, vector<8x32xbf16>, vector<8x8xf32> -> vector<8x8xf32>
    %cst_26 = arith.constant 0.176776692 : f32
    %76 = vector.broadcast %cst_26 : f32 to vector<8x8xf32>
    %77 = arith.mulf %75, %76 : vector<8x8xf32>
    %cst_27 = arith.constant -1.000000e+09 : f32
    %78 = vector.broadcast %cst_27 : f32 to vector<8x8xf32>
    %79 = arith.select %11, %77, %78 : vector<8x8xi1>, vector<8x8xf32>
    %cst_28 = arith.constant dense<0xFF800000> : vector<8xf32>
    %80 = vector.multi_reduction <maximumf>, %79, %cst_28 [1] : vector<8x8xf32> to vector<8xf32>
    %81 = vector.shape_cast %80 : vector<8xf32> to vector<8x1xf32>
    %82 = vector.broadcast %81 : vector<8x1xf32> to vector<8x8xf32>
    %83 = arith.subf %79, %82 : vector<8x8xf32>
    %84 = math.exp %83 : vector<8x8xf32>
    %cst_29 = arith.constant dense<0.000000e+00> : vector<8xf32>
    %85 = vector.multi_reduction <add>, %84, %cst_29 [1] : vector<8x8xf32> to vector<8xf32>
    %86 = vector.shape_cast %85 : vector<8xf32> to vector<8x1xf32>
    %87 = tpu.reciprocal %86 {approx = true} : vector<8x1xf32> -> vector<8x1xf32>
    %88 = vector.broadcast %87 : vector<8x1xf32> to vector<8x8xf32>
    %89 = arith.mulf %84, %88 : vector<8x8xf32>
    %90 = arith.truncf %89 : vector<8x8xf32> to vector<8x8xbf16>
    %cst_30 = arith.constant dense<0.000000e+00> : vector<8x32xf32>
    %91 = tpu.matmul %90, %74, %cst_30 {dimension_numbers = #tpu.dot_dimension_numbers<[1], [0], [0], [1], [0, 0, 1, 1], [], []>} : vector<8x8xbf16>, vector<8x32xbf16>, vector<8x32xf32> -> vector<8x32xf32>
    %92 = tpu.concatenate %31, %51, %71, %91 in 1 : vector<8x32xf32>, vector<8x32xf32>, vector<8x32xf32>, vector<8x32xf32> -> vector<8x128xf32>
    %93 = arith.truncf %92 : vector<8x128xf32> to vector<8x128xbf16>
    %c0_31 = arith.constant 0 : index
    %c0_32 = arith.constant 0 : index
    %c0_33 = arith.constant 0 : index
    %94 = vector.load %arg5[%c0_31, %c0_32, %c0_33] : memref<1x8x128xbf16, #tpu.memory_space<vmem>>, vector<1x8x128xbf16>
    %95 = vector.shape_cast %94 : vector<1x8x128xbf16> to vector<8x128xbf16>
    %96 = vector.shape_cast %93 : vector<8x128xbf16> to vector<1x8x128xbf16>
    tpu.vector_store %arg5[%c0_31, %c0_32, %c0_33], %96 {strides = array<i32>} : memref<1x8x128xbf16, #tpu.memory_space<vmem>>, vector<1x8x128xbf16>,
    return
  }
  func.func @transform_0(%arg0: i32, %arg1: i32) -> (i32, i32, i32) {
    %c0_i32 = arith.constant 0 : i32
    %c0_i32_0 = arith.constant 0 : i32
    return %arg0, %arg1, %c0_i32 : i32, i32, i32
  }
  func.func @transform_1(%arg0: i32, %arg1: i32) -> (i32, i32, i32) {
    %c0_i32 = arith.constant 0 : i32
    %c1_i32 = arith.constant 1 : i32
    %c0_i32_0 = arith.constant 0 : i32
    return %arg0, %c0_i32, %c1_i32 : i32, i32, i32
  }
  func.func @transform_2(%arg0: i32, %arg1: i32) -> (i32, i32, i32) {
    %c0_i32 = arith.constant 0 : i32
    %c2_i32 = arith.constant 2 : i32
    %c0_i32_0 = arith.constant 0 : i32
    return %arg0, %c0_i32, %c2_i32 : i32, i32, i32
  }
  func.func @transform_3(%arg0: i32, %arg1: i32) -> (i32, i32, i32) {
    %c0_i32 = arith.constant 0 : i32
    %c0_i32_0 = arith.constant 0 : i32
    return %arg0, %arg1, %c0_i32 : i32, i32, i32
  }
}

module attributes {stable_mosaic.version = 11 : i64} {
  func.func @_linear_kernel(%arg0: i32, %arg1: i32, %arg2: i32, %arg3: memref<16x128xbf16, #tpu.memory_space<vmem>>, %arg4: memref<128x256xbf16, #tpu.memory_space<vmem>>, %arg5: memref<1x256xf32, #tpu.memory_space<vmem>>, %arg6: memref<16x256xbf16, #tpu.memory_space<vmem>>, %arg7: memref<16x256xf32, #tpu.memory_space<vmem>>) attributes {dimension_semantics = [#tpu.dimension_semantics<parallel>, #tpu.dimension_semantics<parallel>, #tpu.dimension_semantics<arbitrary>], iteration_bounds = array<i64: 1, 1, 1>, scalar_prefetch = 0 : i64, scratch_operands = 1 : i64, tpu.core_type = #tpu.core_type<tc>, window_params = [{transform_indices = @transform_0, window_bounds = array<i64: 16, 128>}, {transform_indices = @transform_1, window_bounds = array<i64: 128, 256>}, {transform_indices = @transform_2, window_bounds = array<i64: 1, 256>}, {transform_indices = @transform_3, window_bounds = array<i64: 16, 256>}]} {
    %c0_i32 = arith.constant 0 : i32
    %0 = arith.cmpi eq, %arg2, %c0_i32 : i32
    %1 = arith.extui %0 : i1 to i32
    %c0_i32_0 = arith.constant 0 : i32
    %2 = arith.cmpi ne, %1, %c0_i32_0 : i32
    scf.if %2 {
      %cst_10 = arith.constant 0.000000e+00 : f32
      %12 = vector.broadcast %cst_10 : f32 to vector<16x256xf32>
      %c0_11 = arith.constant 0 : index
      %c0_12 = arith.constant 0 : index
      %13 = vector.load %arg7[%c0_11, %c0_12] : memref<16x256xf32, #tpu.memory_space<vmem>>, vector<16x256xf32>
      tpu.vector_store %arg7[%c0_11, %c0_12], %12 {strides = array<i32>} : memref<16x256xf32, #tpu.memory_space<vmem>>, vector<16x256xf32>,
    } else {
    }
    %c0 = arith.constant 0 : index
    %c0_1 = arith.constant 0 : index
    %3 = vector.load %arg7[%c0, %c0_1] : memref<16x256xf32, #tpu.memory_space<vmem>>, vector<16x256xf32>
    %c0_2 = arith.constant 0 : index
    %c0_3 = arith.constant 0 : index
    %4 = vector.load %arg3[%c0_2, %c0_3] : memref<16x128xbf16, #tpu.memory_space<vmem>>, vector<16x128xbf16>
    %c0_4 = arith.constant 0 : index
    %c0_5 = arith.constant 0 : index
    %5 = vector.load %arg4[%c0_4, %c0_5] : memref<128x256xbf16, #tpu.memory_space<vmem>>, vector<128x256xbf16>
    %cst = arith.constant dense<0.000000e+00> : vector<16x256xf32>
    %6 = tpu.matmul %4, %5, %cst {dimension_numbers = #tpu.dot_dimension_numbers<[1], [0], [0], [1], [0, 0, 1, 1], [], []>} : vector<16x128xbf16>, vector<128x256xbf16>, vector<16x256xf32> -> vector<16x256xf32>
    %7 = arith.addf %3, %6 : vector<16x256xf32>
    %c0_6 = arith.constant 0 : index
    %c0_7 = arith.constant 0 : index
    %8 = vector.load %arg7[%c0_6, %c0_7] : memref<16x256xf32, #tpu.memory_space<vmem>>, vector<16x256xf32>
    tpu.vector_store %arg7[%c0_6, %c0_7], %7 {strides = array<i32>} : memref<16x256xf32, #tpu.memory_space<vmem>>, vector<16x256xf32>,
    %c0_i32_8 = arith.constant 0 : i32
    %9 = arith.cmpi eq, %arg2, %c0_i32_8 : i32
    %10 = arith.extui %9 : i1 to i32
    %c0_i32_9 = arith.constant 0 : i32
    %11 = arith.cmpi ne, %10, %c0_i32_9 : i32
    scf.if %11 {
      %c0_10 = arith.constant 0 : index
      %c0_11 = arith.constant 0 : index
      %12 = vector.load %arg7[%c0_10, %c0_11] : memref<16x256xf32, #tpu.memory_space<vmem>>, vector<16x256xf32>
      %c0_12 = arith.constant 0 : index
      %c0_13 = arith.constant 0 : index
      %13 = vector.load %arg5[%c0_12, %c0_13] : memref<1x256xf32, #tpu.memory_space<vmem>>, vector<1x256xf32>
      %14 = vector.broadcast %13 : vector<1x256xf32> to vector<16x256xf32>
      %15 = arith.addf %12, %14 : vector<16x256xf32>
      %16 = arith.truncf %15 : vector<16x256xf32> to vector<16x256xbf16>
      %c0_14 = arith.constant 0 : index
      %c0_15 = arith.constant 0 : index
      %17 = vector.load %arg6[%c0_14, %c0_15] : memref<16x256xbf16, #tpu.memory_space<vmem>>, vector<16x256xbf16>
      tpu.vector_store %arg6[%c0_14, %c0_15], %16 {strides = array<i32>} : memref<16x256xbf16, #tpu.memory_space<vmem>>, vector<16x256xbf16>,
    } else {
    }
    return
  }
  func.func @transform_0(%arg0: i32, %arg1: i32, %arg2: i32) -> (i32, i32) {
    %c0_i32 = arith.constant 0 : i32
    return %arg0, %arg2 : i32, i32
  }
  func.func @transform_1(%arg0: i32, %arg1: i32, %arg2: i32) -> (i32, i32) {
    %c0_i32 = arith.constant 0 : i32
    return %arg2, %arg1 : i32, i32
  }
  func.func @transform_2(%arg0: i32, %arg1: i32, %arg2: i32) -> (i32, i32) {
    %c0_i32 = arith.constant 0 : i32
    %c0_i32_0 = arith.constant 0 : i32
    return %c0_i32, %arg1 : i32, i32
  }
  func.func @transform_3(%arg0: i32, %arg1: i32, %arg2: i32) -> (i32, i32) {
    %c0_i32 = arith.constant 0 : i32
    return %arg0, %arg1 : i32, i32
  }
}

module attributes {stable_mosaic.version = 11 : i64} {
  func.func @_attn_kernel(%arg0: i32, %arg1: i32, %arg2: memref<1x8x128xbf16, #tpu.memory_space<vmem>>, %arg3: memref<1x8x128xbf16, #tpu.memory_space<vmem>>, %arg4: memref<1x8x128xbf16, #tpu.memory_space<vmem>>, %arg5: memref<1x8x128xbf16, #tpu.memory_space<vmem>>) attributes {dimension_semantics = [#tpu.dimension_semantics<parallel>, #tpu.dimension_semantics<arbitrary>], iteration_bounds = array<i64: 2, 1>, scalar_prefetch = 0 : i64, scratch_operands = 0 : i64, tpu.core_type = #tpu.core_type<tc>, window_params = [{transform_indices = @transform_0, window_bounds = array<i64: 1, 8, 128>}, {transform_indices = @transform_1, window_bounds = array<i64: 1, 8, 128>}, {transform_indices = @transform_2, window_bounds = array<i64: 1, 8, 128>}, {transform_indices = @transform_3, window_bounds = array<i64: 1, 8, 128>}]} {
    %c0 = arith.constant 0 : index
    %c0_0 = arith.constant 0 : index
    %c0_1 = arith.constant 0 : index
    %0 = vector.load %arg2[%c0, %c0_0, %c0_1] : memref<1x8x128xbf16, #tpu.memory_space<vmem>>, vector<1x8x128xbf16>
    %1 = vector.shape_cast %0 : vector<1x8x128xbf16> to vector<8x128xbf16>
    %c0_2 = arith.constant 0 : index
    %c0_3 = arith.constant 0 : index
    %c0_4 = arith.constant 0 : index
    %2 = vector.load %arg3[%c0_2, %c0_3, %c0_4] : memref<1x8x128xbf16, #tpu.memory_space<vmem>>, vector<1x8x128xbf16>
    %3 = vector.shape_cast %2 : vector<1x8x128xbf16> to vector<8x128xbf16>
    %c0_5 = arith.constant 0 : index
    %c0_6 = arith.constant 0 : index
    %c0_7 = arith.constant 0 : index
    %4 = vector.load %arg4[%c0_5, %c0_6, %c0_7] : memref<1x8x128xbf16, #tpu.memory_space<vmem>>, vector<1x8x128xbf16>
    %5 = vector.shape_cast %4 : vector<1x8x128xbf16> to vector<8x128xbf16>
    %6 = vector.extract_strided_slice %1 {offsets = [0, 0], sizes = [8, 32], strides = [1, 1]} : vector<8x128xbf16> to vector<8x32xbf16>
    %7 = vector.extract_strided_slice %3 {offsets = [0, 0], sizes = [8, 32], strides = [1, 1]} : vector<8x128xbf16> to vector<8x32xbf16>
    %8 = vector.extract_strided_slice %5 {offsets = [0, 0], sizes = [8, 32], strides = [1, 1]} : vector<8x128xbf16> to vector<8x32xbf16>
    %cst = arith.constant dense<0.000000e+00> : vector<8x8xf32>
    %9 = tpu.matmul %6, %7, %cst {dimension_numbers = #tpu.dot_dimension_numbers<[1], [1], [0], [0], [0, 0, 1, 0], [], []>} : vector<8x32xbf16>, vector<8x32xbf16>, vector<8x8xf32> -> vector<8x8xf32>
    %cst_8 = arith.constant 0.176776692 : f32
    %10 = vector.broadcast %cst_8 : f32 to vector<8x8xf32>
    %11 = arith.mulf %9, %10 : vector<8x8xf32>
    %cst_9 = arith.constant dense<0xFF800000> : vector<8xf32>
    %12 = vector.multi_reduction <maximumf>, %11, %cst_9 [1] : vector<8x8xf32> to vector<8xf32>
    %13 = vector.shape_cast %12 : vector<8xf32> to vector<8x1xf32>
    %14 = vector.broadcast %13 : vector<8x1xf32> to vector<8x8xf32>
    %15 = arith.subf %11, %14 : vector<8x8xf32>
    %16 = math.exp %15 : vector<8x8xf32>
    %cst_10 = arith.constant dense<0.000000e+00> : vector<8xf32>
    %17 = vector.multi_reduction <add>, %16, %cst_10 [1] : vector<8x8xf32> to vector<8xf32>
    %18 = vector.shape_cast %17 : vector<8xf32> to vector<8x1xf32>
    %19 = tpu.reciprocal %18 {approx = true} : vector<8x1xf32> -> vector<8x1xf32>
    %20 = vector.broadcast %19 : vector<8x1xf32> to vector<8x8xf32>
    %21 = arith.mulf %16, %20 : vector<8x8xf32>
    %22 = arith.truncf %21 : vector<8x8xf32> to vector<8x8xbf16>
    %cst_11 = arith.constant dense<0.000000e+00> : vector<8x32xf32>
    %23 = tpu.matmul %22, %8, %cst_11 {dimension_numbers = #tpu.dot_dimension_numbers<[1], [0], [0], [1], [0, 0, 1, 1], [], []>} : vector<8x8xbf16>, vector<8x32xbf16>, vector<8x32xf32> -> vector<8x32xf32>
    %24 = vector.extract_strided_slice %1 {offsets = [0, 32], sizes = [8, 32], strides = [1, 1]} : vector<8x128xbf16> to vector<8x32xbf16>
    %25 = vector.extract_strided_slice %3 {offsets = [0, 32], sizes = [8, 32], strides = [1, 1]} : vector<8x128xbf16> to vector<8x32xbf16>
    %26 = vector.extract_strided_slice %5 {offsets = [0, 32], sizes = [8, 32], strides = [1, 1]} : vector<8x128xbf16> to vector<8x32xbf16>
    %cst_12 = arith.constant dense<0.000000e+00> : vector<8x8xf32>
    %27 = tpu.matmul %24, %25, %cst_12 {dimension_numbers = #tpu.dot_dimension_numbers<[1], [1], [0], [0], [0, 0, 1, 0], [], []>} : vector<8x32xbf16>, vector<8x32xbf16>, vector<8x8xf32> -> vector<8x8xf32>
    %cst_13 = arith.constant 0.176776692 : f32
    %28 = vector.broadcast %cst_13 : f32 to vector<8x8xf32>
    %29 = arith.mulf %27, %28 : vector<8x8xf32>
    %cst_14 = arith.constant dense<0xFF800000> : vector<8xf32>
    %30 = vector.multi_reduction <maximumf>, %29, %cst_14 [1] : vector<8x8xf32> to vector<8xf32>
    %31 = vector.shape_cast %30 : vector<8xf32> to vector<8x1xf32>
    %32 = vector.broadcast %31 : vector<8x1xf32> to vector<8x8xf32>
    %33 = arith.subf %29, %32 : vector<8x8xf32>
    %34 = math.exp %33 : vector<8x8xf32>
    %cst_15 = arith.constant dense<0.000000e+00> : vector<8xf32>
    %35 = vector.multi_reduction <add>, %34, %cst_15 [1] : vector<8x8xf32> to vector<8xf32>
    %36 = vector.shape_cast %35 : vector<8xf32> to vector<8x1xf32>
    %37 = tpu.reciprocal %36 {approx = true} : vector<8x1xf32> -> vector<8x1xf32>
    %38 = vector.broadcast %37 : vector<8x1xf32> to vector<8x8xf32>
    %39 = arith.mulf %34, %38 : vector<8x8xf32>
    %40 = arith.truncf %39 : vector<8x8xf32> to vector<8x8xbf16>
    %cst_16 = arith.constant dense<0.000000e+00> : vector<8x32xf32>
    %41 = tpu.matmul %40, %26, %cst_16 {dimension_numbers = #tpu.dot_dimension_numbers<[1], [0], [0], [1], [0, 0, 1, 1], [], []>} : vector<8x8xbf16>, vector<8x32xbf16>, vector<8x32xf32> -> vector<8x32xf32>
    %42 = vector.extract_strided_slice %1 {offsets = [0, 64], sizes = [8, 32], strides = [1, 1]} : vector<8x128xbf16> to vector<8x32xbf16>
    %43 = vector.extract_strided_slice %3 {offsets = [0, 64], sizes = [8, 32], strides = [1, 1]} : vector<8x128xbf16> to vector<8x32xbf16>
    %44 = vector.extract_strided_slice %5 {offsets = [0, 64], sizes = [8, 32], strides = [1, 1]} : vector<8x128xbf16> to vector<8x32xbf16>
    %cst_17 = arith.constant dense<0.000000e+00> : vector<8x8xf32>
    %45 = tpu.matmul %42, %43, %cst_17 {dimension_numbers = #tpu.dot_dimension_numbers<[1], [1], [0], [0], [0, 0, 1, 0], [], []>} : vector<8x32xbf16>, vector<8x32xbf16>, vector<8x8xf32> -> vector<8x8xf32>
    %cst_18 = arith.constant 0.176776692 : f32
    %46 = vector.broadcast %cst_18 : f32 to vector<8x8xf32>
    %47 = arith.mulf %45, %46 : vector<8x8xf32>
    %cst_19 = arith.constant dense<0xFF800000> : vector<8xf32>
    %48 = vector.multi_reduction <maximumf>, %47, %cst_19 [1] : vector<8x8xf32> to vector<8xf32>
    %49 = vector.shape_cast %48 : vector<8xf32> to vector<8x1xf32>
    %50 = vector.broadcast %49 : vector<8x1xf32> to vector<8x8xf32>
    %51 = arith.subf %47, %50 : vector<8x8xf32>
    %52 = math.exp %51 : vector<8x8xf32>
    %cst_20 = arith.constant dense<0.000000e+00> : vector<8xf32>
    %53 = vector.multi_reduction <add>, %52, %cst_20 [1] : vector<8x8xf32> to vector<8xf32>
    %54 = vector.shape_cast %53 : vector<8xf32> to vector<8x1xf32>
    %55 = tpu.reciprocal %54 {approx = true} : vector<8x1xf32> -> vector<8x1xf32>
    %56 = vector.broadcast %55 : vector<8x1xf32> to vector<8x8xf32>
    %57 = arith.mulf %52, %56 : vector<8x8xf32>
    %58 = arith.truncf %57 : vector<8x8xf32> to vector<8x8xbf16>
    %cst_21 = arith.constant dense<0.000000e+00> : vector<8x32xf32>
    %59 = tpu.matmul %58, %44, %cst_21 {dimension_numbers = #tpu.dot_dimension_numbers<[1], [0], [0], [1], [0, 0, 1, 1], [], []>} : vector<8x8xbf16>, vector<8x32xbf16>, vector<8x32xf32> -> vector<8x32xf32>
    %60 = vector.extract_strided_slice %1 {offsets = [0, 96], sizes = [8, 32], strides = [1, 1]} : vector<8x128xbf16> to vector<8x32xbf16>
    %61 = vector.extract_strided_slice %3 {offsets = [0, 96], sizes = [8, 32], strides = [1, 1]} : vector<8x128xbf16> to vector<8x32xbf16>
    %62 = vector.extract_strided_slice %5 {offsets = [0, 96], sizes = [8, 32], strides = [1, 1]} : vector<8x128xbf16> to vector<8x32xbf16>
    %cst_22 = arith.constant dense<0.000000e+00> : vector<8x8xf32>
    %63 = tpu.matmul %60, %61, %cst_22 {dimension_numbers = #tpu.dot_dimension_numbers<[1], [1], [0], [0], [0, 0, 1, 0], [], []>} : vector<8x32xbf16>, vector<8x32xbf16>, vector<8x8xf32> -> vector<8x8xf32>
    %cst_23 = arith.constant 0.176776692 : f32
    %64 = vector.broadcast %cst_23 : f32 to vector<8x8xf32>
    %65 = arith.mulf %63, %64 : vector<8x8xf32>
    %cst_24 = arith.constant dense<0xFF800000> : vector<8xf32>
    %66 = vector.multi_reduction <maximumf>, %65, %cst_24 [1] : vector<8x8xf32> to vector<8xf32>
    %67 = vector.shape_cast %66 : vector<8xf32> to vector<8x1xf32>
    %68 = vector.broadcast %67 : vector<8x1xf32> to vector<8x8xf32>
    %69 = arith.subf %65, %68 : vector<8x8xf32>
    %70 = math.exp %69 : vector<8x8xf32>
    %cst_25 = arith.constant dense<0.000000e+00> : vector<8xf32>
    %71 = vector.multi_reduction <add>, %70, %cst_25 [1] : vector<8x8xf32> to vector<8xf32>
    %72 = vector.shape_cast %71 : vector<8xf32> to vector<8x1xf32>
    %73 = tpu.reciprocal %72 {approx = true} : vector<8x1xf32> -> vector<8x1xf32>
    %74 = vector.broadcast %73 : vector<8x1xf32> to vector<8x8xf32>
    %75 = arith.mulf %70, %74 : vector<8x8xf32>
    %76 = arith.truncf %75 : vector<8x8xf32> to vector<8x8xbf16>
    %cst_26 = arith.constant dense<0.000000e+00> : vector<8x32xf32>
    %77 = tpu.matmul %76, %62, %cst_26 {dimension_numbers = #tpu.dot_dimension_numbers<[1], [0], [0], [1], [0, 0, 1, 1], [], []>} : vector<8x8xbf16>, vector<8x32xbf16>, vector<8x32xf32> -> vector<8x32xf32>
    %78 = tpu.concatenate %23, %41, %59, %77 in 1 : vector<8x32xf32>, vector<8x32xf32>, vector<8x32xf32>, vector<8x32xf32> -> vector<8x128xf32>
    %79 = arith.truncf %78 : vector<8x128xf32> to vector<8x128xbf16>
    %c0_27 = arith.constant 0 : index
    %c0_28 = arith.constant 0 : index
    %c0_29 = arith.constant 0 : index
    %80 = vector.load %arg5[%c0_27, %c0_28, %c0_29] : memref<1x8x128xbf16, #tpu.memory_space<vmem>>, vector<1x8x128xbf16>
    %81 = vector.shape_cast %80 : vector<1x8x128xbf16> to vector<8x128xbf16>
    %82 = vector.shape_cast %79 : vector<8x128xbf16> to vector<1x8x128xbf16>
    tpu.vector_store %arg5[%c0_27, %c0_28, %c0_29], %82 {strides = array<i32>} : memref<1x8x128xbf16, #tpu.memory_space<vmem>>, vector<1x8x128xbf16>,
    return
  }
  func.func @transform_0(%arg0: i32, %arg1: i32) -> (i32, i32, i32) {
    %c0_i32 = arith.constant 0 : i32
    %c0_i32_0 = arith.constant 0 : i32
    return %arg0, %arg1, %c0_i32 : i32, i32, i32
  }
  func.func @transform_1(%arg0: i32, %arg1: i32) -> (i32, i32, i32) {
    %c0_i32 = arith.constant 0 : i32
    %c0_i32_0 = arith.constant 0 : i32
    %c0_i32_1 = arith.constant 0 : i32
    return %arg0, %c0_i32, %c0_i32_0 : i32, i32, i32
  }
  func.func @transform_2(%arg0: i32, %arg1: i32) -> (i32, i32, i32) {
    %c0_i32 = arith.constant 0 : i32
    %c1_i32 = arith.constant 1 : i32
    %c0_i32_0 = arith.constant 0 : i32
    return %arg0, %c0_i32, %c1_i32 : i32, i32, i32
  }
  func.func @transform_3(%arg0: i32, %arg1: i32) -> (i32, i32, i32) {
    %c0_i32 = arith.constant 0 : i32
    %c0_i32_0 = arith.constant 0 : i32
    return %arg0, %arg1, %c0_i32 : i32, i32, i32
  }
}

module attributes {stable_mosaic.version = 11 : i64} {
  func.func @_ffn_kernel(%arg0: i32, %arg1: i32, %arg2: memref<16x128xf32, #tpu.memory_space<vmem>>, %arg3: memref<1x128xf32, #tpu.memory_space<vmem>>, %arg4: memref<1x128xf32, #tpu.memory_space<vmem>>, %arg5: memref<128x512xbf16, #tpu.memory_space<vmem>>, %arg6: memref<1x512xf32, #tpu.memory_space<vmem>>, %arg7: memref<512x128xbf16, #tpu.memory_space<vmem>>, %arg8: memref<1x128xf32, #tpu.memory_space<vmem>>, %arg9: memref<16x128xf32, #tpu.memory_space<vmem>>, %arg10: memref<16x128xbf16, #tpu.memory_space<vmem>>, %arg11: memref<16x128xf32, #tpu.memory_space<vmem>>) attributes {dimension_semantics = [#tpu.dimension_semantics<parallel>, #tpu.dimension_semantics<arbitrary>], iteration_bounds = array<i64: 1, 1>, scalar_prefetch = 0 : i64, scratch_operands = 2 : i64, tpu.core_type = #tpu.core_type<tc>, window_params = [{transform_indices = @transform_0, window_bounds = array<i64: 16, 128>}, {pipeline_mode = #tpu.pipeline_mode<synchronous>, transform_indices = @transform_1, window_bounds = array<i64: 1, 128>}, {pipeline_mode = #tpu.pipeline_mode<synchronous>, transform_indices = @transform_2, window_bounds = array<i64: 1, 128>}, {transform_indices = @transform_3, window_bounds = array<i64: 128, 512>}, {transform_indices = @transform_4, window_bounds = array<i64: 1, 512>}, {transform_indices = @transform_5, window_bounds = array<i64: 512, 128>}, {pipeline_mode = #tpu.pipeline_mode<synchronous>, transform_indices = @transform_6, window_bounds = array<i64: 1, 128>}, {transform_indices = @transform_7, window_bounds = array<i64: 16, 128>}]} {
    %c0_i32 = arith.constant 0 : i32
    %0 = arith.cmpi eq, %arg1, %c0_i32 : i32
    %1 = arith.extui %0 : i1 to i32
    %c0_i32_0 = arith.constant 0 : i32
    %2 = arith.cmpi ne, %1, %c0_i32_0 : i32
    scf.if %2 {
      %c0_16 = arith.constant 0 : index
      %c0_17 = arith.constant 0 : index
      %20 = vector.load %arg2[%c0_16, %c0_17] : memref<16x128xf32, #tpu.memory_space<vmem>>, vector<16x128xf32>
      %cst_18 = arith.constant dense<0.000000e+00> : vector<16xf32>
      %21 = vector.multi_reduction <add>, %20, %cst_18 [1] : vector<16x128xf32> to vector<16xf32>
      %22 = vector.shape_cast %21 : vector<16xf32> to vector<16x1xf32>
      %cst_19 = arith.constant 1.280000e+02 : f32
      %23 = vector.broadcast %cst_19 : f32 to vector<16x1xf32>
      %24 = arith.divf %22, %23 : vector<16x1xf32>
      %25 = vector.broadcast %24 : vector<16x1xf32> to vector<16x128xf32>
      %26 = arith.subf %20, %25 : vector<16x128xf32>
      %27 = arith.mulf %26, %26 : vector<16x128xf32>
      %cst_20 = arith.constant dense<0.000000e+00> : vector<16xf32>
      %28 = vector.multi_reduction <add>, %27, %cst_20 [1] : vector<16x128xf32> to vector<16xf32>
      %29 = vector.shape_cast %28 : vector<16xf32> to vector<16x1xf32>
      %cst_21 = arith.constant 1.280000e+02 : f32
      %30 = vector.broadcast %cst_21 : f32 to vector<16x1xf32>
      %31 = arith.divf %29, %30 : vector<16x1xf32>
      %32 = vector.broadcast %24 : vector<16x1xf32> to vector<16x128xf32>
      %33 = arith.subf %20, %32 : vector<16x128xf32>
      %cst_22 = arith.constant 9.99999997E-7 : f32
      %34 = vector.broadcast %cst_22 : f32 to vector<16x1xf32>
      %35 = arith.addf %31, %34 : vector<16x1xf32>
      %36 = math.rsqrt %35 : vector<16x1xf32>
      %37 = vector.broadcast %36 : vector<16x1xf32> to vector<16x128xf32>
      %38 = arith.mulf %33, %37 : vector<16x128xf32>
      %c0_23 = arith.constant 0 : index
      %c0_24 = arith.constant 0 : index
      %39 = vector.load %arg3[%c0_23, %c0_24] : memref<1x128xf32, #tpu.memory_space<vmem>>, vector<1x128xf32>
      %40 = vector.broadcast %39 : vector<1x128xf32> to vector<16x128xf32>
      %41 = arith.mulf %38, %40 : vector<16x128xf32>
      %c0_25 = arith.constant 0 : index
      %c0_26 = arith.constant 0 : index
      %42 = vector.load %arg4[%c0_25, %c0_26] : memref<1x128xf32, #tpu.memory_space<vmem>>, vector<1x128xf32>
      %43 = vector.broadcast %42 : vector<1x128xf32> to vector<16x128xf32>
      %44 = arith.addf %41, %43 : vector<16x128xf32>
      %45 = arith.truncf %44 : vector<16x128xf32> to vector<16x128xbf16>
      %c0_27 = arith.constant 0 : index
      %c0_28 = arith.constant 0 : index
      %46 = vector.load %arg10[%c0_27, %c0_28] : memref<16x128xbf16, #tpu.memory_space<vmem>>, vector<16x128xbf16>
      tpu.vector_store %arg10[%c0_27, %c0_28], %45 {strides = array<i32>} : memref<16x128xbf16, #tpu.memory_space<vmem>>, vector<16x128xbf16>,
      %cst_29 = arith.constant 0.000000e+00 : f32
      %47 = vector.broadcast %cst_29 : f32 to vector<16x128xf32>
      %c0_30 = arith.constant 0 : index
      %c0_31 = arith.constant 0 : index
      %48 = vector.load %arg11[%c0_30, %c0_31] : memref<16x128xf32, #tpu.memory_space<vmem>>, vector<16x128xf32>
      tpu.vector_store %arg11[%c0_30, %c0_31], %47 {strides = array<i32>} : memref<16x128xf32, #tpu.memory_space<vmem>>, vector<16x128xf32>,
    } else {
    }
    %c0 = arith.constant 0 : index
    %c0_1 = arith.constant 0 : index
    %3 = vector.load %arg10[%c0, %c0_1] : memref<16x128xbf16, #tpu.memory_space<vmem>>, vector<16x128xbf16>
    %c0_2 = arith.constant 0 : index
    %c0_3 = arith.constant 0 : index
    %4 = vector.load %arg5[%c0_2, %c0_3] : memref<128x512xbf16, #tpu.memory_space<vmem>>, vector<128x512xbf16>
    %cst = arith.constant dense<0.000000e+00> : vector<16x512xf32>
    %5 = tpu.matmul %3, %4, %cst {dimension_numbers = #tpu.dot_dimension_numbers<[1], [0], [0], [1], [0, 0, 1, 1], [], []>} : vector<16x128xbf16>, vector<128x512xbf16>, vector<16x512xf32> -> vector<16x512xf32>
    %c0_4 = arith.constant 0 : index
    %c0_5 = arith.constant 0 : index
    %6 = vector.load %arg6[%c0_4, %c0_5] : memref<1x512xf32, #tpu.memory_space<vmem>>, vector<1x512xf32>
    %7 = vector.broadcast %6 : vector<1x512xf32> to vector<16x512xf32>
    %8 = arith.addf %5, %7 : vector<16x512xf32>
    %cst_6 = arith.constant 0.000000e+00 : f32
    %9 = vector.broadcast %cst_6 : f32 to vector<16x512xf32>
    %10 = arith.maximumf %8, %9 : vector<16x512xf32>
    %11 = arith.truncf %10 : vector<16x512xf32> to vector<16x512xbf16>
    %c0_7 = arith.constant 0 : index
    %c0_8 = arith.constant 0 : index
    %12 = vector.load %arg11[%c0_7, %c0_8] : memref<16x128xf32, #tpu.memory_space<vmem>>, vector<16x128xf32>
    %c0_9 = arith.constant 0 : index
    %c0_10 = arith.constant 0 : index
    %13 = vector.load %arg7[%c0_9, %c0_10] : memref<512x128xbf16, #tpu.memory_space<vmem>>, vector<512x128xbf16>
    %cst_11 = arith.constant dense<0.000000e+00> : vector<16x128xf32>
    %14 = tpu.matmul %11, %13, %cst_11 {dimension_numbers = #tpu.dot_dimension_numbers<[1], [0], [0], [1], [0, 0, 1, 1], [], []>} : vector<16x512xbf16>, vector<512x128xbf16>, vector<16x128xf32> -> vector<16x128xf32>
    %15 = arith.addf %12, %14 : vector<16x128xf32>
    %c0_12 = arith.constant 0 : index
    %c0_13 = arith.constant 0 : index
    %16 = vector.load %arg11[%c0_12, %c0_13] : memref<16x128xf32, #tpu.memory_space<vmem>>, vector<16x128xf32>
    tpu.vector_store %arg11[%c0_12, %c0_13], %15 {strides = array<i32>} : memref<16x128xf32, #tpu.memory_space<vmem>>, vector<16x128xf32>,
    %c0_i32_14 = arith.constant 0 : i32
    %17 = arith.cmpi eq, %arg1, %c0_i32_14 : i32
    %18 = arith.extui %17 : i1 to i32
    %c0_i32_15 = arith.constant 0 : i32
    %19 = arith.cmpi ne, %18, %c0_i32_15 : i32
    scf.if %19 {
      %c0_16 = arith.constant 0 : index
      %c0_17 = arith.constant 0 : index
      %20 = vector.load %arg2[%c0_16, %c0_17] : memref<16x128xf32, #tpu.memory_space<vmem>>, vector<16x128xf32>
      %c0_18 = arith.constant 0 : index
      %c0_19 = arith.constant 0 : index
      %21 = vector.load %arg11[%c0_18, %c0_19] : memref<16x128xf32, #tpu.memory_space<vmem>>, vector<16x128xf32>
      %22 = arith.addf %20, %21 : vector<16x128xf32>
      %c0_20 = arith.constant 0 : index
      %c0_21 = arith.constant 0 : index
      %23 = vector.load %arg8[%c0_20, %c0_21] : memref<1x128xf32, #tpu.memory_space<vmem>>, vector<1x128xf32>
      %24 = vector.broadcast %23 : vector<1x128xf32> to vector<16x128xf32>
      %25 = arith.addf %22, %24 : vector<16x128xf32>
      %c0_22 = arith.constant 0 : index
      %c0_23 = arith.constant 0 : index
      %26 = vector.load %arg9[%c0_22, %c0_23] : memref<16x128xf32, #tpu.memory_space<vmem>>, vector<16x128xf32>
      tpu.vector_store %arg9[%c0_22, %c0_23], %25 {strides = array<i32>} : memref<16x128xf32, #tpu.memory_space<vmem>>, vector<16x128xf32>,
    } else {
    }
    return
  }
  func.func @transform_0(%arg0: i32, %arg1: i32) -> (i32, i32) {
    %c0_i32 = arith.constant 0 : i32
    %c0_i32_0 = arith.constant 0 : i32
    return %arg0, %c0_i32 : i32, i32
  }
  func.func @transform_1(%arg0: i32, %arg1: i32) -> (i32, i32) {
    %c0_i32 = arith.constant 0 : i32
    %c0_i32_0 = arith.constant 0 : i32
    %c0_i32_1 = arith.constant 0 : i32
    return %c0_i32, %c0_i32_0 : i32, i32
  }
  func.func @transform_2(%arg0: i32, %arg1: i32) -> (i32, i32) {
    %c0_i32 = arith.constant 0 : i32
    %c0_i32_0 = arith.constant 0 : i32
    %c0_i32_1 = arith.constant 0 : i32
    return %c0_i32, %c0_i32_0 : i32, i32
  }
  func.func @transform_3(%arg0: i32, %arg1: i32) -> (i32, i32) {
    %c0_i32 = arith.constant 0 : i32
    %c0_i32_0 = arith.constant 0 : i32
    return %c0_i32, %arg1 : i32, i32
  }
  func.func @transform_4(%arg0: i32, %arg1: i32) -> (i32, i32) {
    %c0_i32 = arith.constant 0 : i32
    %c0_i32_0 = arith.constant 0 : i32
    return %c0_i32, %arg1 : i32, i32
  }
  func.func @transform_5(%arg0: i32, %arg1: i32) -> (i32, i32) {
    %c0_i32 = arith.constant 0 : i32
    %c0_i32_0 = arith.constant 0 : i32
    return %arg1, %c0_i32 : i32, i32
  }
  func.func @transform_6(%arg0: i32, %arg1: i32) -> (i32, i32) {
    %c0_i32 = arith.constant 0 : i32
    %c0_i32_0 = arith.constant 0 : i32
    %c0_i32_1 = arith.constant 0 : i32
    return %c0_i32, %c0_i32_0 : i32, i32
  }
  func.func @transform_7(%arg0: i32, %arg1: i32) -> (i32, i32) {
    %c0_i32 = arith.constant 0 : i32
    %c0_i32_0 = arith.constant 0 : i32
    return %arg0, %c0_i32 : i32, i32
  }
}

module attributes {stable_mosaic.version = 11 : i64} {
  func.func @_layernorm_kernel(%arg0: i32, %arg1: memref<16x128xf32, #tpu.memory_space<vmem>>, %arg2: memref<1x128xf32, #tpu.memory_space<vmem>>, %arg3: memref<1x128xf32, #tpu.memory_space<vmem>>, %arg4: memref<16x128xf32, #tpu.memory_space<vmem>>) attributes {dimension_semantics = [#tpu.dimension_semantics<parallel>], iteration_bounds = array<i64: 1>, scalar_prefetch = 0 : i64, scratch_operands = 0 : i64, tpu.core_type = #tpu.core_type<tc>, window_params = [{transform_indices = @transform_0, window_bounds = array<i64: 16, 128>}, {pipeline_mode = #tpu.pipeline_mode<synchronous>, transform_indices = @transform_1, window_bounds = array<i64: 1, 128>}, {pipeline_mode = #tpu.pipeline_mode<synchronous>, transform_indices = @transform_2, window_bounds = array<i64: 1, 128>}, {transform_indices = @transform_3, window_bounds = array<i64: 16, 128>}]} {
    %c0 = arith.constant 0 : index
    %c0_0 = arith.constant 0 : index
    %0 = vector.load %arg1[%c0, %c0_0] : memref<16x128xf32, #tpu.memory_space<vmem>>, vector<16x128xf32>
    %cst = arith.constant dense<0.000000e+00> : vector<16xf32>
    %1 = vector.multi_reduction <add>, %0, %cst [1] : vector<16x128xf32> to vector<16xf32>
    %2 = vector.shape_cast %1 : vector<16xf32> to vector<16x1xf32>
    %cst_1 = arith.constant 1.280000e+02 : f32
    %3 = vector.broadcast %cst_1 : f32 to vector<16x1xf32>
    %4 = arith.divf %2, %3 : vector<16x1xf32>
    %5 = vector.broadcast %4 : vector<16x1xf32> to vector<16x128xf32>
    %6 = arith.subf %0, %5 : vector<16x128xf32>
    %7 = arith.mulf %6, %6 : vector<16x128xf32>
    %cst_2 = arith.constant dense<0.000000e+00> : vector<16xf32>
    %8 = vector.multi_reduction <add>, %7, %cst_2 [1] : vector<16x128xf32> to vector<16xf32>
    %9 = vector.shape_cast %8 : vector<16xf32> to vector<16x1xf32>
    %cst_3 = arith.constant 1.280000e+02 : f32
    %10 = vector.broadcast %cst_3 : f32 to vector<16x1xf32>
    %11 = arith.divf %9, %10 : vector<16x1xf32>
    %12 = vector.broadcast %4 : vector<16x1xf32> to vector<16x128xf32>
    %13 = arith.subf %0, %12 : vector<16x128xf32>
    %cst_4 = arith.constant 9.99999997E-7 : f32
    %14 = vector.broadcast %cst_4 : f32 to vector<16x1xf32>
    %15 = arith.addf %11, %14 : vector<16x1xf32>
    %16 = math.rsqrt %15 : vector<16x1xf32>
    %17 = vector.broadcast %16 : vector<16x1xf32> to vector<16x128xf32>
    %18 = arith.mulf %13, %17 : vector<16x128xf32>
    %c0_5 = arith.constant 0 : index
    %c0_6 = arith.constant 0 : index
    %19 = vector.load %arg2[%c0_5, %c0_6] : memref<1x128xf32, #tpu.memory_space<vmem>>, vector<1x128xf32>
    %20 = vector.broadcast %19 : vector<1x128xf32> to vector<16x128xf32>
    %21 = arith.mulf %18, %20 : vector<16x128xf32>
    %c0_7 = arith.constant 0 : index
    %c0_8 = arith.constant 0 : index
    %22 = vector.load %arg3[%c0_7, %c0_8] : memref<1x128xf32, #tpu.memory_space<vmem>>, vector<1x128xf32>
    %23 = vector.broadcast %22 : vector<1x128xf32> to vector<16x128xf32>
    %24 = arith.addf %21, %23 : vector<16x128xf32>
    %c0_9 = arith.constant 0 : index
    %c0_10 = arith.constant 0 : index
    %25 = vector.load %arg4[%c0_9, %c0_10] : memref<16x128xf32, #tpu.memory_space<vmem>>, vector<16x128xf32>
    tpu.vector_store %arg4[%c0_9, %c0_10], %24 {strides = array<i32>} : memref<16x128xf32, #tpu.memory_space<vmem>>, vector<16x128xf32>,
    return
  }
  func.func @transform_0(%arg0: i32) -> (i32, i32) {
    %c0_i32 = arith.constant 0 : i32
    %c0_i32_0 = arith.constant 0 : i32
    return %arg0, %c0_i32 : i32, i32
  }
  func.func @transform_1(%arg0: i32) -> (i32, i32) {
    %c0_i32 = arith.constant 0 : i32
    %c0_i32_0 = arith.constant 0 : i32
    %c0_i32_1 = arith.constant 0 : i32
    return %c0_i32, %c0_i32_0 : i32, i32
  }
  func.func @transform_2(%arg0: i32) -> (i32, i32) {
    %c0_i32 = arith.constant 0 : i32
    %c0_i32_0 = arith.constant 0 : i32
    %c0_i32_1 = arith.constant 0 : i32
    return %c0_i32, %c0_i32_0 : i32, i32
  }
  func.func @transform_3(%arg0: i32) -> (i32, i32) {
    %c0_i32 = arith.constant 0 : i32
    %c0_i32_0 = arith.constant 0 : i32
    return %arg0, %c0_i32 : i32, i32
  }
}

</mosaic_0001>

<llo_original>
// kernel: decoder_forward.19
$region0: #{decoder_forward.19}
  #allocation0 [shape = 'u32[]', space=smem, size = 0x4, offset = 0x4, fixed_abs, tag = 'smem constant byte address 0x4 - core index']
  #allocation1 [shape = 'u32[144,128]{1,0:T(1,128)}', space=vmem, size = 0x12000, scoped, tag = 'internal scratch']
  %s0 = inlined_call_operand.vmem [shape: bf16[16,128], index: 0, kind: input, shape index: {}]
  %s1 = inlined_call_operand.vmem [shape: bf16[128,128], index: 1, kind: input, shape index: {}]
  %s2 = inlined_call_operand.vmem [shape: f32[1,128], index: 2, kind: input, shape index: {}]
  %s3 = inlined_call_operand.vmem [shape: f32[16,128], index: 3, kind: input, shape index: {}]
  %s4 = inlined_call_operand.vmem [shape: f32[16,128], index: 4, kind: output, shape index: {}]
  %s5 = sld [smem:[#allocation0]]
  $region26: #{decoder_forward.19} parent=0
    _
  %s7 = ssub.s32 1, %s5
  %s8 = scalar_select 0, %s7, %s5
  // Predicated region
  $region2: #{decoder_forward.19} parent=0 // pred_check
    _
  $region3: #{decoder_forward.19} parent=0 // pred_check_branch
    %10 = sbr.rel (0) target = $region5
  $region4: #{decoder_forward.19} parent=0 // pred_region
    _
  $region5: #{decoder_forward.19} parent=0 // pred_fallthru
    _
  // Predicated region
  $region6: #{decoder_forward.19} parent=0 // pred_check
    _
  $region7: #{decoder_forward.19} parent=0 // pred_check_branch
    %12 = sbr.rel (0) target = $region9
  $region8: #{decoder_forward.19} parent=0 // pred_region
    _
  $region9: #{decoder_forward.19} parent=0 // pred_fallthru
    _
  // Predicated region
  $region10: #{decoder_forward.19} parent=0 // pred_check
    _
  $region11: #{decoder_forward.19} parent=0 // pred_check_branch
    %14 = sbr.rel (0) target = $region13
  $region12: #{decoder_forward.19} parent=0 // pred_region
    _
  $region13: #{decoder_forward.19} parent=0 // pred_fallthru
    _
  // Predicated region
  $region14: #{decoder_forward.19} parent=0 // pred_check
    _
  $region15: #{decoder_forward.19} parent=0 // pred_check_branch
    %16 = sbr.rel (0) target = $region17
  $region16: #{decoder_forward.19} parent=0 // pred_region
    _
  $region17: #{decoder_forward.19} parent=0 // pred_fallthru
    _
  %v18 = vld [vmem:[%s0] sm:$0xf]
  %v19 = vld [vmem:[%s0 + $0x4] sm:$0xf]
  %v20 = vld [vmem:[%s1] sm:$0xf]
  %v21 = vld [vmem:[%s1 + $0x4] sm:$0xf]
  %v22 = vld [vmem:[%s1 + $0x8] sm:$0xf]
  %v23 = vld [vmem:[%s1 + $0xc] sm:$0xf]
  %v24 = vld [vmem:[%s1 + $0x10] sm:$0xf]
  %v25 = vld [vmem:[%s1 + $0x14] sm:$0xf]
  %v26 = vld [vmem:[%s1 + $0x18] sm:$0xf]
  %v27 = vld [vmem:[%s1 + $0x1c] sm:$0xf]
  %v28 = vld [vmem:[%s1 + $0x20] sm:$0xf]
  %v29 = vld [vmem:[%s1 + $0x24] sm:$0xf]
  %v30 = vld [vmem:[%s1 + $0x28] sm:$0xf]
  %v31 = vld [vmem:[%s1 + $0x2c] sm:$0xf]
  %v32 = vld [vmem:[%s1 + $0x30] sm:$0xf]
  %v33 = vld [vmem:[%s1 + $0x34] sm:$0xf]
  %v34 = vld [vmem:[%s1 + $0x38] sm:$0xf]
  %v35 = vld [vmem:[%s1 + $0x3c] sm:$0xf]
  %v38 = vunpack.c.l.b16 %v18
  %v39 = vunpack.c.l.b16 %v19
  %v40 = vpack.c.b16 %v39, %v38
  %v58 = vunpack.c.l.b16 %v20
  %v59 = vunpack.c.l.b16 %v21
  %v60 = vunpack.c.l.b16 %v22
  %v61 = vunpack.c.l.b16 %v23
  %v62 = vunpack.c.l.b16 %v24
  %v63 = vunpack.c.l.b16 %v25
  %v64 = vunpack.c.l.b16 %v26
  %v65 = vunpack.c.l.b16 %v27
  %v66 = vunpack.c.l.b16 %v28
  %v67 = vunpack.c.l.b16 %v29
  %v68 = vunpack.c.l.b16 %v30
  %v69 = vunpack.c.l.b16 %v31
  %v70 = vunpack.c.l.b16 %v32
  %v71 = vunpack.c.l.b16 %v33
  %v72 = vunpack.c.l.b16 %v34
  %v73 = vunpack.c.l.b16 %v35
  %v74 = vpack.c.b16 %v59, %v58
  %v75 = vpack.c.b16 %v61, %v60
  %v76 = vpack.c.b16 %v63, %v62
  %v77 = vpack.c.b16 %v65, %v64
  %v78 = vpack.c.b16 %v67, %v66
  %v79 = vpack.c.b16 %v69, %v68
  %v80 = vpack.c.b16 %v71, %v70
  %v81 = vpack.c.b16 %v73, %v72
  %90 = vmatprep.subr.bf16.mxu0 0
  %91 = vmatpush1.bf16.msra.mxu0 %v74
  %92 = vmatprep.subr.bf16.mxu0 0
  %93 = vmatpush1.bf16.msra.mxu0 %v75
  %94 = vmatprep.subr.bf16.mxu0 0
  %95 = vmatpush1.bf16.msra.mxu0 %v76
  %96 = vmatprep.subr.bf16.mxu0 0
  %97 = vmatpush1.bf16.msra.mxu0 %v77
  %98 = vmatprep.subr.bf16.mxu0 0
  %99 = vmatpush1.bf16.msra.mxu0 %v78
  %100 = vmatprep.subr.bf16.mxu0 0
  %101 = vmatpush1.bf16.msra.mxu0 %v79
  %102 = vmatprep.subr.bf16.mxu0 0
  %103 = vmatpush1.bf16.msra.mxu0 %v80
  %104 = vmatprep.subr.bf16.mxu0 0
  %105 = vmatpush1.bf16.msra.mxu0 %v81
  %106 = vmatprep.subr.bf16.mxu0 0
  %107 = vmatpush1.bf16.msra.mxu0 0
  %108 = vmatprep.subr.bf16.mxu0 0
  %109 = vmatpush1.bf16.msra.mxu0 0
  %110 = vmatprep.subr.bf16.mxu0 0
  %111 = vmatpush1.bf16.msra.mxu0 0
  %112 = vmatprep.subr.bf16.mxu0 0
  %113 = vmatpush1.bf16.msra.mxu0 0
  %114 = vmatprep.subr.bf16.mxu0 0
  %115 = vmatpush1.bf16.msra.mxu0 0
  %116 = vmatprep.subr.bf16.mxu0 0
  %117 = vmatpush1.bf16.msra.mxu0 0
  %118 = vmatprep.subr.bf16.mxu0 0
  %119 = vmatpush1.bf16.msra.mxu0 0
  %120 = vmatprep.subr.bf16.mxu0 0
  %121 = vmatpush1.bf16.msra.mxu0 0
  %122 = vmatprep.mubr.bf16.mxu0 0
  %123 = vmatmul.mubr.bf16.gmra.mrb[0].mxu0 %v40
  %v124 = vpop.f32.mrb[0].mxu0
  %v125 = vadd.f32 0.0, %v124
  %v126 = vpop.f32.mrb[0].mxu0
  %v127 = vpop.f32.mrb[0].mxu0
  %v128 = vadd.f32 0.0, %v127
  %v129 = vpop.f32.mrb[0].mxu0
  %130 = vdwg.mxu0
  %v131 = vld [vmem:[%s3] sm:$0xff]
  %v132 = vld [vmem:[%s3 + $0x8] sm:$0xff]
  %v133 = vadd.f32 %v131, %v125
  %v134 = vadd.f32 %v132, %v128
  %v135 = vld [vmem:[%s2] sm:$0x1]
  %v137 = vlaneseq
  %v138 = vshrl.u32 %v137, 7
  %v139 = vsub.s32 0, %v138
  %v140 = vrot.slane %v135, %v139
  %v142 = vadd.f32 %v133, %v140
  %v143 = vadd.f32 %v134, %v140
  %144 = vst [vmem:[%s4] sm:$0xff] %v142
  %145 = vst [vmem:[%s4 + $0x8] sm:$0xff] %v143
  // Predicated region
  $region18: #{decoder_forward.19} parent=0 // pred_check
    _
  $region19: #{decoder_forward.19} parent=0 // pred_check_branch
    %147 = sbr.rel (0) target = $region21
  $region20: #{decoder_forward.19} parent=0 // pred_region
    _
  $region21: #{decoder_forward.19} parent=0 // pred_fallthru
    _
  // Predicated region
  $region22: #{decoder_forward.19} parent=0 // pred_check
    _
  $region23: #{decoder_forward.19} parent=0 // pred_check_branch
    %149 = sbr.rel (0) target = $region25
  $region24: #{decoder_forward.19} parent=0 // pred_region
    _
  $region25: #{decoder_forward.19} parent=0 // pred_fallthru
    _

// kernel: decoder_forward.20
$region0: #{decoder_forward.20}
  #allocation0 [shape = 'u32[]', space=smem, size = 0x4, offset = 0x4, fixed_abs, tag = 'smem constant byte address 0x4 - core index']
  #allocation1 [shape = 'u32[144,128]{1,0:T(1,128)}', space=vmem, size = 0x12000, scoped, tag = 'internal scratch']
  #allocation2 [shape = 'bf16[16,128]{1,0:T(16,128)(2,1)}', space=vmem, size = 0x1000, scoped, tag = 'scratch operand']
  %s0 = inlined_call_operand.vmem [shape: f32[16,128], index: 0, kind: input, shape index: {}]
  %s1 = inlined_call_operand.vmem [shape: f32[1,128], index: 1, kind: input, shape index: {}]
  %s2 = inlined_call_operand.vmem [shape: f32[1,128], index: 2, kind: input, shape index: {}]
  %s3 = inlined_call_operand.vmem [shape: bf16[128,128], index: 3, kind: input, shape index: {}]
  %s4 = inlined_call_operand.vmem [shape: f32[1,128], index: 4, kind: input, shape index: {}]
  %s5 = inlined_call_operand.vmem [shape: bf16[16,128], index: 5, kind: output, shape index: {}]
  %s6 = sld [smem:[#allocation0]]
  $region34: #{decoder_forward.20} parent=0
    _
  %s8 = ssub.s32 1, %s6
  %s9 = scalar_select 0, %s8, %s6
  // Predicated region
  $region2: #{decoder_forward.20} parent=0 // pred_check
    _
  $region3: #{decoder_forward.20} parent=0 // pred_check_branch
    %11 = sbr.rel (0) target = $region5
  $region4: #{decoder_forward.20} parent=0 // pred_region
    _
  $region5: #{decoder_forward.20} parent=0 // pred_fallthru
    _
  // Predicated region
  $region6: #{decoder_forward.20} parent=0 // pred_check
    _
  $region7: #{decoder_forward.20} parent=0 // pred_check_branch
    %13 = sbr.rel (0) target = $region9
  $region8: #{decoder_forward.20} parent=0 // pred_region
    _
  $region9: #{decoder_forward.20} parent=0 // pred_fallthru
    _
  // Predicated region
  $region10: #{decoder_forward.20} parent=0 // pred_check
    _
  $region11: #{decoder_forward.20} parent=0 // pred_check_branch
    %15 = sbr.rel (0) target = $region13
  $region12: #{decoder_forward.20} parent=0 // pred_region
    _
  $region13: #{decoder_forward.20} parent=0 // pred_fallthru
    _
  // Predicated region
  $region14: #{decoder_forward.20} parent=0 // pred_check
    _
  $region15: #{decoder_forward.20} parent=0 // pred_check_branch
    %17 = sbr.rel (0) target = $region17
  $region16: #{decoder_forward.20} parent=0 // pred_region
    _
  $region17: #{decoder_forward.20} parent=0 // pred_fallthru
    _
  // Predicated region
  $region18: #{decoder_forward.20} parent=0 // pred_check
    _
  $region19: #{decoder_forward.20} parent=0 // pred_check_branch
    %19 = sbr.rel (0) target = $region21
  $region20: #{decoder_forward.20} parent=0 // pred_region
    _
  $region21: #{decoder_forward.20} parent=0 // pred_fallthru
    _
  %p21 = scmp.eq.s32.totalorder 0, 0
  // Predicated region
  $region22: #{decoder_forward.20} parent=0 // pred_check
    %p22 = pneg %p21
  $region23: #{decoder_forward.20} parent=0 // pred_check_branch
    %24 = sbr.rel (%p22) target = $region25
  $region24: #{decoder_forward.20} parent=0 // pred_region
    %v25 = vld [vmem:[%s0] sm:$0xff]
    %v26 = vld [vmem:[%s0 + $0x8] sm:$0xff]
    %27 = vadd.xlane.f32.xlu0 %v25
    %v28 = vpop.xlane.xlu0 %27
    %29 = vadd.xlane.f32.xlu0 %v26
    %v30 = vpop.xlane.xlu0 %29
    %v31 = vrcp.pop 128.0
    %v32 = vmul.f32 %v28, %v31
    %v33 = vmul.f32 %v30, %v31
    %v34 = vsub.f32 %v25, %v32
    %v35 = vsub.f32 %v26, %v33
    %v36 = vmul.f32 %v34, %v34
    %v37 = vmul.f32 %v35, %v35
    %38 = vadd.xlane.f32.xlu0 %v36
    %v39 = vpop.xlane.xlu0 %38
    %40 = vadd.xlane.f32.xlu0 %v37
    %v41 = vpop.xlane.xlu0 %40
    %v42 = vmul.f32 %v39, %v31
    %v43 = vmul.f32 %v41, %v31
    %v44 = vadd.f32 %v42, 1e-06
    %v45 = vadd.f32 %v43, 1e-06
    %v46 = vrsqrt.pop %v44
    %v47 = vrsqrt.pop %v45
    %v48 = vmul.f32 %v34, %v46
    %v49 = vmul.f32 %v35, %v47
    %v50 = vld [vmem:[%s1] sm:$0x1]
    %v52 = vlaneseq
    %v53 = vshrl.u32 %v52, 7
    %v54 = vsub.s32 0, %v53
    %v55 = vrot.slane %v50, %v54
    %v57 = vmul.f32 %v48, %v55
    %v58 = vmul.f32 %v49, %v55
    %v59 = vld [vmem:[%s2] sm:$0x1]
    %v61 = vlaneseq
    %v62 = vshrl.u32 %v61, 7
    %v63 = vsub.s32 0, %v62
    %v64 = vrot.slane %v59, %v63
    %v66 = vadd.f32 %v57, %v64
    %v67 = vadd.f32 %v58, %v64
    %v68 = vpack.c.bf16 %v67, %v66
    %69 = vst [vmem:[#allocation2] sm:$0xff] %v68
  $region25: #{decoder_forward.20} parent=0 // pred_fallthru
    _
  %v70 = vld [vmem:[#allocation2] sm:$0xff]
  %v71 = vld [vmem:[%s3] sm:$0xf]
  %v72 = vld [vmem:[%s3 + $0x4] sm:$0xf]
  %v73 = vld [vmem:[%s3 + $0x8] sm:$0xf]
  %v74 = vld [vmem:[%s3 + $0xc] sm:$0xf]
  %v75 = vld [vmem:[%s3 + $0x10] sm:$0xf]
  %v76 = vld [vmem:[%s3 + $0x14] sm:$0xf]
  %v77 = vld [vmem:[%s3 + $0x18] sm:$0xf]
  %v78 = vld [vmem:[%s3 + $0x1c] sm:$0xf]
  %v79 = vld [vmem:[%s3 + $0x20] sm:$0xf]
  %v80 = vld [vmem:[%s3 + $0x24] sm:$0xf]
  %v81 = vld [vmem:[%s3 + $0x28] sm:$0xf]
  %v82 = vld [vmem:[%s3 + $0x2c] sm:$0xf]
  %v83 = vld [vmem:[%s3 + $0x30] sm:$0xf]
  %v84 = vld [vmem:[%s3 + $0x34] sm:$0xf]
  %v85 = vld [vmem:[%s3 + $0x38] sm:$0xf]
  %v86 = vld [vmem:[%s3 + $0x3c] sm:$0xf]
  %v87 = vld [vmem:[%s4] sm:$0x1]
  %v89 = vlaneseq
  %v90 = vshrl.u32 %v89, 7
  %v91 = vsub.s32 0, %v90
  %v92 = vrot.slane %v87, %v91
  %v110 = vunpack.c.l.b16 %v71
  %v111 = vunpack.c.l.b16 %v72
  %v112 = vunpack.c.l.b16 %v73
  %v113 = vunpack.c.l.b16 %v74
  %v114 = vunpack.c.l.b16 %v75
  %v115 = vunpack.c.l.b16 %v76
  %v116 = vunpack.c.l.b16 %v77
  %v117 = vunpack.c.l.b16 %v78
  %v118 = vunpack.c.l.b16 %v79
  %v119 = vunpack.c.l.b16 %v80
  %v120 = vunpack.c.l.b16 %v81
  %v121 = vunpack.c.l.b16 %v82
  %v122 = vunpack.c.l.b16 %v83
  %v123 = vunpack.c.l.b16 %v84
  %v124 = vunpack.c.l.b16 %v85
  %v125 = vunpack.c.l.b16 %v86
  %v126 = vpack.c.b16 %v111, %v110
  %v127 = vpack.c.b16 %v113, %v112
  %v128 = vpack.c.b16 %v115, %v114
  %v129 = vpack.c.b16 %v117, %v116
  %v130 = vpack.c.b16 %v119, %v118
  %v131 = vpack.c.b16 %v121, %v120
  %v132 = vpack.c.b16 %v123, %v122
  %v133 = vpack.c.b16 %v125, %v124
  %142 = vmatprep.subr.bf16.mxu0 0
  %143 = vmatpush1.bf16.msra.mxu0 %v126
  %144 = vmatprep.subr.bf16.mxu0 0
  %145 = vmatpush1.bf16.msra.mxu0 %v127
  %146 = vmatprep.subr.bf16.mxu0 0
  %147 = vmatpush1.bf16.msra.mxu0 %v128
  %148 = vmatprep.subr.bf16.mxu0 0
  %149 = vmatpush1.bf16.msra.mxu0 %v129
  %150 = vmatprep.subr.bf16.mxu0 0
  %151 = vmatpush1.bf16.msra.mxu0 %v130
  %152 = vmatprep.subr.bf16.mxu0 0
  %153 = vmatpush1.bf16.msra.mxu0 %v131
  %154 = vmatprep.subr.bf16.mxu0 0
  %155 = vmatpush1.bf16.msra.mxu0 %v132
  %156 = vmatprep.subr.bf16.mxu0 0
  %157 = vmatpush1.bf16.msra.mxu0 %v133
  %158 = vmatprep.subr.bf16.mxu0 0
  %159 = vmatpush1.bf16.msra.mxu0 0
  %160 = vmatprep.subr.bf16.mxu0 0
  %161 = vmatpush1.bf16.msra.mxu0 0
  %162 = vmatprep.subr.bf16.mxu0 0
  %163 = vmatpush1.bf16.msra.mxu0 0
  %164 = vmatprep.subr.bf16.mxu0 0
  %165 = vmatpush1.bf16.msra.mxu0 0
  %166 = vmatprep.subr.bf16.mxu0 0
  %167 = vmatpush1.bf16.msra.mxu0 0
  %168 = vmatprep.subr.bf16.mxu0 0
  %169 = vmatpush1.bf16.msra.mxu0 0
  %170 = vmatprep.subr.bf16.mxu0 0
  %171 = vmatpush1.bf16.msra.mxu0 0
  %172 = vmatprep.subr.bf16.mxu0 0
  %173 = vmatpush1.bf16.msra.mxu0 0
  %174 = vmatprep.mubr.bf16.mxu0 0
  %175 = vmatmul.mubr.bf16.gmra.mrb[0].mxu0 %v70
  %v176 = vpop.f32.mrb[0].mxu0
  %v177 = vadd.f32 %v92, %v176
  %v178 = vpop.f32.mrb[0].mxu0
  %v179 = vpop.f32.mrb[0].mxu0
  %v180 = vadd.f32 %v92, %v179
  %v181 = vpop.f32.mrb[0].mxu0
  %182 = vdwg.mxu0
  %v183 = vpack.c.bf16 %v180, %v177
  %v185 = vunpack.c.l.b16 %v183
  %v186 = vunpack.c.h.b16 %v183
  %v187 = vpack.c.b16 %v185, %v185
  %v188 = vpack.c.b16 %v186, %v186
  %191 = vst [vmem:[%s5] sm:$0xf] %v187
  %192 = vst [vmem:[%s5 + $0x4] sm:$0xf] %v188
  // Predicated region
  $region26: #{decoder_forward.20} parent=0 // pred_check
    _
  $region27: #{decoder_forward.20} parent=0 // pred_check_branch
    %194 = sbr.rel (0) target = $region29
  $region28: #{decoder_forward.20} parent=0 // pred_region
    _
  $region29: #{decoder_forward.20} parent=0 // pred_fallthru
    _
  // Predicated region
  $region30: #{decoder_forward.20} parent=0 // pred_check
    _
  $region31: #{decoder_forward.20} parent=0 // pred_check_branch
    %196 = sbr.rel (0) target = $region33
  $region32: #{decoder_forward.20} parent=0 // pred_region
    _
  $region33: #{decoder_forward.20} parent=0 // pred_fallthru
    _

// kernel: decoder_forward.17
$region0: #{decoder_forward.17}
  #allocation0 [shape = 'u32[]', space=smem, size = 0x4, offset = 0x4, fixed_abs, tag = 'smem constant byte address 0x4 - core index']
  #allocation1 [shape = 'u32[144,128]{1,0:T(1,128)}', space=vmem, size = 0x12000, scoped, tag = 'internal scratch']
  #allocation2 [shape = 'bf16[16,128]{1,0:T(16,128)(2,1)}', space=vmem, size = 0x1000, scoped, tag = 'scratch operand']
  %s0 = inlined_call_operand.vmem [shape: f32[16,128], index: 0, kind: input, shape index: {}]
  %s1 = inlined_call_operand.vmem [shape: f32[1,128], index: 1, kind: input, shape index: {}]
  %s2 = inlined_call_operand.vmem [shape: f32[1,128], index: 2, kind: input, shape index: {}]
  %s3 = inlined_call_operand.vmem [shape: bf16[128,384], index: 3, kind: input, shape index: {}]
  %s4 = inlined_call_operand.vmem [shape: f32[1,384], index: 4, kind: input, shape index: {}]
  %s5 = inlined_call_operand.vmem [shape: bf16[16,384], index: 5, kind: output, shape index: {}]
  %s6 = sld [smem:[#allocation0]]
  $region34: #{decoder_forward.17} parent=0
    _
  %s8 = ssub.s32 1, %s6
  %s9 = scalar_select 0, %s8, %s6
  // Predicated region
  $region2: #{decoder_forward.17} parent=0 // pred_check
    _
  $region3: #{decoder_forward.17} parent=0 // pred_check_branch
    %11 = sbr.rel (0) target = $region5
  $region4: #{decoder_forward.17} parent=0 // pred_region
    _
  $region5: #{decoder_forward.17} parent=0 // pred_fallthru
    _
  // Predicated region
  $region6: #{decoder_forward.17} parent=0 // pred_check
    _
  $region7: #{decoder_forward.17} parent=0 // pred_check_branch
    %13 = sbr.rel (0) target = $region9
  $region8: #{decoder_forward.17} parent=0 // pred_region
    _
  $region9: #{decoder_forward.17} parent=0 // pred_fallthru
    _
  // Predicated region
  $region10: #{decoder_forward.17} parent=0 // pred_check
    _
  $region11: #{decoder_forward.17} parent=0 // pred_check_branch
    %15 = sbr.rel (0) target = $region13
  $region12: #{decoder_forward.17} parent=0 // pred_region
    _
  $region13: #{decoder_forward.17} parent=0 // pred_fallthru
    _
  // Predicated region
  $region14: #{decoder_forward.17} parent=0 // pred_check
    _
  $region15: #{decoder_forward.17} parent=0 // pred_check_branch
    %17 = sbr.rel (0) target = $region17
  $region16: #{decoder_forward.17} parent=0 // pred_region
    _
  $region17: #{decoder_forward.17} parent=0 // pred_fallthru
    _
  // Predicated region
  $region18: #{decoder_forward.17} parent=0 // pred_check
    _
  $region19: #{decoder_forward.17} parent=0 // pred_check_branch
    %19 = sbr.rel (0) target = $region21
  $region20: #{decoder_forward.17} parent=0 // pred_region
    _
  $region21: #{decoder_forward.17} parent=0 // pred_fallthru
    _
  %p21 = scmp.eq.s32.totalorder 0, 0
  // Predicated region
  $region22: #{decoder_forward.17} parent=0 // pred_check
    %p22 = pneg %p21
  $region23: #{decoder_forward.17} parent=0 // pred_check_branch
    %24 = sbr.rel (%p22) target = $region25
  $region24: #{decoder_forward.17} parent=0 // pred_region
    %v25 = vld [vmem:[%s0] sm:$0xff]
    %v26 = vld [vmem:[%s0 + $0x8] sm:$0xff]
    %27 = vadd.xlane.f32.xlu0 %v25
    %v28 = vpop.xlane.xlu0 %27
    %29 = vadd.xlane.f32.xlu0 %v26
    %v30 = vpop.xlane.xlu0 %29
    %v31 = vrcp.pop 128.0
    %v32 = vmul.f32 %v28, %v31
    %v33 = vmul.f32 %v30, %v31
    %v34 = vsub.f32 %v25, %v32
    %v35 = vsub.f32 %v26, %v33
    %v36 = vmul.f32 %v34, %v34
    %v37 = vmul.f32 %v35, %v35
    %38 = vadd.xlane.f32.xlu0 %v36
    %v39 = vpop.xlane.xlu0 %38
    %40 = vadd.xlane.f32.xlu0 %v37
    %v41 = vpop.xlane.xlu0 %40
    %v42 = vmul.f32 %v39, %v31
    %v43 = vmul.f32 %v41, %v31
    %v44 = vadd.f32 %v42, 1e-06
    %v45 = vadd.f32 %v43, 1e-06
    %v46 = vrsqrt.pop %v44
    %v47 = vrsqrt.pop %v45
    %v48 = vmul.f32 %v34, %v46
    %v49 = vmul.f32 %v35, %v47
    %v50 = vld [vmem:[%s1] sm:$0x1]
    %v52 = vlaneseq
    %v53 = vshrl.u32 %v52, 7
    %v54 = vsub.s32 0, %v53
    %v55 = vrot.slane %v50, %v54
    %v57 = vmul.f32 %v48, %v55
    %v58 = vmul.f32 %v49, %v55
    %v59 = vld [vmem:[%s2] sm:$0x1]
    %v61 = vlaneseq
    %v62 = vshrl.u32 %v61, 7
    %v63 = vsub.s32 0, %v62
    %v64 = vrot.slane %v59, %v63
    %v66 = vadd.f32 %v57, %v64
    %v67 = vadd.f32 %v58, %v64
    %v68 = vpack.c.bf16 %v67, %v66
    %69 = vst [vmem:[#allocation2] sm:$0xff] %v68
  $region25: #{decoder_forward.17} parent=0 // pred_fallthru
    _
  %v70 = vld [vmem:[#allocation2] sm:$0xff]
  %v71 = vld [vmem:[%s3] sm:$0xff]
  %v72 = vld [vmem:[%s3 + $0x8] sm:$0xf]
  %v73 = vld [vmem:[%s3 + $0xc] sm:$0xff]
  %v74 = vld [vmem:[%s3 + $0x14] sm:$0xf]
  %v75 = vld [vmem:[%s3 + $0x18] sm:$0xff]
  %v76 = vld [vmem:[%s3 + $0x20] sm:$0xf]
  %v77 = vld [vmem:[%s3 + $0x24] sm:$0xff]
  %v78 = vld [vmem:[%s3 + $0x2c] sm:$0xf]
  %v79 = vld [vmem:[%s3 + $0x30] sm:$0xff]
  %v80 = vld [vmem:[%s3 + $0x38] sm:$0xf]
  %v81 = vld [vmem:[%s3 + $0x3c] sm:$0xff]
  %v82 = vld [vmem:[%s3 + $0x44] sm:$0xf]
  %v83 = vld [vmem:[%s3 + $0x48] sm:$0xff]
  %v84 = vld [vmem:[%s3 + $0x50] sm:$0xf]
  %v85 = vld [vmem:[%s3 + $0x54] sm:$0xff]
  %v86 = vld [vmem:[%s3 + $0x5c] sm:$0xf]
  %v87 = vld [vmem:[%s3 + $0x60] sm:$0xff]
  %v88 = vld [vmem:[%s3 + $0x68] sm:$0xf]
  %v89 = vld [vmem:[%s3 + $0x6c] sm:$0xff]
  %v90 = vld [vmem:[%s3 + $0x74] sm:$0xf]
  %v91 = vld [vmem:[%s3 + $0x78] sm:$0xff]
  %v92 = vld [vmem:[%s3 + $0x80] sm:$0xf]
  %v93 = vld [vmem:[%s3 + $0x84] sm:$0xff]
  %v94 = vld [vmem:[%s3 + $0x8c] sm:$0xf]
  %v95 = vld [vmem:[%s3 + $0x90] sm:$0xff]
  %v96 = vld [vmem:[%s3 + $0x98] sm:$0xf]
  %v97 = vld [vmem:[%s3 + $0x9c] sm:$0xff]
  %v98 = vld [vmem:[%s3 + $0xa4] sm:$0xf]
  %v99 = vld [vmem:[%s3 + $0xa8] sm:$0xff]
  %v100 = vld [vmem:[%s3 + $0xb0] sm:$0xf]
  %v101 = vld [vmem:[%s3 + $0xb4] sm:$0xff]
  %v102 = vld [vmem:[%s3 + $0xbc] sm:$0xf]
  %v103 = vld [vmem:[%s4] sm:$0x7]
  %v105 = vlaneseq
  %v106 = vshrl.u32 %v105, 7
  %v107 = vsub.s32 0, %v106
  %v108 = vrot.slane %v103, %v107
  %v109 = vlaneseq
  %v110 = vshrl.u32 %v109, 7
  %v111 = vsub.s32 1, %v110
  %v112 = vrot.slane %v103, %v111
  %v113 = vlaneseq
  %v114 = vshrl.u32 %v113, 7
  %v115 = vsub.s32 2, %v114
  %v116 = vrot.slane %v103, %v115
  %v152 = vunpack.c.l.b16 %v71
  %v153 = vunpack.c.h.b16 %v71
  %v154 = vunpack.c.l.b16 %v72
  %v155 = vunpack.c.l.b16 %v73
  %v156 = vunpack.c.h.b16 %v73
  %v157 = vunpack.c.l.b16 %v74
  %v158 = vunpack.c.l.b16 %v75
  %v159 = vunpack.c.h.b16 %v75
  %v160 = vunpack.c.l.b16 %v76
  %v161 = vunpack.c.l.b16 %v77
  %v162 = vunpack.c.h.b16 %v77
  %v163 = vunpack.c.l.b16 %v78
  %v164 = vunpack.c.l.b16 %v79
  %v165 = vunpack.c.h.b16 %v79
  %v166 = vunpack.c.l.b16 %v80
  %v167 = vunpack.c.l.b16 %v81
  %v168 = vunpack.c.h.b16 %v81
  %v169 = vunpack.c.l.b16 %v82
  %v170 = vunpack.c.l.b16 %v83
  %v171 = vunpack.c.h.b16 %v83
  %v172 = vunpack.c.l.b16 %v84
  %v173 = vunpack.c.l.b16 %v85
  %v174 = vunpack.c.h.b16 %v85
  %v175 = vunpack.c.l.b16 %v86
  %v176 = vunpack.c.l.b16 %v87
  %v177 = vunpack.c.h.b16 %v87
  %v178 = vunpack.c.l.b16 %v88
  %v179 = vunpack.c.l.b16 %v89
  %v180 = vunpack.c.h.b16 %v89
  %v181 = vunpack.c.l.b16 %v90
  %v182 = vunpack.c.l.b16 %v91
  %v183 = vunpack.c.h.b16 %v91
  %v184 = vunpack.c.l.b16 %v92
  %v185 = vunpack.c.l.b16 %v93
  %v186 = vunpack.c.h.b16 %v93
  %v187 = vunpack.c.l.b16 %v94
  %v188 = vunpack.c.l.b16 %v95
  %v189 = vunpack.c.h.b16 %v95
  %v190 = vunpack.c.l.b16 %v96
  %v191 = vunpack.c.l.b16 %v97
  %v192 = vunpack.c.h.b16 %v97
  %v193 = vunpack.c.l.b16 %v98
  %v194 = vunpack.c.l.b16 %v99
  %v195 = vunpack.c.h.b16 %v99
  %v196 = vunpack.c.l.b16 %v100
  %v197 = vunpack.c.l.b16 %v101
  %v198 = vunpack.c.h.b16 %v101
  %v199 = vunpack.c.l.b16 %v102
  %v200 = vpack.c.b16 %v155, %v152
  %v201 = vpack.c.b16 %v156, %v153
  %v202 = vpack.c.b16 %v157, %v154
  %v203 = vpack.c.b16 %v161, %v158
  %v204 = vpack.c.b16 %v162, %v159
  %v205 = vpack.c.b16 %v163, %v160
  %v206 = vpack.c.b16 %v167, %v164
  %v207 = vpack.c.b16 %v168, %v165
  %v208 = vpack.c.b16 %v169, %v166
  %v209 = vpack.c.b16 %v173, %v170
  %v210 = vpack.c.b16 %v174, %v171
  %v211 = vpack.c.b16 %v175, %v172
  %v212 = vpack.c.b16 %v179, %v176
  %v213 = vpack.c.b16 %v180, %v177
  %v214 = vpack.c.b16 %v181, %v178
  %v215 = vpack.c.b16 %v185, %v182
  %v216 = vpack.c.b16 %v186, %v183
  %v217 = vpack.c.b16 %v187, %v184
  %v218 = vpack.c.b16 %v191, %v188
  %v219 = vpack.c.b16 %v192, %v189
  %v220 = vpack.c.b16 %v193, %v190
  %v221 = vpack.c.b16 %v197, %v194
  %v222 = vpack.c.b16 %v198, %v195
  %v223 = vpack.c.b16 %v199, %v196
  %248 = vmatprep.subr.bf16.mxu0 %v201
  %249 = vmatpush1.bf16.msra.mxu0 %v200
  %250 = vmatprep.subr.bf16.mxu0 %v204
  %251 = vmatpush1.bf16.msra.mxu0 %v203
  %252 = vmatprep.subr.bf16.mxu0 %v207
  %253 = vmatpush1.bf16.msra.mxu0 %v206
  %254 = vmatprep.subr.bf16.mxu0 %v210
  %255 = vmatpush1.bf16.msra.mxu0 %v209
  %256 = vmatprep.subr.bf16.mxu0 %v213
  %257 = vmatpush1.bf16.msra.mxu0 %v212
  %258 = vmatprep.subr.bf16.mxu0 %v216
  %259 = vmatpush1.bf16.msra.mxu0 %v215
  %260 = vmatprep.subr.bf16.mxu0 %v219
  %261 = vmatpush1.bf16.msra.mxu0 %v218
  %262 = vmatprep.subr.bf16.mxu0 %v222
  %263 = vmatpush1.bf16.msra.mxu0 %v221
  %264 = vmatprep.subr.bf16.mxu0 0
  %265 = vmatpush1.bf16.msra.mxu0 0
  %266 = vmatprep.subr.bf16.mxu0 0
  %267 = vmatpush1.bf16.msra.mxu0 0
  %268 = vmatprep.subr.bf16.mxu0 0
  %269 = vmatpush1.bf16.msra.mxu0 0
  %270 = vmatprep.subr.bf16.mxu0 0
  %271 = vmatpush1.bf16.msra.mxu0 0
  %272 = vmatprep.subr.bf16.mxu0 0
  %273 = vmatpush1.bf16.msra.mxu0 0
  %274 = vmatprep.subr.bf16.mxu0 0
  %275 = vmatpush1.bf16.msra.mxu0 0
  %276 = vmatprep.subr.bf16.mxu0 0
  %277 = vmatpush1.bf16.msra.mxu0 0
  %278 = vmatprep.subr.bf16.mxu0 0
  %279 = vmatpush1.bf16.msra.mxu0 0
  %280 = vmatprep.mubr.bf16.mxu0 0
  %281 = vmatmul.mubr.bf16.gmra.mrb[0].mxu0 %v70
  %v282 = vpop.f32.mrb[0].mxu0
  %v283 = vadd.f32 %v108, %v282
  %v284 = vpop.f32.mrb[0].mxu0
  %v285 = vadd.f32 %v112, %v284
  %v286 = vpop.f32.mrb[0].mxu0
  %v287 = vadd.f32 %v108, %v286
  %v288 = vpop.f32.mrb[0].mxu0
  %v289 = vadd.f32 %v112, %v288
  %290 = vdwg.mxu0
  %291 = vmatprep.subr.bf16.mxu0 0
  %292 = vmatpush1.bf16.msra.mxu0 %v202
  %293 = vmatprep.subr.bf16.mxu0 0
  %294 = vmatpush1.bf16.msra.mxu0 %v205
  %295 = vmatprep.subr.bf16.mxu0 0
  %296 = vmatpush1.bf16.msra.mxu0 %v208
  %297 = vmatprep.subr.bf16.mxu0 0
  %298 = vmatpush1.bf16.msra.mxu0 %v211
  %299 = vmatprep.subr.bf16.mxu0 0
  %300 = vmatpush1.bf16.msra.mxu0 %v214
  %301 = vmatprep.subr.bf16.mxu0 0
  %302 = vmatpush1.bf16.msra.mxu0 %v217
  %303 = vmatprep.subr.bf16.mxu0 0
  %304 = vmatpush1.bf16.msra.mxu0 %v220
  %305 = vmatprep.subr.bf16.mxu0 0
  %306 = vmatpush1.bf16.msra.mxu0 %v223
  %307 = vmatprep.subr.bf16.mxu0 0
  %308 = vmatpush1.bf16.msra.mxu0 0
  %309 = vmatprep.subr.bf16.mxu0 0
  %310 = vmatpush1.bf16.msra.mxu0 0
  %311 = vmatprep.subr.bf16.mxu0 0
  %312 = vmatpush1.bf16.msra.mxu0 0
  %313 = vmatprep.subr.bf16.mxu0 0
  %314 = vmatpush1.bf16.msra.mxu0 0
  %315 = vmatprep.subr.bf16.mxu0 0
  %316 = vmatpush1.bf16.msra.mxu0 0
  %317 = vmatprep.subr.bf16.mxu0 0
  %318 = vmatpush1.bf16.msra.mxu0 0
  %319 = vmatprep.subr.bf16.mxu0 0
  %320 = vmatpush1.bf16.msra.mxu0 0
  %321 = vmatprep.subr.bf16.mxu0 0
  %322 = vmatpush1.bf16.msra.mxu0 0
  %323 = vmatprep.mubr.bf16.mxu0 0
  %324 = vmatmul.mubr.bf16.gmra.mrb[0].mxu0 %v70
  %v325 = vpop.f32.mrb[0].mxu0
  %v326 = vadd.f32 %v116, %v325
  %v327 = vpop.f32.mrb[0].mxu0
  %v328 = vpop.f32.mrb[0].mxu0
  %v329 = vadd.f32 %v116, %v328
  %v330 = vpop.f32.mrb[0].mxu0
  %331 = vdwg.mxu0
  %v332 = vpack.c.bf16 %v287, %v283
  %v333 = vpack.c.bf16 %v289, %v285
  %v334 = vpack.c.bf16 %v329, %v326
  %v338 = vunpack.c.l.b16 %v332
  %v339 = vunpack.c.l.b16 %v333
  %v340 = vunpack.c.l.b16 %v334
  %v341 = vunpack.c.h.b16 %v332
  %v342 = vunpack.c.h.b16 %v333
  %v343 = vunpack.c.h.b16 %v334
  %v344 = vpack.c.b16 %v339, %v338
  %v345 = vpack.c.b16 %v340, %v340
  %v346 = vpack.c.b16 %v342, %v341
  %v347 = vpack.c.b16 %v343, %v343
  %352 = vst [vmem:[%s5] sm:$0xff] %v344
  %353 = vst [vmem:[%s5 + $0x8] sm:$0xf] %v345
  %354 = vst [vmem:[%s5 + $0xc] sm:$0xff] %v346
  %355 = vst [vmem:[%s5 + $0x14] sm:$0xf] %v347
  // Predicated region
  $region26: #{decoder_forward.17} parent=0 // pred_check
    _
  $region27: #{decoder_forward.17} parent=0 // pred_check_branch
    %357 = sbr.rel (0) target = $region29
  $region28: #{decoder_forward.17} parent=0 // pred_region
    _
  $region29: #{decoder_forward.17} parent=0 // pred_fallthru
    _
  // Predicated region
  $region30: #{decoder_forward.17} parent=0 // pred_check
    _
  $region31: #{decoder_forward.17} parent=0 // pred_check_branch
    %359 = sbr.rel (0) target = $region33
  $region32: #{decoder_forward.17} parent=0 // pred_region
    _
  $region33: #{decoder_forward.17} parent=0 // pred_fallthru
    _

// kernel: decoder_forward.18
$region0: #{decoder_forward.18}
  #allocation0 [shape = 'u32[]', space=smem, size = 0x4, offset = 0x4, fixed_abs, tag = 'smem constant byte address 0x4 - core index']
  #allocation1 [shape = 'u32[144,128]{1,0:T(1,128)}', space=vmem, size = 0x12000, scoped, tag = 'internal scratch']
  %s0 = inlined_call_operand.vmem [shape: bf16[2,8,384], index: 0, kind: input, shape index: {}, may-alias: {0,1,2}]
  %s1 = inlined_call_operand.vmem [shape: bf16[2,8,384], index: 1, kind: input, shape index: {}, may-alias: {0,1,2}]
  %s2 = inlined_call_operand.vmem [shape: bf16[2,8,384], index: 2, kind: input, shape index: {}, may-alias: {0,1,2}]
  %s3 = inlined_call_operand.vmem [shape: bf16[2,8,128], index: 3, kind: output, shape index: {}]
  %s4 = sld [smem:[#allocation0]]
  $region45: #{decoder_forward.18} parent=0
    _
  %s6 = ssub.s32 1, %s4
  %s7 = scalar_select 0, %s6, %s4
  loop: start=0, step=1, limit=4
  $region2: #{decoder_forward.18} parent=0 // loop_pre_header
    _
  $region3: #{decoder_forward.18} parent=0 // loop_header
    %s9 = sphi 0, %s13
    %p10 = scmp.ge.s32.totalorder %s9, 4
    %s16 = sphi 0, %s28
    %s17 = sphi 0, %s24
    %s18 = sphi 0, %s16
    %s19 = sphi 0, %s17
    %s20 = sphi 0, %s18
    %s21 = sphi 0, %s19
    %s33 = sphi 0, %s35
    %s36 = sphi 0, %s33
    %s37 = sphi 0, %s36
    %s53 = sphi 0, %s37
    %s59 = sphi 0, %s61
    %s62 = sphi 0, %s59
    %s63 = sphi 0, %s62
    %s79 = sphi 0, %s63
    %s85 = sphi 0, %s87
    %s88 = sphi 0, %s85
    %s89 = sphi 0, %s88
    %s105 = sphi 0, %s89
    %s113 = sphi 0, %s115
    %s116 = sphi 0, %s113
    %s117 = sphi 0, %s116
    %s133 = sphi 0, %s117
  $region4: #{decoder_forward.18} parent=0 // loop_header_branch
    %12 = sbr.rel (%p10) target = $region8
  $region5: #{decoder_forward.18} parent=0 // loop_body
    %s14 = ssub.s32 %s9, 1
    %s15 = ssub.s32 %s9, 2
    %s22 = sadd.s32 1, %s17
    %p23 = scmp.ge.s32.totalorder %s22, 1
    %s24 = scalar_select %p23, 0, %s22
    %s25 = sadd.s32 1, %s16
    %s26 = scalar_select %p23, %s25, %s16
    %p27 = scmp.ge.s32.totalorder %s26, 2
    %s28 = scalar_select %p27, 0, %s26
    %s29 = ssub.s32 %s16, %s28
    %s30 = ssub.s32 %s17, %s24
    %s31 = sor.u32 %s29, %s30
    %p32 = scmp.eq.s32.totalorder %s31, 0
    %s34 = sadd.s32 %s33, 1
    %s35 = scalar_select %p32, %s33, %s34
    %p38 = pneg %p32
    %p39 = scmp.eq.s32.totalorder %s9, 1
    %p40 = por %p38, %p39
    %p41 = scmp.ne.s32.totalorder %s33, %s36
    %p42 = scmp.eq.s32.totalorder %s9, 0
    %p43 = por %p41, %p42
    %p44 = scmp.ne.s32.totalorder %s33, %s36
    %p45 = scmp.eq.s32.totalorder %s14, 1
    %p46 = por %p44, %p45
    %p47 = scmp.ne.s32.totalorder %s36, %s37
    %p48 = scmp.eq.s32.totalorder %s14, 0
    %p49 = por %p47, %p48
    %p50 = scmp.ne.s32.totalorder %s36, %s37
    %p51 = scmp.eq.s32.totalorder %s15, 1
    %p52 = por %p50, %p51
    %p54 = scmp.ne.s32.totalorder %s37, %s53
    %p55 = scmp.eq.s32.totalorder %s15, 0
    %p56 = por %p54, %p55
    %s57 = ssub.s32 %s16, %s28
    %p58 = scmp.eq.s32.totalorder %s57, 0
    %s60 = sadd.s32 %s59, 1
    %s61 = scalar_select %p58, %s59, %s60
    %p64 = pneg %p58
    %p65 = scmp.eq.s32.totalorder %s9, 1
    %p66 = por %p64, %p65
    %p67 = scmp.ne.s32.totalorder %s59, %s62
    %p68 = scmp.eq.s32.totalorder %s9, 0
    %p69 = por %p67, %p68
    %p70 = scmp.ne.s32.totalorder %s59, %s62
    %p71 = scmp.eq.s32.totalorder %s14, 1
    %p72 = por %p70, %p71
    %p73 = scmp.ne.s32.totalorder %s62, %s63
    %p74 = scmp.eq.s32.totalorder %s14, 0
    %p75 = por %p73, %p74
    %p76 = scmp.ne.s32.totalorder %s62, %s63
    %p77 = scmp.eq.s32.totalorder %s15, 1
    %p78 = por %p76, %p77
    %p80 = scmp.ne.s32.totalorder %s63, %s79
    %p81 = scmp.eq.s32.totalorder %s15, 0
    %p82 = por %p80, %p81
    %s83 = ssub.s32 %s16, %s28
    %p84 = scmp.eq.s32.totalorder %s83, 0
    %s86 = sadd.s32 %s85, 1
    %s87 = scalar_select %p84, %s85, %s86
    %p90 = pneg %p84
    %p91 = scmp.eq.s32.totalorder %s9, 1
    %p92 = por %p90, %p91
    %p93 = scmp.ne.s32.totalorder %s85, %s88
    %p94 = scmp.eq.s32.totalorder %s9, 0
    %p95 = por %p93, %p94
    %p96 = scmp.ne.s32.totalorder %s85, %s88
    %p97 = scmp.eq.s32.totalorder %s14, 1
    %p98 = por %p96, %p97
    %p99 = scmp.ne.s32.totalorder %s88, %s89
    %p100 = scmp.eq.s32.totalorder %s14, 0
    %p101 = por %p99, %p100
    %p102 = scmp.ne.s32.totalorder %s88, %s89
    %p103 = scmp.eq.s32.totalorder %s15, 1
    %p104 = por %p102, %p103
    %p106 = scmp.ne.s32.totalorder %s89, %s105
    %p107 = scmp.eq.s32.totalorder %s15, 0
    %p108 = por %p106, %p107
    %s109 = ssub.s32 %s16, %s28
    %s110 = ssub.s32 %s17, %s24
    %s111 = sor.u32 %s109, %s110
    %p112 = scmp.eq.s32.totalorder %s111, 0
    %s114 = sadd.s32 %s113, 1
    %s115 = scalar_select %p112, %s113, %s114
    %p118 = pneg %p112
    %p119 = scmp.eq.s32.totalorder %s9, 1
    %p120 = por %p118, %p119
    %p121 = scmp.ne.s32.totalorder %s113, %s116
    %p122 = scmp.eq.s32.totalorder %s9, 0
    %p123 = por %p121, %p122
    %p124 = scmp.ne.s32.totalorder %s113, %s116
    %p125 = scmp.eq.s32.totalorder %s14, 1
    %p126 = por %p124, %p125
    %p127 = scmp.ne.s32.totalorder %s116, %s117
    %p128 = scmp.eq.s32.totalorder %s14, 0
    %p129 = por %p127, %p128
    %p130 = scmp.ne.s32.totalorder %s116, %s117
    %p131 = scmp.eq.s32.totalorder %s15, 1
    %p132 = por %p130, %p131
    %p134 = scmp.ne.s32.totalorder %s117, %s133
    %p135 = scmp.eq.s32.totalorder %s15, 0
    %p136 = por %p134, %p135
    %p137 = scmp.le.s32.totalorder 1, %s9
    %p138 = scmp.lt.s32.totalorder %s9, 3
    %p139 = pnand %p137, %p138
    %p140 = pneg %p139
    // Predicated region
    $region9: #{decoder_forward.18} parent=5 // pred_check
      _
    $region10: #{decoder_forward.18} parent=5 // pred_check_branch
      %142 = sbr.rel (%p139) target = $region12
    $region11: #{decoder_forward.18} parent=5 // pred_region
      %s143 = ssub.s32 %s9, 1
    $region12: #{decoder_forward.18} parent=5 // pred_fallthru
      _
    %p144 = scmp.lt.s32.totalorder %s9, 2
    // Predicated region
    $region13: #{decoder_forward.18} parent=5 // pred_check
      %p145 = pneg %p144
    $region14: #{decoder_forward.18} parent=5 // pred_check_branch
      %147 = sbr.rel (%p145) target = $region16
    $region15: #{decoder_forward.18} parent=5 // pred_region
      // Predicated region
      $region17: #{decoder_forward.18} parent=15 // pred_check
        %p148 = pneg %p43
      $region18: #{decoder_forward.18} parent=15 // pred_check_branch
        %150 = sbr.rel (%p148) target = $region20
      $region19: #{decoder_forward.18} parent=15 // pred_region
        %p151 = scmp.lt.s32.totalorder %s16, 1
        %s152 = scalar_select %p151, %s16, 1
        %p153 = scmp.lt.s32.totalorder %s17, 0
        %s154 = scalar_select %p153, %s17, 0
        %s155 = smul.addr %s154, 3
        %s156 = smul.addr %s152, 3
        %s157 = sadd.s32 %s155, %s156
        %s158 = smul.addr %s157, 4
        %s159 = scalar_lea.vmem %s0, %s158
      $region20: #{decoder_forward.18} parent=15 // pred_fallthru
        _
      // Predicated region
      $region21: #{decoder_forward.18} parent=15 // pred_check
        %p160 = pneg %p69
      $region22: #{decoder_forward.18} parent=15 // pred_check_branch
        %162 = sbr.rel (%p160) target = $region24
      $region23: #{decoder_forward.18} parent=15 // pred_region
        %p163 = scmp.lt.s32.totalorder %s16, 1
        %s164 = scalar_select %p163, %s16, 1
        %s165 = smul.addr %s164, 3
        %s166 = sadd.s32 1, %s165
        %s167 = smul.addr %s166, 4
        %s168 = scalar_lea.vmem %s1, %s167
      $region24: #{decoder_forward.18} parent=15 // pred_fallthru
        _
      // Predicated region
      $region25: #{decoder_forward.18} parent=15 // pred_check
        %p169 = pneg %p95
      $region26: #{decoder_forward.18} parent=15 // pred_check_branch
        %171 = sbr.rel (%p169) target = $region28
      $region27: #{decoder_forward.18} parent=15 // pred_region
        %p172 = scmp.lt.s32.totalorder %s16, 1
        %s173 = scalar_select %p172, %s16, 1
        %s174 = smul.addr %s173, 3
        %s175 = sadd.s32 2, %s174
        %s176 = smul.addr %s175, 4
        %s177 = scalar_lea.vmem %s2, %s176
      $region28: #{decoder_forward.18} parent=15 // pred_fallthru
        _
    $region16: #{decoder_forward.18} parent=5 // pred_fallthru
      _
    %p178 = scmp.le.s32.totalorder 1, %s9
    %p179 = scmp.lt.s32.totalorder %s9, 3
    %p180 = pnand %p178, %p179
    %p181 = pneg %p180
    // Predicated region
    $region29: #{decoder_forward.18} parent=5 // pred_check
      _
    $region30: #{decoder_forward.18} parent=5 // pred_check_branch
      %183 = sbr.rel (%p180) target = $region32
    $region31: #{decoder_forward.18} parent=5 // pred_region
      %s184 = ssub.s32 %s9, 1
      %p185 = scmp.lt.s32.totalorder %s18, 1
      %s186 = scalar_select %p185, %s18, 1
      %p187 = scmp.lt.s32.totalorder %s19, 0
      %s188 = scalar_select %p187, %s19, 0
      %s189 = smul.addr %s188, 3
      %s190 = smul.addr %s186, 3
      %s191 = sadd.s32 %s189, %s190
      %s192 = smul.addr %s191, 4
      %s193 = scalar_lea.vmem %s0, %s192
      %p194 = pneg %p49
      %p195 = pneg %p46
      %p196 = scmp.lt.s32.totalorder %s18, 1
      %s197 = scalar_select %p196, %s18, 1
      %s198 = smul.addr %s197, 3
      %s199 = sadd.s32 1, %s198
      %s200 = smul.addr %s199, 4
      %s201 = scalar_lea.vmem %s1, %s200
      %p202 = pneg %p75
      %p203 = pneg %p72
      %p204 = scmp.lt.s32.totalorder %s18, 1
      %s205 = scalar_select %p204, %s18, 1
      %s206 = smul.addr %s205, 3
      %s207 = sadd.s32 2, %s206
      %s208 = smul.addr %s207, 4
      %s209 = scalar_lea.vmem %s2, %s208
      %p210 = pneg %p101
      %p211 = pneg %p98
      %p212 = pneg %p129
      %p213 = pneg %p126
      %p214 = scmp.lt.s32.totalorder %s18, 1
      %s215 = scalar_select %p214, %s18, 1
      %p216 = scmp.lt.s32.totalorder %s19, 0
      %s217 = scalar_select %p216, %s19, 0
      %s218 = sadd.s32 %s217, %s215
      %s219 = smul.addr %s218, 4
      %s220 = scalar_lea.vmem %s3, %s219
      %p221 = scmp.lt.s32.totalorder %s18, 1
      %s222 = scalar_select %p221, %s18, 1
      %p223 = scmp.lt.s32.totalorder %s19, 0
      %s224 = scalar_select %p223, %s19, 0
      %s225 = smul.addr %s224, 3
      %s226 = smul.addr %s222, 3
      %s227 = sadd.s32 %s225, %s226
      %s228 = smul.addr %s227, 4
      %s229 = scalar_lea.vmem %s0, %s228
      %p230 = scmp.lt.s32.totalorder %s18, 1
      %s231 = scalar_select %p230, %s18, 1
      %s232 = smul.addr %s231, 3
      %s233 = sadd.s32 1, %s232
      %s234 = smul.addr %s233, 4
      %s235 = scalar_lea.vmem %s1, %s234
      %p236 = scmp.lt.s32.totalorder %s18, 1
      %s237 = scalar_select %p236, %s18, 1
      %s238 = smul.addr %s237, 3
      %s239 = sadd.s32 2, %s238
      %s240 = smul.addr %s239, 4
      %s241 = scalar_lea.vmem %s2, %s240
      %p242 = scmp.lt.s32.totalorder %s18, 1
      %s243 = scalar_select %p242, %s18, 1
      %p244 = scmp.lt.s32.totalorder %s19, 0
      %s245 = scalar_select %p244, %s19, 0
      %s246 = sadd.s32 %s245, %s243
      %s247 = smul.addr %s246, 4
      %s248 = scalar_lea.vmem %s3, %s247
      %v250 = vld [vmem:[%s229] sm:$0xf]
      %v251 = vld [vmem:[%s235] sm:$0xf]
      %v252 = vld [vmem:[%s241] sm:$0xf]
      %s253 = smul.u32 %s19, 8
      %v254 = vlaneseq
      %v255 = vshrl.u32 %v254, 7
      %v256 = vstv %s253
      %v257 = vadd.s32 %v255, %v256
      %v258 = vlaneseq
      %v259 = vand.u32 %v258, 127
      %vm260 = vcmp.le.s32.totalorder %v259, %v257
      %vm261 = vcmask 261120
      %v263 = vsel %vm261, %v250, 0
      %v266 = vsel %vm261, %v251, 0
      %268 = vmatprep.subr.bf16.mxu0 0
      %269 = vmatpush1.bf16.xpose.msra.mxu0 %v266
      %270 = vmatprep.subr.bf16.mxu0 0
      %271 = vmatpush1.bf16.xpose.msra.mxu0 0
      %272 = vmatprep.subr.bf16.mxu0 0
      %273 = vmatpush1.bf16.xpose.msra.mxu0 0
      %274 = vmatprep.subr.bf16.mxu0 0
      %275 = vmatpush1.bf16.xpose.msra.mxu0 0
      %276 = vmatprep.subr.bf16.mxu0 0
      %277 = vmatpush1.bf16.xpose.msra.mxu0 0
      %278 = vmatprep.subr.bf16.mxu0 0
      %279 = vmatpush1.bf16.xpose.msra.mxu0 0
      %280 = vmatprep.subr.bf16.mxu0 0
      %281 = vmatpush1.bf16.xpose.msra.mxu0 0
      %282 = vmatprep.subr.bf16.mxu0 0
      %283 = vmatpush1.bf16.xpose.msra.mxu0 0
      %284 = vmatprep.subr.bf16.mxu0 0
      %285 = vmatpush1.bf16.xpose.msra.mxu0 0
      %286 = vmatprep.subr.bf16.mxu0 0
      %287 = vmatpush1.bf16.xpose.msra.mxu0 0
      %288 = vmatprep.subr.bf16.mxu0 0
      %289 = vmatpush1.bf16.xpose.msra.mxu0 0
      %290 = vmatprep.subr.bf16.mxu0 0
      %291 = vmatpush1.bf16.xpose.msra.mxu0 0
      %292 = vmatprep.subr.bf16.mxu0 0
      %293 = vmatpush1.bf16.xpose.msra.mxu0 0
      %294 = vmatprep.subr.bf16.mxu0 0
      %295 = vmatpush1.bf16.xpose.msra.mxu0 0
      %296 = vmatprep.subr.bf16.mxu0 0
      %297 = vmatpush1.bf16.xpose.msra.mxu0 0
      %298 = vmatprep.subr.bf16.mxu0 0
      %299 = vmatpush1.bf16.xpose.msra.mxu0 0
      %300 = vmatprep.mubr.bf16.mxu0 0
      %301 = vmatmul.mubr.bf16.gmra.mrb[0].mxu0 %v263
      %v302 = vpop.f32.mrb[0].mxu0
      %v303 = vadd.f32 0.0, %v302
      %v304 = vpop.f32.mrb[0].mxu0
      %v305 = vpop.f32.mrb[0].mxu0
      %v306 = vpop.f32.mrb[0].mxu0
      %307 = vdwg.mxu0
      %v308 = vmul.f32 %v303, 0.17677669
      %v309 = vsel %vm260, %v308, -1e+09
      %vm310 = vcmask 64512
      %v311 = vsel %vm310, %v309, -inf
      %312 = vmax.xlane.f32.xlu0 %v311
      %v313 = vpop.xlane.xlu0 %312
      %v314 = vsub.f32 %v309, %v313
      %v315 = vmul.f32 %v314, 1.442695
      %v316 = vpow.pop %v315
      %v317 = vsel %vm310, %v316, 0.0
      %318 = vadd.xlane.f32.xlu0 %v317
      %v319 = vpop.xlane.xlu0 %318
      %v320 = vrcp.pop %v319
      %v321 = vmul.f32 %v316, %v320
      %v322 = vpack.c.bf16 %v321, %v321
      %v324 = vsel %vm310, %v322, 0
      %vm326 = vcmask 1043456
      %v328 = vsel %vm326, %v252, 0
      %330 = vmatprep.subr.bf16.mxu0 0
      %331 = vmatpush1.bf16.msra.mxu0 %v328
      %332 = vmatprep.subr.bf16.mxu0 0
      %333 = vmatpush1.bf16.msra.mxu0 0
      %334 = vmatprep.subr.bf16.mxu0 0
      %335 = vmatpush1.bf16.msra.mxu0 0
      %336 = vmatprep.subr.bf16.mxu0 0
      %337 = vmatpush1.bf16.msra.mxu0 0
      %338 = vmatprep.subr.bf16.mxu0 0
      %339 = vmatpush1.bf16.msra.mxu0 0
      %340 = vmatprep.subr.bf16.mxu0 0
      %341 = vmatpush1.bf16.msra.mxu0 0
      %342 = vmatprep.subr.bf16.mxu0 0
      %343 = vmatpush1.bf16.msra.mxu0 0
      %344 = vmatprep.subr.bf16.mxu0 0
      %345 = vmatpush1.bf16.msra.mxu0 0
      %346 = vmatprep.subr.bf16.mxu0 0
      %347 = vmatpush1.bf16.msra.mxu0 0
      %348 = vmatprep.subr.bf16.mxu0 0
      %349 = vmatpush1.bf16.msra.mxu0 0
      %350 = vmatprep.subr.bf16.mxu0 0
      %351 = vmatpush1.bf16.msra.mxu0 0
      %352 = vmatprep.subr.bf16.mxu0 0
      %353 = vmatpush1.bf16.msra.mxu0 0
      %354 = vmatprep.subr.bf16.mxu0 0
      %355 = vmatpush1.bf16.msra.mxu0 0
      %356 = vmatprep.subr.bf16.mxu0 0
      %357 = vmatpush1.bf16.msra.mxu0 0
      %358 = vmatprep.subr.bf16.mxu0 0
      %359 = vmatpush1.bf16.msra.mxu0 0
      %360 = vmatprep.subr.bf16.mxu0 0
      %361 = vmatpush1.bf16.msra.mxu0 0
      %362 = vmatprep.mubr.bf16.mxu0 0
      %363 = vmatmul.mubr.bf16.gmra.mrb[0].mxu0 %v324
      %v364 = vpop.f32.mrb[0].mxu0
      %v365 = vadd.f32 0.0, %v364
      %v366 = vpop.f32.mrb[0].mxu0
      %v367 = vpop.f32.mrb[0].mxu0
      %v368 = vpop.f32.mrb[0].mxu0
      %369 = vdwg.mxu0
      %v371 = vunpack.c.l.b16 %v250
      %v372 = vpack.c.b16 %v371, %v371
      %373 = vrot.lane.b32.xlu0 %v372, 96
      %v374 = vpop.permute.xlu0 %373
      %v376 = vunpack.c.l.b16 %v251
      %v377 = vpack.c.b16 %v376, %v376
      %378 = vrot.lane.b32.xlu0 %v377, 96
      %v379 = vpop.permute.xlu0 %378
      %v381 = vsel %vm261, %v374, 0
      %v384 = vsel %vm261, %v379, 0
      %386 = vmatprep.subr.bf16.mxu0 0
      %387 = vmatpush1.bf16.xpose.msra.mxu0 %v384
      %388 = vmatprep.subr.bf16.mxu0 0
      %389 = vmatpush1.bf16.xpose.msra.mxu0 0
      %390 = vmatprep.subr.bf16.mxu0 0
      %391 = vmatpush1.bf16.xpose.msra.mxu0 0
      %392 = vmatprep.subr.bf16.mxu0 0
      %393 = vmatpush1.bf16.xpose.msra.mxu0 0
      %394 = vmatprep.subr.bf16.mxu0 0
      %395 = vmatpush1.bf16.xpose.msra.mxu0 0
      %396 = vmatprep.subr.bf16.mxu0 0
      %397 = vmatpush1.bf16.xpose.msra.mxu0 0
      %398 = vmatprep.subr.bf16.mxu0 0
      %399 = vmatpush1.bf16.xpose.msra.mxu0 0
      %400 = vmatprep.subr.bf16.mxu0 0
      %401 = vmatpush1.bf16.xpose.msra.mxu0 0
      %402 = vmatprep.subr.bf16.mxu0 0
      %403 = vmatpush1.bf16.xpose.msra.mxu0 0
      %404 = vmatprep.subr.bf16.mxu0 0
      %405 = vmatpush1.bf16.xpose.msra.mxu0 0
      %406 = vmatprep.subr.bf16.mxu0 0
      %407 = vmatpush1.bf16.xpose.msra.mxu0 0
      %408 = vmatprep.subr.bf16.mxu0 0
      %409 = vmatpush1.bf16.xpose.msra.mxu0 0
      %410 = vmatprep.subr.bf16.mxu0 0
      %411 = vmatpush1.bf16.xpose.msra.mxu0 0
      %412 = vmatprep.subr.bf16.mxu0 0
      %413 = vmatpush1.bf16.xpose.msra.mxu0 0
      %414 = vmatprep.subr.bf16.mxu0 0
      %415 = vmatpush1.bf16.xpose.msra.mxu0 0
      %416 = vmatprep.subr.bf16.mxu0 0
      %417 = vmatpush1.bf16.xpose.msra.mxu0 0
      %418 = vmatprep.mubr.bf16.mxu0 0
      %419 = vmatmul.mubr.bf16.gmra.mrb[0].mxu0 %v381
      %v420 = vpop.f32.mrb[0].mxu0
      %v421 = vadd.f32 0.0, %v420
      %v422 = vpop.f32.mrb[0].mxu0
      %v423 = vpop.f32.mrb[0].mxu0
      %v424 = vpop.f32.mrb[0].mxu0
      %425 = vdwg.mxu0
      %v426 = vmul.f32 %v421, 0.17677669
      %v427 = vsel %vm260, %v426, -1e+09
      %v428 = vsel %vm310, %v427, -inf
      %429 = vmax.xlane.f32.xlu0 %v428
      %v430 = vpop.xlane.xlu0 %429
      %v431 = vsub.f32 %v427, %v430
      %v432 = vmul.f32 %v431, 1.442695
      %v433 = vpow.pop %v432
      %v434 = vsel %vm310, %v433, 0.0
      %435 = vadd.xlane.f32.xlu0 %v434
      %v436 = vpop.xlane.xlu0 %435
      %v437 = vrcp.pop %v436
      %v438 = vmul.f32 %v433, %v437
      %v439 = vpack.c.bf16 %v438, %v438
      %v441 = vunpack.c.l.b16 %v252
      %v442 = vpack.c.b16 %v441, %v441
      %443 = vrot.lane.b32.xlu0 %v442, 96
      %v444 = vpop.permute.xlu0 %443
      %v446 = vsel %vm310, %v439, 0
      %v449 = vsel %vm326, %v444, 0
      %451 = vmatprep.subr.bf16.mxu0 0
      %452 = vmatpush1.bf16.msra.mxu0 %v449
      %453 = vmatprep.subr.bf16.mxu0 0
      %454 = vmatpush1.bf16.msra.mxu0 0
      %455 = vmatprep.subr.bf16.mxu0 0
      %456 = vmatpush1.bf16.msra.mxu0 0
      %457 = vmatprep.subr.bf16.mxu0 0
      %458 = vmatpush1.bf16.msra.mxu0 0
      %459 = vmatprep.subr.bf16.mxu0 0
      %460 = vmatpush1.bf16.msra.mxu0 0
      %461 = vmatprep.subr.bf16.mxu0 0
      %462 = vmatpush1.bf16.msra.mxu0 0
      %463 = vmatprep.subr.bf16.mxu0 0
      %464 = vmatpush1.bf16.msra.mxu0 0
      %465 = vmatprep.subr.bf16.mxu0 0
      %466 = vmatpush1.bf16.msra.mxu0 0
      %467 = vmatprep.subr.bf16.mxu0 0
      %468 = vmatpush1.bf16.msra.mxu0 0
      %469 = vmatprep.subr.bf16.mxu0 0
      %470 = vmatpush1.bf16.msra.mxu0 0
      %471 = vmatprep.subr.bf16.mxu0 0
      %472 = vmatpush1.bf16.msra.mxu0 0
      %473 = vmatprep.subr.bf16.mxu0 0
      %474 = vmatpush1.bf16.msra.mxu0 0
      %475 = vmatprep.subr.bf16.mxu0 0
      %476 = vmatpush1.bf16.msra.mxu0 0
      %477 = vmatprep.subr.bf16.mxu0 0
      %478 = vmatpush1.bf16.msra.mxu0 0
      %479 = vmatprep.subr.bf16.mxu0 0
      %480 = vmatpush1.bf16.msra.mxu0 0
      %481 = vmatprep.subr.bf16.mxu0 0
      %482 = vmatpush1.bf16.msra.mxu0 0
      %483 = vmatprep.mubr.bf16.mxu0 0
      %484 = vmatmul.mubr.bf16.gmra.mrb[0].mxu0 %v446
      %v485 = vpop.f32.mrb[0].mxu0
      %v486 = vadd.f32 0.0, %v485
      %v487 = vpop.f32.mrb[0].mxu0
      %v488 = vpop.f32.mrb[0].mxu0
      %v489 = vpop.f32.mrb[0].mxu0
      %490 = vdwg.mxu0
      %491 = vrot.lane.b32.xlu0 %v372, 64
      %v492 = vpop.permute.xlu0 %491
      %493 = vrot.lane.b32.xlu0 %v377, 64
      %v494 = vpop.permute.xlu0 %493
      %v496 = vsel %vm261, %v492, 0
      %v499 = vsel %vm261, %v494, 0
      %501 = vmatprep.subr.bf16.mxu0 0
      %502 = vmatpush1.bf16.xpose.msra.mxu0 %v499
      %503 = vmatprep.subr.bf16.mxu0 0
      %504 = vmatpush1.bf16.xpose.msra.mxu0 0
      %505 = vmatprep.subr.bf16.mxu0 0
      %506 = vmatpush1.bf16.xpose.msra.mxu0 0
      %507 = vmatprep.subr.bf16.mxu0 0
      %508 = vmatpush1.bf16.xpose.msra.mxu0 0
      %509 = vmatprep.subr.bf16.mxu0 0
      %510 = vmatpush1.bf16.xpose.msra.mxu0 0
      %511 = vmatprep.subr.bf16.mxu0 0
      %512 = vmatpush1.bf16.xpose.msra.mxu0 0
      %513 = vmatprep.subr.bf16.mxu0 0
      %514 = vmatpush1.bf16.xpose.msra.mxu0 0
      %515 = vmatprep.subr.bf16.mxu0 0
      %516 = vmatpush1.bf16.xpose.msra.mxu0 0
      %517 = vmatprep.subr.bf16.mxu0 0
      %518 = vmatpush1.bf16.xpose.msra.mxu0 0
      %519 = vmatprep.subr.bf16.mxu0 0
      %520 = vmatpush1.bf16.xpose.msra.mxu0 0
      %521 = vmatprep.subr.bf16.mxu0 0
      %522 = vmatpush1.bf16.xpose.msra.mxu0 0
      %523 = vmatprep.subr.bf16.mxu0 0
      %524 = vmatpush1.bf16.xpose.msra.mxu0 0
      %525 = vmatprep.subr.bf16.mxu0 0
      %526 = vmatpush1.bf16.xpose.msra.mxu0 0
      %527 = vmatprep.subr.bf16.mxu0 0
      %528 = vmatpush1.bf16.xpose.msra.mxu0 0
      %529 = vmatprep.subr.bf16.mxu0 0
      %530 = vmatpush1.bf16.xpose.msra.mxu0 0
      %531 = vmatprep.subr.bf16.mxu0 0
      %532 = vmatpush1.bf16.xpose.msra.mxu0 0
      %533 = vmatprep.mubr.bf16.mxu0 0
      %534 = vmatmul.mubr.bf16.gmra.mrb[0].mxu0 %v496
      %v535 = vpop.f32.mrb[0].mxu0
      %v536 = vadd.f32 0.0, %v535
      %v537 = vpop.f32.mrb[0].mxu0
      %v538 = vpop.f32.mrb[0].mxu0
      %v539 = vpop.f32.mrb[0].mxu0
      %540 = vdwg.mxu0
      %v541 = vmul.f32 %v536, 0.17677669
      %v542 = vsel %vm260, %v541, -1e+09
      %v543 = vsel %vm310, %v542, -inf
      %544 = vmax.xlane.f32.xlu0 %v543
      %v545 = vpop.xlane.xlu0 %544
      %v546 = vsub.f32 %v542, %v545
      %v547 = vmul.f32 %v546, 1.442695
      %v548 = vpow.pop %v547
      %v549 = vsel %vm310, %v548, 0.0
      %550 = vadd.xlane.f32.xlu0 %v549
      %v551 = vpop.xlane.xlu0 %550
      %v552 = vrcp.pop %v551
      %v553 = vmul.f32 %v548, %v552
      %v554 = vpack.c.bf16 %v553, %v553
      %555 = vrot.lane.b32.xlu0 %v442, 64
      %v556 = vpop.permute.xlu0 %555
      %v558 = vsel %vm310, %v554, 0
      %v561 = vsel %vm326, %v556, 0
      %563 = vmatprep.subr.bf16.mxu0 0
      %564 = vmatpush1.bf16.msra.mxu0 %v561
      %565 = vmatprep.subr.bf16.mxu0 0
      %566 = vmatpush1.bf16.msra.mxu0 0
      %567 = vmatprep.subr.bf16.mxu0 0
      %568 = vmatpush1.bf16.msra.mxu0 0
      %569 = vmatprep.subr.bf16.mxu0 0
      %570 = vmatpush1.bf16.msra.mxu0 0
      %571 = vmatprep.subr.bf16.mxu0 0
      %572 = vmatpush1.bf16.msra.mxu0 0
      %573 = vmatprep.subr.bf16.mxu0 0
      %574 = vmatpush1.bf16.msra.mxu0 0
      %575 = vmatprep.subr.bf16.mxu0 0
      %576 = vmatpush1.bf16.msra.mxu0 0
      %577 = vmatprep.subr.bf16.mxu0 0
      %578 = vmatpush1.bf16.msra.mxu0 0
      %579 = vmatprep.subr.bf16.mxu0 0
      %580 = vmatpush1.bf16.msra.mxu0 0
      %581 = vmatprep.subr.bf16.mxu0 0
      %582 = vmatpush1.bf16.msra.mxu0 0
      %583 = vmatprep.subr.bf16.mxu0 0
      %584 = vmatpush1.bf16.msra.mxu0 0
      %585 = vmatprep.subr.bf16.mxu0 0
      %586 = vmatpush1.bf16.msra.mxu0 0
      %587 = vmatprep.subr.bf16.mxu0 0
      %588 = vmatpush1.bf16.msra.mxu0 0
      %589 = vmatprep.subr.bf16.mxu0 0
      %590 = vmatpush1.bf16.msra.mxu0 0
      %591 = vmatprep.subr.bf16.mxu0 0
      %592 = vmatpush1.bf16.msra.mxu0 0
      %593 = vmatprep.subr.bf16.mxu0 0
      %594 = vmatpush1.bf16.msra.mxu0 0
      %595 = vmatprep.mubr.bf16.mxu0 0
      %596 = vmatmul.mubr.bf16.gmra.mrb[0].mxu0 %v558
      %v597 = vpop.f32.mrb[0].mxu0
      %v598 = vadd.f32 0.0, %v597
      %v599 = vpop.f32.mrb[0].mxu0
      %v600 = vpop.f32.mrb[0].mxu0
      %v601 = vpop.f32.mrb[0].mxu0
      %602 = vdwg.mxu0
      %603 = vrot.lane.b32.xlu0 %v372, 32
      %v604 = vpop.permute.xlu0 %603
      %605 = vrot.lane.b32.xlu0 %v377, 32
      %v606 = vpop.permute.xlu0 %605
      %v608 = vsel %vm261, %v604, 0
      %v611 = vsel %vm261, %v606, 0
      %613 = vmatprep.subr.bf16.mxu0 0
      %614 = vmatpush1.bf16.xpose.msra.mxu0 %v611
      %615 = vmatprep.subr.bf16.mxu0 0
      %616 = vmatpush1.bf16.xpose.msra.mxu0 0
      %617 = vmatprep.subr.bf16.mxu0 0
      %618 = vmatpush1.bf16.xpose.msra.mxu0 0
      %619 = vmatprep.subr.bf16.mxu0 0
      %620 = vmatpush1.bf16.xpose.msra.mxu0 0
      %621 = vmatprep.subr.bf16.mxu0 0
      %622 = vmatpush1.bf16.xpose.msra.mxu0 0
      %623 = vmatprep.subr.bf16.mxu0 0
      %624 = vmatpush1.bf16.xpose.msra.mxu0 0
      %625 = vmatprep.subr.bf16.mxu0 0
      %626 = vmatpush1.bf16.xpose.msra.mxu0 0
      %627 = vmatprep.subr.bf16.mxu0 0
      %628 = vmatpush1.bf16.xpose.msra.mxu0 0
      %629 = vmatprep.subr.bf16.mxu0 0
      %630 = vmatpush1.bf16.xpose.msra.mxu0 0
      %631 = vmatprep.subr.bf16.mxu0 0
      %632 = vmatpush1.bf16.xpose.msra.mxu0 0
      %633 = vmatprep.subr.bf16.mxu0 0
      %634 = vmatpush1.bf16.xpose.msra.mxu0 0
      %635 = vmatprep.subr.bf16.mxu0 0
      %636 = vmatpush1.bf16.xpose.msra.mxu0 0
      %637 = vmatprep.subr.bf16.mxu0 0
      %638 = vmatpush1.bf16.xpose.msra.mxu0 0
      %639 = vmatprep.subr.bf16.mxu0 0
      %640 = vmatpush1.bf16.xpose.msra.mxu0 0
      %641 = vmatprep.subr.bf16.mxu0 0
      %642 = vmatpush1.bf16.xpose.msra.mxu0 0
      %643 = vmatprep.subr.bf16.mxu0 0
      %644 = vmatpush1.bf16.xpose.msra.mxu0 0
      %645 = vmatprep.mubr.bf16.mxu0 0
      %646 = vmatmul.mubr.bf16.gmra.mrb[0].mxu0 %v608
      %v647 = vpop.f32.mrb[0].mxu0
      %v648 = vadd.f32 0.0, %v647
      %v649 = vpop.f32.mrb[0].mxu0
      %v650 = vpop.f32.mrb[0].mxu0
      %v651 = vpop.f32.mrb[0].mxu0
      %652 = vdwg.mxu0
      %v653 = vmul.f32 %v648, 0.17677669
      %v654 = vsel %vm260, %v653, -1e+09
      %v655 = vsel %vm310, %v654, -inf
      %656 = vmax.xlane.f32.xlu0 %v655
      %v657 = vpop.xlane.xlu0 %656
      %v658 = vsub.f32 %v654, %v657
      %v659 = vmul.f32 %v658, 1.442695
      %v660 = vpow.pop %v659
      %v661 = vsel %vm310, %v660, 0.0
      %662 = vadd.xlane.f32.xlu0 %v661
      %v663 = vpop.xlane.xlu0 %662
      %v664 = vrcp.pop %v663
      %v665 = vmul.f32 %v660, %v664
      %v666 = vpack.c.bf16 %v665, %v665
      %667 = vrot.lane.b32.xlu0 %v442, 32
      %v668 = vpop.permute.xlu0 %667
      %v670 = vsel %vm310, %v666, 0
      %v673 = vsel %vm326, %v668, 0
      %675 = vmatprep.subr.bf16.mxu0 0
      %676 = vmatpush1.bf16.msra.mxu0 %v673
      %677 = vmatprep.subr.bf16.mxu0 0
      %678 = vmatpush1.bf16.msra.mxu0 0
      %679 = vmatprep.subr.bf16.mxu0 0
      %680 = vmatpush1.bf16.msra.mxu0 0
      %681 = vmatprep.subr.bf16.mxu0 0
      %682 = vmatpush1.bf16.msra.mxu0 0
      %683 = vmatprep.subr.bf16.mxu0 0
      %684 = vmatpush1.bf16.msra.mxu0 0
      %685 = vmatprep.subr.bf16.mxu0 0
      %686 = vmatpush1.bf16.msra.mxu0 0
      %687 = vmatprep.subr.bf16.mxu0 0
      %688 = vmatpush1.bf16.msra.mxu0 0
      %689 = vmatprep.subr.bf16.mxu0 0
      %690 = vmatpush1.bf16.msra.mxu0 0
      %691 = vmatprep.subr.bf16.mxu0 0
      %692 = vmatpush1.bf16.msra.mxu0 0
      %693 = vmatprep.subr.bf16.mxu0 0
      %694 = vmatpush1.bf16.msra.mxu0 0
      %695 = vmatprep.subr.bf16.mxu0 0
      %696 = vmatpush1.bf16.msra.mxu0 0
      %697 = vmatprep.subr.bf16.mxu0 0
      %698 = vmatpush1.bf16.msra.mxu0 0
      %699 = vmatprep.subr.bf16.mxu0 0
      %700 = vmatpush1.bf16.msra.mxu0 0
      %701 = vmatprep.subr.bf16.mxu0 0
      %702 = vmatpush1.bf16.msra.mxu0 0
      %703 = vmatprep.subr.bf16.mxu0 0
      %704 = vmatpush1.bf16.msra.mxu0 0
      %705 = vmatprep.subr.bf16.mxu0 0
      %706 = vmatpush1.bf16.msra.mxu0 0
      %707 = vmatprep.mubr.bf16.mxu0 0
      %708 = vmatmul.mubr.bf16.gmra.mrb[0].mxu0 %v670
      %v709 = vpop.f32.mrb[0].mxu0
      %v710 = vadd.f32 0.0, %v709
      %v711 = vpop.f32.mrb[0].mxu0
      %v712 = vpop.f32.mrb[0].mxu0
      %v713 = vpop.f32.mrb[0].mxu0
      %714 = vdwg.mxu0
      %716 = vrot.lane.b32.xlu0 %v486, 32
      %v717 = vpop.permute.xlu0 %716
      %720 = vrot.lane.b32.xlu0 %v598, 64
      %v721 = vpop.permute.xlu0 %720
      %724 = vrot.lane.b32.xlu0 %v710, 96
      %v725 = vpop.permute.xlu0 %724
      %v727 = vsel %vm261, %v365, %v717
      %vm728 = vcmask 523264
      %v729 = vsel %vm728, %v727, %v721
      %vm730 = vcmask 785408
      %v731 = vsel %vm730, %v729, %v725
      %v732 = vpack.c.bf16 %v731, %v731
      %733 = vst [vmem:[%s248] sm:$0xf] %v732
      %p734 = scmp.lt.s32.totalorder %s18, 1
      %s735 = scalar_select %p734, %s18, 1
      %p736 = scmp.lt.s32.totalorder %s19, 0
      %s737 = scalar_select %p736, %s19, 0
      %s738 = sadd.s32 %s737, %s735
      %s739 = smul.addr %s738, 4
      %s740 = scalar_lea.vmem %s3, %s739
      // Predicated region
      $region33: #{decoder_forward.18} parent=31 // pred_check
        %p741 = pneg %p126
      $region34: #{decoder_forward.18} parent=31 // pred_check_branch
        %743 = sbr.rel (%p741) target = $region36
      $region35: #{decoder_forward.18} parent=31 // pred_region
        _
      $region36: #{decoder_forward.18} parent=31 // pred_fallthru
        _
    $region32: #{decoder_forward.18} parent=5 // pred_fallthru
      _
    %p744 = scmp.le.s32.totalorder 2, %s9
    // Predicated region
    $region37: #{decoder_forward.18} parent=5 // pred_check
      %p745 = pneg %p744
    $region38: #{decoder_forward.18} parent=5 // pred_check_branch
      %747 = sbr.rel (%p745) target = $region40
    $region39: #{decoder_forward.18} parent=5 // pred_region
      %s748 = ssub.s32 %s9, 2
      // Predicated region
      $region41: #{decoder_forward.18} parent=39 // pred_check
        %p749 = pneg %p132
      $region42: #{decoder_forward.18} parent=39 // pred_check_branch
        %751 = sbr.rel (%p749) target = $region44
      $region43: #{decoder_forward.18} parent=39 // pred_region
        %p752 = scmp.lt.s32.totalorder %s20, 1
        %s753 = scalar_select %p752, %s20, 1
        %p754 = scmp.lt.s32.totalorder %s21, 0
        %s755 = scalar_select %p754, %s21, 0
        %s756 = sadd.s32 %s755, %s753
        %s757 = smul.addr %s756, 4
        %s758 = scalar_lea.vmem %s3, %s757
      $region44: #{decoder_forward.18} parent=39 // pred_fallthru
        _
    $region40: #{decoder_forward.18} parent=5 // pred_fallthru
      _
  $region6: #{decoder_forward.18} parent=0 // loop_footer
    %s13 = sadd.s32 1, %s9
  $region7: #{decoder_forward.18} parent=0 // loop_footer_branch
    %8 = sbr.rel target = $region3
  $region8: #{decoder_forward.18} parent=0 // loop_exit
    _

// kernel: decoder_forward.21
$region0: #{decoder_forward.21}
  #allocation0 [shape = 'u32[]', space=smem, size = 0x4, offset = 0x4, fixed_abs, tag = 'smem constant byte address 0x4 - core index']
  #allocation1 [shape = 'u32[144,128]{1,0:T(1,128)}', space=vmem, size = 0x12000, scoped, tag = 'internal scratch']
  #allocation2 [shape = 'f32[16,256]{1,0:T(8,128)}', space=vmem, size = 0x4000, scoped, tag = 'scratch operand']
  %s0 = inlined_call_operand.vmem [shape: bf16[16,128], index: 0, kind: input, shape index: {}]
  %s1 = inlined_call_operand.vmem [shape: bf16[128,256], index: 1, kind: input, shape index: {}]
  %s2 = inlined_call_operand.vmem [shape: f32[1,256], index: 2, kind: input, shape index: {}]
  %s3 = inlined_call_operand.vmem [shape: bf16[16,256], index: 3, kind: output, shape index: {}]
  %s4 = sld [smem:[#allocation0]]
  $region30: #{decoder_forward.21} parent=0
    _
  %s6 = ssub.s32 1, %s4
  %s7 = scalar_select 0, %s6, %s4
  // Predicated region
  $region2: #{decoder_forward.21} parent=0 // pred_check
    _
  $region3: #{decoder_forward.21} parent=0 // pred_check_branch
    %9 = sbr.rel (0) target = $region5
  $region4: #{decoder_forward.21} parent=0 // pred_region
    _
  $region5: #{decoder_forward.21} parent=0 // pred_fallthru
    _
  // Predicated region
  $region6: #{decoder_forward.21} parent=0 // pred_check
    _
  $region7: #{decoder_forward.21} parent=0 // pred_check_branch
    %11 = sbr.rel (0) target = $region9
  $region8: #{decoder_forward.21} parent=0 // pred_region
    _
  $region9: #{decoder_forward.21} parent=0 // pred_fallthru
    _
  // Predicated region
  $region10: #{decoder_forward.21} parent=0 // pred_check
    _
  $region11: #{decoder_forward.21} parent=0 // pred_check_branch
    %13 = sbr.rel (0) target = $region13
  $region12: #{decoder_forward.21} parent=0 // pred_region
    _
  $region13: #{decoder_forward.21} parent=0 // pred_fallthru
    _
  %p15 = scmp.eq.s32.totalorder 0, 0
  // Predicated region
  $region14: #{decoder_forward.21} parent=0 // pred_check
    %p16 = pneg %p15
  $region15: #{decoder_forward.21} parent=0 // pred_check_branch
    %18 = sbr.rel (%p16) target = $region17
  $region16: #{decoder_forward.21} parent=0 // pred_region
    %19 = vst [vmem:[#allocation2] sm:$0xff] 0.0
    %20 = vst [vmem:[#allocation2 + $0x8] sm:$0xff] 0.0
    %21 = vst [vmem:[#allocation2 + $0x10] sm:$0xff] 0.0
    %22 = vst [vmem:[#allocation2 + $0x18] sm:$0xff] 0.0
  $region17: #{decoder_forward.21} parent=0 // pred_fallthru
    _
  %v23 = vld [vmem:[#allocation2] sm:$0xff]
  %v24 = vld [vmem:[#allocation2 + $0x8] sm:$0xff]
  %v25 = vld [vmem:[#allocation2 + $0x10] sm:$0xff]
  %v26 = vld [vmem:[#allocation2 + $0x18] sm:$0xff]
  %v27 = vld [vmem:[%s0] sm:$0xf]
  %v28 = vld [vmem:[%s0 + $0x4] sm:$0xf]
  %v29 = vld [vmem:[%s1] sm:$0xff]
  %v30 = vld [vmem:[%s1 + $0x8] sm:$0xff]
  %v31 = vld [vmem:[%s1 + $0x10] sm:$0xff]
  %v32 = vld [vmem:[%s1 + $0x18] sm:$0xff]
  %v33 = vld [vmem:[%s1 + $0x20] sm:$0xff]
  %v34 = vld [vmem:[%s1 + $0x28] sm:$0xff]
  %v35 = vld [vmem:[%s1 + $0x30] sm:$0xff]
  %v36 = vld [vmem:[%s1 + $0x38] sm:$0xff]
  %v37 = vld [vmem:[%s1 + $0x40] sm:$0xff]
  %v38 = vld [vmem:[%s1 + $0x48] sm:$0xff]
  %v39 = vld [vmem:[%s1 + $0x50] sm:$0xff]
  %v40 = vld [vmem:[%s1 + $0x58] sm:$0xff]
  %v41 = vld [vmem:[%s1 + $0x60] sm:$0xff]
  %v42 = vld [vmem:[%s1 + $0x68] sm:$0xff]
  %v43 = vld [vmem:[%s1 + $0x70] sm:$0xff]
  %v44 = vld [vmem:[%s1 + $0x78] sm:$0xff]
  %v47 = vunpack.c.l.b16 %v27
  %v48 = vunpack.c.l.b16 %v28
  %v49 = vpack.c.b16 %v48, %v47
  %v67 = vunpack.c.l.b16 %v29
  %v68 = vunpack.c.h.b16 %v29
  %v69 = vunpack.c.l.b16 %v30
  %v70 = vunpack.c.h.b16 %v30
  %v71 = vunpack.c.l.b16 %v31
  %v72 = vunpack.c.h.b16 %v31
  %v73 = vunpack.c.l.b16 %v32
  %v74 = vunpack.c.h.b16 %v32
  %v75 = vunpack.c.l.b16 %v33
  %v76 = vunpack.c.h.b16 %v33
  %v77 = vunpack.c.l.b16 %v34
  %v78 = vunpack.c.h.b16 %v34
  %v79 = vunpack.c.l.b16 %v35
  %v80 = vunpack.c.h.b16 %v35
  %v81 = vunpack.c.l.b16 %v36
  %v82 = vunpack.c.h.b16 %v36
  %v83 = vunpack.c.l.b16 %v37
  %v84 = vunpack.c.h.b16 %v37
  %v85 = vunpack.c.l.b16 %v38
  %v86 = vunpack.c.h.b16 %v38
  %v87 = vunpack.c.l.b16 %v39
  %v88 = vunpack.c.h.b16 %v39
  %v89 = vunpack.c.l.b16 %v40
  %v90 = vunpack.c.h.b16 %v40
  %v91 = vunpack.c.l.b16 %v41
  %v92 = vunpack.c.h.b16 %v41
  %v93 = vunpack.c.l.b16 %v42
  %v94 = vunpack.c.h.b16 %v42
  %v95 = vunpack.c.l.b16 %v43
  %v96 = vunpack.c.h.b16 %v43
  %v97 = vunpack.c.l.b16 %v44
  %v98 = vunpack.c.h.b16 %v44
  %v99 = vpack.c.b16 %v69, %v67
  %v100 = vpack.c.b16 %v70, %v68
  %v101 = vpack.c.b16 %v73, %v71
  %v102 = vpack.c.b16 %v74, %v72
  %v103 = vpack.c.b16 %v77, %v75
  %v104 = vpack.c.b16 %v78, %v76
  %v105 = vpack.c.b16 %v81, %v79
  %v106 = vpack.c.b16 %v82, %v80
  %v107 = vpack.c.b16 %v85, %v83
  %v108 = vpack.c.b16 %v86, %v84
  %v109 = vpack.c.b16 %v89, %v87
  %v110 = vpack.c.b16 %v90, %v88
  %v111 = vpack.c.b16 %v93, %v91
  %v112 = vpack.c.b16 %v94, %v92
  %v113 = vpack.c.b16 %v97, %v95
  %v114 = vpack.c.b16 %v98, %v96
  %131 = vmatprep.subr.bf16.mxu0 %v100
  %132 = vmatpush1.bf16.msra.mxu0 %v99
  %133 = vmatprep.subr.bf16.mxu0 %v102
  %134 = vmatpush1.bf16.msra.mxu0 %v101
  %135 = vmatprep.subr.bf16.mxu0 %v104
  %136 = vmatpush1.bf16.msra.mxu0 %v103
  %137 = vmatprep.subr.bf16.mxu0 %v106
  %138 = vmatpush1.bf16.msra.mxu0 %v105
  %139 = vmatprep.subr.bf16.mxu0 %v108
  %140 = vmatpush1.bf16.msra.mxu0 %v107
  %141 = vmatprep.subr.bf16.mxu0 %v110
  %142 = vmatpush1.bf16.msra.mxu0 %v109
  %143 = vmatprep.subr.bf16.mxu0 %v112
  %144 = vmatpush1.bf16.msra.mxu0 %v111
  %145 = vmatprep.subr.bf16.mxu0 %v114
  %146 = vmatpush1.bf16.msra.mxu0 %v113
  %147 = vmatprep.subr.bf16.mxu0 0
  %148 = vmatpush1.bf16.msra.mxu0 0
  %149 = vmatprep.subr.bf16.mxu0 0
  %150 = vmatpush1.bf16.msra.mxu0 0
  %151 = vmatprep.subr.bf16.mxu0 0
  %152 = vmatpush1.bf16.msra.mxu0 0
  %153 = vmatprep.subr.bf16.mxu0 0
  %154 = vmatpush1.bf16.msra.mxu0 0
  %155 = vmatprep.subr.bf16.mxu0 0
  %156 = vmatpush1.bf16.msra.mxu0 0
  %157 = vmatprep.subr.bf16.mxu0 0
  %158 = vmatpush1.bf16.msra.mxu0 0
  %159 = vmatprep.subr.bf16.mxu0 0
  %160 = vmatpush1.bf16.msra.mxu0 0
  %161 = vmatprep.subr.bf16.mxu0 0
  %162 = vmatpush1.bf16.msra.mxu0 0
  %163 = vmatprep.mubr.bf16.mxu0 0
  %164 = vmatmul.mubr.bf16.gmra.mrb[0].mxu0 %v49
  %v165 = vpop.f32.mrb[0].mxu0
  %v166 = vadd.f32 0.0, %v165
  %v167 = vpop.f32.mrb[0].mxu0
  %v168 = vadd.f32 0.0, %v167
  %v169 = vpop.f32.mrb[0].mxu0
  %v170 = vadd.f32 0.0, %v169
  %v171 = vpop.f32.mrb[0].mxu0
  %v172 = vadd.f32 0.0, %v171
  %173 = vdwg.mxu0
  %v174 = vadd.f32 %v23, %v166
  %v175 = vadd.f32 %v24, %v168
  %v176 = vadd.f32 %v25, %v170
  %v177 = vadd.f32 %v26, %v172
  %178 = vst [vmem:[#allocation2] sm:$0xff] %v174
  %179 = vst [vmem:[#allocation2 + $0x8] sm:$0xff] %v175
  %180 = vst [vmem:[#allocation2 + $0x10] sm:$0xff] %v176
  %181 = vst [vmem:[#allocation2 + $0x18] sm:$0xff] %v177
  // Predicated region
  $region18: #{decoder_forward.21} parent=0 // pred_check
    %p182 = pneg %p15
  $region19: #{decoder_forward.21} parent=0 // pred_check_branch
    %184 = sbr.rel (%p182) target = $region21
  $region20: #{decoder_forward.21} parent=0 // pred_region
    %v185 = vld [vmem:[#allocation2] sm:$0xff]
    %v186 = vld [vmem:[#allocation2 + $0x8] sm:$0xff]
    %v187 = vld [vmem:[#allocation2 + $0x10] sm:$0xff]
    %v188 = vld [vmem:[#allocation2 + $0x18] sm:$0xff]
    %v189 = vld [vmem:[%s2] sm:$0x3]
    %v191 = vlaneseq
    %v192 = vshrl.u32 %v191, 7
    %v193 = vsub.s32 0, %v192
    %v194 = vrot.slane %v189, %v193
    %v195 = vlaneseq
    %v196 = vshrl.u32 %v195, 7
    %v197 = vsub.s32 1, %v196
    %v198 = vrot.slane %v189, %v197
    %v201 = vadd.f32 %v185, %v194
    %v202 = vadd.f32 %v186, %v198
    %v203 = vadd.f32 %v187, %v194
    %v204 = vadd.f32 %v188, %v198
    %v205 = vpack.c.bf16 %v203, %v201
    %v206 = vpack.c.bf16 %v204, %v202
    %v209 = vunpack.c.l.b16 %v205
    %v210 = vunpack.c.l.b16 %v206
    %v211 = vunpack.c.h.b16 %v205
    %v212 = vunpack.c.h.b16 %v206
    %v213 = vpack.c.b16 %v210, %v209
    %v214 = vpack.c.b16 %v212, %v211
    %217 = vst [vmem:[%s3] sm:$0xff] %v213
    %218 = vst [vmem:[%s3 + $0x8] sm:$0xff] %v214
  $region21: #{decoder_forward.21} parent=0 // pred_fallthru
    _
  // Predicated region
  $region22: #{decoder_forward.21} parent=0 // pred_check
    _
  $region23: #{decoder_forward.21} parent=0 // pred_check_branch
    %220 = sbr.rel (0) target = $region25
  $region24: #{decoder_forward.21} parent=0 // pred_region
    _
  $region25: #{decoder_forward.21} parent=0 // pred_fallthru
    _
  // Predicated region
  $region26: #{decoder_forward.21} parent=0 // pred_check
    _
  $region27: #{decoder_forward.21} parent=0 // pred_check_branch
    %222 = sbr.rel (0) target = $region29
  $region28: #{decoder_forward.21} parent=0 // pred_region
    _
  $region29: #{decoder_forward.21} parent=0 // pred_fallthru
    _

// kernel: decoder_forward.22
$region0: #{decoder_forward.22}
  #allocation0 [shape = 'u32[]', space=smem, size = 0x4, offset = 0x4, fixed_abs, tag = 'smem constant byte address 0x4 - core index']
  #allocation1 [shape = 'u32[144,128]{1,0:T(1,128)}', space=vmem, size = 0x12000, scoped, tag = 'internal scratch']
  %s0 = inlined_call_operand.vmem [shape: bf16[2,8,128], index: 0, kind: input, shape index: {}]
  %s1 = inlined_call_operand.vmem [shape: bf16[2,8,256], index: 1, kind: input, shape index: {}, may-alias: {1,2}]
  %s2 = inlined_call_operand.vmem [shape: bf16[2,8,256], index: 2, kind: input, shape index: {}, may-alias: {1,2}]
  %s3 = inlined_call_operand.vmem [shape: bf16[2,8,128], index: 3, kind: output, shape index: {}]
  %s4 = sld [smem:[#allocation0]]
  $region45: #{decoder_forward.22} parent=0
    _
  %s6 = ssub.s32 1, %s4
  %s7 = scalar_select 0, %s6, %s4
  loop: start=0, step=1, limit=4
  $region2: #{decoder_forward.22} parent=0 // loop_pre_header
    _
  $region3: #{decoder_forward.22} parent=0 // loop_header
    %s9 = sphi 0, %s13
    %p10 = scmp.ge.s32.totalorder %s9, 4
    %s16 = sphi 0, %s28
    %s17 = sphi 0, %s24
    %s18 = sphi 0, %s16
    %s19 = sphi 0, %s17
    %s20 = sphi 0, %s18
    %s21 = sphi 0, %s19
    %s33 = sphi 0, %s35
    %s36 = sphi 0, %s33
    %s37 = sphi 0, %s36
    %s53 = sphi 0, %s37
    %s59 = sphi 0, %s61
    %s62 = sphi 0, %s59
    %s63 = sphi 0, %s62
    %s79 = sphi 0, %s63
    %s85 = sphi 0, %s87
    %s88 = sphi 0, %s85
    %s89 = sphi 0, %s88
    %s105 = sphi 0, %s89
    %s113 = sphi 0, %s115
    %s116 = sphi 0, %s113
    %s117 = sphi 0, %s116
    %s133 = sphi 0, %s117
  $region4: #{decoder_forward.22} parent=0 // loop_header_branch
    %12 = sbr.rel (%p10) target = $region8
  $region5: #{decoder_forward.22} parent=0 // loop_body
    %s14 = ssub.s32 %s9, 1
    %s15 = ssub.s32 %s9, 2
    %s22 = sadd.s32 1, %s17
    %p23 = scmp.ge.s32.totalorder %s22, 1
    %s24 = scalar_select %p23, 0, %s22
    %s25 = sadd.s32 1, %s16
    %s26 = scalar_select %p23, %s25, %s16
    %p27 = scmp.ge.s32.totalorder %s26, 2
    %s28 = scalar_select %p27, 0, %s26
    %s29 = ssub.s32 %s16, %s28
    %s30 = ssub.s32 %s17, %s24
    %s31 = sor.u32 %s29, %s30
    %p32 = scmp.eq.s32.totalorder %s31, 0
    %s34 = sadd.s32 %s33, 1
    %s35 = scalar_select %p32, %s33, %s34
    %p38 = pneg %p32
    %p39 = scmp.eq.s32.totalorder %s9, 1
    %p40 = por %p38, %p39
    %p41 = scmp.ne.s32.totalorder %s33, %s36
    %p42 = scmp.eq.s32.totalorder %s9, 0
    %p43 = por %p41, %p42
    %p44 = scmp.ne.s32.totalorder %s33, %s36
    %p45 = scmp.eq.s32.totalorder %s14, 1
    %p46 = por %p44, %p45
    %p47 = scmp.ne.s32.totalorder %s36, %s37
    %p48 = scmp.eq.s32.totalorder %s14, 0
    %p49 = por %p47, %p48
    %p50 = scmp.ne.s32.totalorder %s36, %s37
    %p51 = scmp.eq.s32.totalorder %s15, 1
    %p52 = por %p50, %p51
    %p54 = scmp.ne.s32.totalorder %s37, %s53
    %p55 = scmp.eq.s32.totalorder %s15, 0
    %p56 = por %p54, %p55
    %s57 = ssub.s32 %s16, %s28
    %p58 = scmp.eq.s32.totalorder %s57, 0
    %s60 = sadd.s32 %s59, 1
    %s61 = scalar_select %p58, %s59, %s60
    %p64 = pneg %p58
    %p65 = scmp.eq.s32.totalorder %s9, 1
    %p66 = por %p64, %p65
    %p67 = scmp.ne.s32.totalorder %s59, %s62
    %p68 = scmp.eq.s32.totalorder %s9, 0
    %p69 = por %p67, %p68
    %p70 = scmp.ne.s32.totalorder %s59, %s62
    %p71 = scmp.eq.s32.totalorder %s14, 1
    %p72 = por %p70, %p71
    %p73 = scmp.ne.s32.totalorder %s62, %s63
    %p74 = scmp.eq.s32.totalorder %s14, 0
    %p75 = por %p73, %p74
    %p76 = scmp.ne.s32.totalorder %s62, %s63
    %p77 = scmp.eq.s32.totalorder %s15, 1
    %p78 = por %p76, %p77
    %p80 = scmp.ne.s32.totalorder %s63, %s79
    %p81 = scmp.eq.s32.totalorder %s15, 0
    %p82 = por %p80, %p81
    %s83 = ssub.s32 %s16, %s28
    %p84 = scmp.eq.s32.totalorder %s83, 0
    %s86 = sadd.s32 %s85, 1
    %s87 = scalar_select %p84, %s85, %s86
    %p90 = pneg %p84
    %p91 = scmp.eq.s32.totalorder %s9, 1
    %p92 = por %p90, %p91
    %p93 = scmp.ne.s32.totalorder %s85, %s88
    %p94 = scmp.eq.s32.totalorder %s9, 0
    %p95 = por %p93, %p94
    %p96 = scmp.ne.s32.totalorder %s85, %s88
    %p97 = scmp.eq.s32.totalorder %s14, 1
    %p98 = por %p96, %p97
    %p99 = scmp.ne.s32.totalorder %s88, %s89
    %p100 = scmp.eq.s32.totalorder %s14, 0
    %p101 = por %p99, %p100
    %p102 = scmp.ne.s32.totalorder %s88, %s89
    %p103 = scmp.eq.s32.totalorder %s15, 1
    %p104 = por %p102, %p103
    %p106 = scmp.ne.s32.totalorder %s89, %s105
    %p107 = scmp.eq.s32.totalorder %s15, 0
    %p108 = por %p106, %p107
    %s109 = ssub.s32 %s16, %s28
    %s110 = ssub.s32 %s17, %s24
    %s111 = sor.u32 %s109, %s110
    %p112 = scmp.eq.s32.totalorder %s111, 0
    %s114 = sadd.s32 %s113, 1
    %s115 = scalar_select %p112, %s113, %s114
    %p118 = pneg %p112
    %p119 = scmp.eq.s32.totalorder %s9, 1
    %p120 = por %p118, %p119
    %p121 = scmp.ne.s32.totalorder %s113, %s116
    %p122 = scmp.eq.s32.totalorder %s9, 0
    %p123 = por %p121, %p122
    %p124 = scmp.ne.s32.totalorder %s113, %s116
    %p125 = scmp.eq.s32.totalorder %s14, 1
    %p126 = por %p124, %p125
    %p127 = scmp.ne.s32.totalorder %s116, %s117
    %p128 = scmp.eq.s32.totalorder %s14, 0
    %p129 = por %p127, %p128
    %p130 = scmp.ne.s32.totalorder %s116, %s117
    %p131 = scmp.eq.s32.totalorder %s15, 1
    %p132 = por %p130, %p131
    %p134 = scmp.ne.s32.totalorder %s117, %s133
    %p135 = scmp.eq.s32.totalorder %s15, 0
    %p136 = por %p134, %p135
    %p137 = scmp.le.s32.totalorder 1, %s9
    %p138 = scmp.lt.s32.totalorder %s9, 3
    %p139 = pnand %p137, %p138
    %p140 = pneg %p139
    // Predicated region
    $region9: #{decoder_forward.22} parent=5 // pred_check
      _
    $region10: #{decoder_forward.22} parent=5 // pred_check_branch
      %142 = sbr.rel (%p139) target = $region12
    $region11: #{decoder_forward.22} parent=5 // pred_region
      %s143 = ssub.s32 %s9, 1
    $region12: #{decoder_forward.22} parent=5 // pred_fallthru
      _
    %p144 = scmp.lt.s32.totalorder %s9, 2
    // Predicated region
    $region13: #{decoder_forward.22} parent=5 // pred_check
      %p145 = pneg %p144
    $region14: #{decoder_forward.22} parent=5 // pred_check_branch
      %147 = sbr.rel (%p145) target = $region16
    $region15: #{decoder_forward.22} parent=5 // pred_region
      // Predicated region
      $region17: #{decoder_forward.22} parent=15 // pred_check
        %p148 = pneg %p43
      $region18: #{decoder_forward.22} parent=15 // pred_check_branch
        %150 = sbr.rel (%p148) target = $region20
      $region19: #{decoder_forward.22} parent=15 // pred_region
        %p151 = scmp.lt.s32.totalorder %s16, 1
        %s152 = scalar_select %p151, %s16, 1
        %p153 = scmp.lt.s32.totalorder %s17, 0
        %s154 = scalar_select %p153, %s17, 0
        %s155 = sadd.s32 %s154, %s152
        %s156 = smul.addr %s155, 4
        %s157 = scalar_lea.vmem %s0, %s156
      $region20: #{decoder_forward.22} parent=15 // pred_fallthru
        _
      // Predicated region
      $region21: #{decoder_forward.22} parent=15 // pred_check
        %p158 = pneg %p69
      $region22: #{decoder_forward.22} parent=15 // pred_check_branch
        %160 = sbr.rel (%p158) target = $region24
      $region23: #{decoder_forward.22} parent=15 // pred_region
        %p161 = scmp.lt.s32.totalorder %s16, 1
        %s162 = scalar_select %p161, %s16, 1
        %s163 = smul.addr %s162, 2
        %s164 = smul.addr %s163, 4
        %s165 = scalar_lea.vmem %s1, %s164
      $region24: #{decoder_forward.22} parent=15 // pred_fallthru
        _
      // Predicated region
      $region25: #{decoder_forward.22} parent=15 // pred_check
        %p166 = pneg %p95
      $region26: #{decoder_forward.22} parent=15 // pred_check_branch
        %168 = sbr.rel (%p166) target = $region28
      $region27: #{decoder_forward.22} parent=15 // pred_region
        %p169 = scmp.lt.s32.totalorder %s16, 1
        %s170 = scalar_select %p169, %s16, 1
        %s171 = smul.addr %s170, 2
        %s172 = sadd.s32 1, %s171
        %s173 = smul.addr %s172, 4
        %s174 = scalar_lea.vmem %s2, %s173
      $region28: #{decoder_forward.22} parent=15 // pred_fallthru
        _
    $region16: #{decoder_forward.22} parent=5 // pred_fallthru
      _
    %p175 = scmp.le.s32.totalorder 1, %s9
    %p176 = scmp.lt.s32.totalorder %s9, 3
    %p177 = pnand %p175, %p176
    %p178 = pneg %p177
    // Predicated region
    $region29: #{decoder_forward.22} parent=5 // pred_check
      _
    $region30: #{decoder_forward.22} parent=5 // pred_check_branch
      %180 = sbr.rel (%p177) target = $region32
    $region31: #{decoder_forward.22} parent=5 // pred_region
      %s181 = ssub.s32 %s9, 1
      %p182 = scmp.lt.s32.totalorder %s18, 1
      %s183 = scalar_select %p182, %s18, 1
      %p184 = scmp.lt.s32.totalorder %s19, 0
      %s185 = scalar_select %p184, %s19, 0
      %s186 = sadd.s32 %s185, %s183
      %s187 = smul.addr %s186, 4
      %s188 = scalar_lea.vmem %s0, %s187
      %p189 = pneg %p49
      %p190 = pneg %p46
      %p191 = scmp.lt.s32.totalorder %s18, 1
      %s192 = scalar_select %p191, %s18, 1
      %s193 = smul.addr %s192, 2
      %s194 = smul.addr %s193, 4
      %s195 = scalar_lea.vmem %s1, %s194
      %p196 = pneg %p75
      %p197 = pneg %p72
      %p198 = scmp.lt.s32.totalorder %s18, 1
      %s199 = scalar_select %p198, %s18, 1
      %s200 = smul.addr %s199, 2
      %s201 = sadd.s32 1, %s200
      %s202 = smul.addr %s201, 4
      %s203 = scalar_lea.vmem %s2, %s202
      %p204 = pneg %p101
      %p205 = pneg %p98
      %p206 = pneg %p129
      %p207 = pneg %p126
      %p208 = scmp.lt.s32.totalorder %s18, 1
      %s209 = scalar_select %p208, %s18, 1
      %p210 = scmp.lt.s32.totalorder %s19, 0
      %s211 = scalar_select %p210, %s19, 0
      %s212 = sadd.s32 %s211, %s209
      %s213 = smul.addr %s212, 4
      %s214 = scalar_lea.vmem %s3, %s213
      %p215 = scmp.lt.s32.totalorder %s18, 1
      %s216 = scalar_select %p215, %s18, 1
      %p217 = scmp.lt.s32.totalorder %s19, 0
      %s218 = scalar_select %p217, %s19, 0
      %s219 = sadd.s32 %s218, %s216
      %s220 = smul.addr %s219, 4
      %s221 = scalar_lea.vmem %s0, %s220
      %p222 = scmp.lt.s32.totalorder %s18, 1
      %s223 = scalar_select %p222, %s18, 1
      %s224 = smul.addr %s223, 2
      %s225 = smul.addr %s224, 4
      %s226 = scalar_lea.vmem %s1, %s225
      %p227 = scmp.lt.s32.totalorder %s18, 1
      %s228 = scalar_select %p227, %s18, 1
      %s229 = smul.addr %s228, 2
      %s230 = sadd.s32 1, %s229
      %s231 = smul.addr %s230, 4
      %s232 = scalar_lea.vmem %s2, %s231
      %p233 = scmp.lt.s32.totalorder %s18, 1
      %s234 = scalar_select %p233, %s18, 1
      %p235 = scmp.lt.s32.totalorder %s19, 0
      %s236 = scalar_select %p235, %s19, 0
      %s237 = sadd.s32 %s236, %s234
      %s238 = smul.addr %s237, 4
      %s239 = scalar_lea.vmem %s3, %s238
      %v241 = vld [vmem:[%s221] sm:$0xf]
      %v242 = vld [vmem:[%s226] sm:$0xf]
      %v243 = vld [vmem:[%s232] sm:$0xf]
      %vm244 = vcmask 261120
      %v246 = vsel %vm244, %v241, 0
      %v249 = vsel %vm244, %v242, 0
      %251 = vmatprep.subr.bf16.mxu0 0
      %252 = vmatpush1.bf16.xpose.msra.mxu0 %v249
      %253 = vmatprep.subr.bf16.mxu0 0
      %254 = vmatpush1.bf16.xpose.msra.mxu0 0
      %255 = vmatprep.subr.bf16.mxu0 0
      %256 = vmatpush1.bf16.xpose.msra.mxu0 0
      %257 = vmatprep.subr.bf16.mxu0 0
      %258 = vmatpush1.bf16.xpose.msra.mxu0 0
      %259 = vmatprep.subr.bf16.mxu0 0
      %260 = vmatpush1.bf16.xpose.msra.mxu0 0
      %261 = vmatprep.subr.bf16.mxu0 0
      %262 = vmatpush1.bf16.xpose.msra.mxu0 0
      %263 = vmatprep.subr.bf16.mxu0 0
      %264 = vmatpush1.bf16.xpose.msra.mxu0 0
      %265 = vmatprep.subr.bf16.mxu0 0
      %266 = vmatpush1.bf16.xpose.msra.mxu0 0
      %267 = vmatprep.subr.bf16.mxu0 0
      %268 = vmatpush1.bf16.xpose.msra.mxu0 0
      %269 = vmatprep.subr.bf16.mxu0 0
      %270 = vmatpush1.bf16.xpose.msra.mxu0 0
      %271 = vmatprep.subr.bf16.mxu0 0
      %272 = vmatpush1.bf16.xpose.msra.mxu0 0
      %273 = vmatprep.subr.bf16.mxu0 0
      %274 = vmatpush1.bf16.xpose.msra.mxu0 0
      %275 = vmatprep.subr.bf16.mxu0 0
      %276 = vmatpush1.bf16.xpose.msra.mxu0 0
      %277 = vmatprep.subr.bf16.mxu0 0
      %278 = vmatpush1.bf16.xpose.msra.mxu0 0
      %279 = vmatprep.subr.bf16.mxu0 0
      %280 = vmatpush1.bf16.xpose.msra.mxu0 0
      %281 = vmatprep.subr.bf16.mxu0 0
      %282 = vmatpush1.bf16.xpose.msra.mxu0 0
      %283 = vmatprep.mubr.bf16.mxu0 0
      %284 = vmatmul.mubr.bf16.gmra.mrb[0].mxu0 %v246
      %v285 = vpop.f32.mrb[0].mxu0
      %v286 = vadd.f32 0.0, %v285
      %v287 = vpop.f32.mrb[0].mxu0
      %v288 = vpop.f32.mrb[0].mxu0
      %v289 = vpop.f32.mrb[0].mxu0
      %290 = vdwg.mxu0
      %v291 = vmul.f32 %v286, 0.17677669
      %vm292 = vcmask 64512
      %v293 = vsel %vm292, %v291, -inf
      %294 = vmax.xlane.f32.xlu0 %v293
      %v295 = vpop.xlane.xlu0 %294
      %v296 = vsub.f32 %v291, %v295
      %v297 = vmul.f32 %v296, 1.442695
      %v298 = vpow.pop %v297
      %v299 = vsel %vm292, %v298, 0.0
      %300 = vadd.xlane.f32.xlu0 %v299
      %v301 = vpop.xlane.xlu0 %300
      %v302 = vrcp.pop %v301
      %v303 = vmul.f32 %v298, %v302
      %v304 = vpack.c.bf16 %v303, %v303
      %v306 = vsel %vm292, %v304, 0
      %vm308 = vcmask 1043456
      %v310 = vsel %vm308, %v243, 0
      %312 = vmatprep.subr.bf16.mxu0 0
      %313 = vmatpush1.bf16.msra.mxu0 %v310
      %314 = vmatprep.subr.bf16.mxu0 0
      %315 = vmatpush1.bf16.msra.mxu0 0
      %316 = vmatprep.subr.bf16.mxu0 0
      %317 = vmatpush1.bf16.msra.mxu0 0
      %318 = vmatprep.subr.bf16.mxu0 0
      %319 = vmatpush1.bf16.msra.mxu0 0
      %320 = vmatprep.subr.bf16.mxu0 0
      %321 = vmatpush1.bf16.msra.mxu0 0
      %322 = vmatprep.subr.bf16.mxu0 0
      %323 = vmatpush1.bf16.msra.mxu0 0
      %324 = vmatprep.subr.bf16.mxu0 0
      %325 = vmatpush1.bf16.msra.mxu0 0
      %326 = vmatprep.subr.bf16.mxu0 0
      %327 = vmatpush1.bf16.msra.mxu0 0
      %328 = vmatprep.subr.bf16.mxu0 0
      %329 = vmatpush1.bf16.msra.mxu0 0
      %330 = vmatprep.subr.bf16.mxu0 0
      %331 = vmatpush1.bf16.msra.mxu0 0
      %332 = vmatprep.subr.bf16.mxu0 0
      %333 = vmatpush1.bf16.msra.mxu0 0
      %334 = vmatprep.subr.bf16.mxu0 0
      %335 = vmatpush1.bf16.msra.mxu0 0
      %336 = vmatprep.subr.bf16.mxu0 0
      %337 = vmatpush1.bf16.msra.mxu0 0
      %338 = vmatprep.subr.bf16.mxu0 0
      %339 = vmatpush1.bf16.msra.mxu0 0
      %340 = vmatprep.subr.bf16.mxu0 0
      %341 = vmatpush1.bf16.msra.mxu0 0
      %342 = vmatprep.subr.bf16.mxu0 0
      %343 = vmatpush1.bf16.msra.mxu0 0
      %344 = vmatprep.mubr.bf16.mxu0 0
      %345 = vmatmul.mubr.bf16.gmra.mrb[0].mxu0 %v306
      %v346 = vpop.f32.mrb[0].mxu0
      %v347 = vadd.f32 0.0, %v346
      %v348 = vpop.f32.mrb[0].mxu0
      %v349 = vpop.f32.mrb[0].mxu0
      %v350 = vpop.f32.mrb[0].mxu0
      %351 = vdwg.mxu0
      %v353 = vunpack.c.l.b16 %v241
      %v354 = vpack.c.b16 %v353, %v353
      %355 = vrot.lane.b32.xlu0 %v354, 96
      %v356 = vpop.permute.xlu0 %355
      %v358 = vunpack.c.l.b16 %v242
      %v359 = vpack.c.b16 %v358, %v358
      %360 = vrot.lane.b32.xlu0 %v359, 96
      %v361 = vpop.permute.xlu0 %360
      %v363 = vsel %vm244, %v356, 0
      %v366 = vsel %vm244, %v361, 0
      %368 = vmatprep.subr.bf16.mxu0 0
      %369 = vmatpush1.bf16.xpose.msra.mxu0 %v366
      %370 = vmatprep.subr.bf16.mxu0 0
      %371 = vmatpush1.bf16.xpose.msra.mxu0 0
      %372 = vmatprep.subr.bf16.mxu0 0
      %373 = vmatpush1.bf16.xpose.msra.mxu0 0
      %374 = vmatprep.subr.bf16.mxu0 0
      %375 = vmatpush1.bf16.xpose.msra.mxu0 0
      %376 = vmatprep.subr.bf16.mxu0 0
      %377 = vmatpush1.bf16.xpose.msra.mxu0 0
      %378 = vmatprep.subr.bf16.mxu0 0
      %379 = vmatpush1.bf16.xpose.msra.mxu0 0
      %380 = vmatprep.subr.bf16.mxu0 0
      %381 = vmatpush1.bf16.xpose.msra.mxu0 0
      %382 = vmatprep.subr.bf16.mxu0 0
      %383 = vmatpush1.bf16.xpose.msra.mxu0 0
      %384 = vmatprep.subr.bf16.mxu0 0
      %385 = vmatpush1.bf16.xpose.msra.mxu0 0
      %386 = vmatprep.subr.bf16.mxu0 0
      %387 = vmatpush1.bf16.xpose.msra.mxu0 0
      %388 = vmatprep.subr.bf16.mxu0 0
      %389 = vmatpush1.bf16.xpose.msra.mxu0 0
      %390 = vmatprep.subr.bf16.mxu0 0
      %391 = vmatpush1.bf16.xpose.msra.mxu0 0
      %392 = vmatprep.subr.bf16.mxu0 0
      %393 = vmatpush1.bf16.xpose.msra.mxu0 0
      %394 = vmatprep.subr.bf16.mxu0 0
      %395 = vmatpush1.bf16.xpose.msra.mxu0 0
      %396 = vmatprep.subr.bf16.mxu0 0
      %397 = vmatpush1.bf16.xpose.msra.mxu0 0
      %398 = vmatprep.subr.bf16.mxu0 0
      %399 = vmatpush1.bf16.xpose.msra.mxu0 0
      %400 = vmatprep.mubr.bf16.mxu0 0
      %401 = vmatmul.mubr.bf16.gmra.mrb[0].mxu0 %v363
      %v402 = vpop.f32.mrb[0].mxu0
      %v403 = vadd.f32 0.0, %v402
      %v404 = vpop.f32.mrb[0].mxu0
      %v405 = vpop.f32.mrb[0].mxu0
      %v406 = vpop.f32.mrb[0].mxu0
      %407 = vdwg.mxu0
      %v408 = vmul.f32 %v403, 0.17677669
      %v409 = vsel %vm292, %v408, -inf
      %410 = vmax.xlane.f32.xlu0 %v409
      %v411 = vpop.xlane.xlu0 %410
      %v412 = vsub.f32 %v408, %v411
      %v413 = vmul.f32 %v412, 1.442695
      %v414 = vpow.pop %v413
      %v415 = vsel %vm292, %v414, 0.0
      %416 = vadd.xlane.f32.xlu0 %v415
      %v417 = vpop.xlane.xlu0 %416
      %v418 = vrcp.pop %v417
      %v419 = vmul.f32 %v414, %v418
      %v420 = vpack.c.bf16 %v419, %v419
      %v422 = vunpack.c.l.b16 %v243
      %v423 = vpack.c.b16 %v422, %v422
      %424 = vrot.lane.b32.xlu0 %v423, 96
      %v425 = vpop.permute.xlu0 %424
      %v427 = vsel %vm292, %v420, 0
      %v430 = vsel %vm308, %v425, 0
      %432 = vmatprep.subr.bf16.mxu0 0
      %433 = vmatpush1.bf16.msra.mxu0 %v430
      %434 = vmatprep.subr.bf16.mxu0 0
      %435 = vmatpush1.bf16.msra.mxu0 0
      %436 = vmatprep.subr.bf16.mxu0 0
      %437 = vmatpush1.bf16.msra.mxu0 0
      %438 = vmatprep.subr.bf16.mxu0 0
      %439 = vmatpush1.bf16.msra.mxu0 0
      %440 = vmatprep.subr.bf16.mxu0 0
      %441 = vmatpush1.bf16.msra.mxu0 0
      %442 = vmatprep.subr.bf16.mxu0 0
      %443 = vmatpush1.bf16.msra.mxu0 0
      %444 = vmatprep.subr.bf16.mxu0 0
      %445 = vmatpush1.bf16.msra.mxu0 0
      %446 = vmatprep.subr.bf16.mxu0 0
      %447 = vmatpush1.bf16.msra.mxu0 0
      %448 = vmatprep.subr.bf16.mxu0 0
      %449 = vmatpush1.bf16.msra.mxu0 0
      %450 = vmatprep.subr.bf16.mxu0 0
      %451 = vmatpush1.bf16.msra.mxu0 0
      %452 = vmatprep.subr.bf16.mxu0 0
      %453 = vmatpush1.bf16.msra.mxu0 0
      %454 = vmatprep.subr.bf16.mxu0 0
      %455 = vmatpush1.bf16.msra.mxu0 0
      %456 = vmatprep.subr.bf16.mxu0 0
      %457 = vmatpush1.bf16.msra.mxu0 0
      %458 = vmatprep.subr.bf16.mxu0 0
      %459 = vmatpush1.bf16.msra.mxu0 0
      %460 = vmatprep.subr.bf16.mxu0 0
      %461 = vmatpush1.bf16.msra.mxu0 0
      %462 = vmatprep.subr.bf16.mxu0 0
      %463 = vmatpush1.bf16.msra.mxu0 0
      %464 = vmatprep.mubr.bf16.mxu0 0
      %465 = vmatmul.mubr.bf16.gmra.mrb[0].mxu0 %v427
      %v466 = vpop.f32.mrb[0].mxu0
      %v467 = vadd.f32 0.0, %v466
      %v468 = vpop.f32.mrb[0].mxu0
      %v469 = vpop.f32.mrb[0].mxu0
      %v470 = vpop.f32.mrb[0].mxu0
      %471 = vdwg.mxu0
      %472 = vrot.lane.b32.xlu0 %v354, 64
      %v473 = vpop.permute.xlu0 %472
      %474 = vrot.lane.b32.xlu0 %v359, 64
      %v475 = vpop.permute.xlu0 %474
      %v477 = vsel %vm244, %v473, 0
      %v480 = vsel %vm244, %v475, 0
      %482 = vmatprep.subr.bf16.mxu0 0
      %483 = vmatpush1.bf16.xpose.msra.mxu0 %v480
      %484 = vmatprep.subr.bf16.mxu0 0
      %485 = vmatpush1.bf16.xpose.msra.mxu0 0
      %486 = vmatprep.subr.bf16.mxu0 0
      %487 = vmatpush1.bf16.xpose.msra.mxu0 0
      %488 = vmatprep.subr.bf16.mxu0 0
      %489 = vmatpush1.bf16.xpose.msra.mxu0 0
      %490 = vmatprep.subr.bf16.mxu0 0
      %491 = vmatpush1.bf16.xpose.msra.mxu0 0
      %492 = vmatprep.subr.bf16.mxu0 0
      %493 = vmatpush1.bf16.xpose.msra.mxu0 0
      %494 = vmatprep.subr.bf16.mxu0 0
      %495 = vmatpush1.bf16.xpose.msra.mxu0 0
      %496 = vmatprep.subr.bf16.mxu0 0
      %497 = vmatpush1.bf16.xpose.msra.mxu0 0
      %498 = vmatprep.subr.bf16.mxu0 0
      %499 = vmatpush1.bf16.xpose.msra.mxu0 0
      %500 = vmatprep.subr.bf16.mxu0 0
      %501 = vmatpush1.bf16.xpose.msra.mxu0 0
      %502 = vmatprep.subr.bf16.mxu0 0
      %503 = vmatpush1.bf16.xpose.msra.mxu0 0
      %504 = vmatprep.subr.bf16.mxu0 0
      %505 = vmatpush1.bf16.xpose.msra.mxu0 0
      %506 = vmatprep.subr.bf16.mxu0 0
      %507 = vmatpush1.bf16.xpose.msra.mxu0 0
      %508 = vmatprep.subr.bf16.mxu0 0
      %509 = vmatpush1.bf16.xpose.msra.mxu0 0
      %510 = vmatprep.subr.bf16.mxu0 0
      %511 = vmatpush1.bf16.xpose.msra.mxu0 0
      %512 = vmatprep.subr.bf16.mxu0 0
      %513 = vmatpush1.bf16.xpose.msra.mxu0 0
      %514 = vmatprep.mubr.bf16.mxu0 0
      %515 = vmatmul.mubr.bf16.gmra.mrb[0].mxu0 %v477
      %v516 = vpop.f32.mrb[0].mxu0
      %v517 = vadd.f32 0.0, %v516
      %v518 = vpop.f32.mrb[0].mxu0
      %v519 = vpop.f32.mrb[0].mxu0
      %v520 = vpop.f32.mrb[0].mxu0
      %521 = vdwg.mxu0
      %v522 = vmul.f32 %v517, 0.17677669
      %v523 = vsel %vm292, %v522, -inf
      %524 = vmax.xlane.f32.xlu0 %v523
      %v525 = vpop.xlane.xlu0 %524
      %v526 = vsub.f32 %v522, %v525
      %v527 = vmul.f32 %v526, 1.442695
      %v528 = vpow.pop %v527
      %v529 = vsel %vm292, %v528, 0.0
      %530 = vadd.xlane.f32.xlu0 %v529
      %v531 = vpop.xlane.xlu0 %530
      %v532 = vrcp.pop %v531
      %v533 = vmul.f32 %v528, %v532
      %v534 = vpack.c.bf16 %v533, %v533
      %535 = vrot.lane.b32.xlu0 %v423, 64
      %v536 = vpop.permute.xlu0 %535
      %v538 = vsel %vm292, %v534, 0
      %v541 = vsel %vm308, %v536, 0
      %543 = vmatprep.subr.bf16.mxu0 0
      %544 = vmatpush1.bf16.msra.mxu0 %v541
      %545 = vmatprep.subr.bf16.mxu0 0
      %546 = vmatpush1.bf16.msra.mxu0 0
      %547 = vmatprep.subr.bf16.mxu0 0
      %548 = vmatpush1.bf16.msra.mxu0 0
      %549 = vmatprep.subr.bf16.mxu0 0
      %550 = vmatpush1.bf16.msra.mxu0 0
      %551 = vmatprep.subr.bf16.mxu0 0
      %552 = vmatpush1.bf16.msra.mxu0 0
      %553 = vmatprep.subr.bf16.mxu0 0
      %554 = vmatpush1.bf16.msra.mxu0 0
      %555 = vmatprep.subr.bf16.mxu0 0
      %556 = vmatpush1.bf16.msra.mxu0 0
      %557 = vmatprep.subr.bf16.mxu0 0
      %558 = vmatpush1.bf16.msra.mxu0 0
      %559 = vmatprep.subr.bf16.mxu0 0
      %560 = vmatpush1.bf16.msra.mxu0 0
      %561 = vmatprep.subr.bf16.mxu0 0
      %562 = vmatpush1.bf16.msra.mxu0 0
      %563 = vmatprep.subr.bf16.mxu0 0
      %564 = vmatpush1.bf16.msra.mxu0 0
      %565 = vmatprep.subr.bf16.mxu0 0
      %566 = vmatpush1.bf16.msra.mxu0 0
      %567 = vmatprep.subr.bf16.mxu0 0
      %568 = vmatpush1.bf16.msra.mxu0 0
      %569 = vmatprep.subr.bf16.mxu0 0
      %570 = vmatpush1.bf16.msra.mxu0 0
      %571 = vmatprep.subr.bf16.mxu0 0
      %572 = vmatpush1.bf16.msra.mxu0 0
      %573 = vmatprep.subr.bf16.mxu0 0
      %574 = vmatpush1.bf16.msra.mxu0 0
      %575 = vmatprep.mubr.bf16.mxu0 0
      %576 = vmatmul.mubr.bf16.gmra.mrb[0].mxu0 %v538
      %v577 = vpop.f32.mrb[0].mxu0
      %v578 = vadd.f32 0.0, %v577
      %v579 = vpop.f32.mrb[0].mxu0
      %v580 = vpop.f32.mrb[0].mxu0
      %v581 = vpop.f32.mrb[0].mxu0
      %582 = vdwg.mxu0
      %583 = vrot.lane.b32.xlu0 %v354, 32
      %v584 = vpop.permute.xlu0 %583
      %585 = vrot.lane.b32.xlu0 %v359, 32
      %v586 = vpop.permute.xlu0 %585
      %v588 = vsel %vm244, %v584, 0
      %v591 = vsel %vm244, %v586, 0
      %593 = vmatprep.subr.bf16.mxu0 0
      %594 = vmatpush1.bf16.xpose.msra.mxu0 %v591
      %595 = vmatprep.subr.bf16.mxu0 0
      %596 = vmatpush1.bf16.xpose.msra.mxu0 0
      %597 = vmatprep.subr.bf16.mxu0 0
      %598 = vmatpush1.bf16.xpose.msra.mxu0 0
      %599 = vmatprep.subr.bf16.mxu0 0
      %600 = vmatpush1.bf16.xpose.msra.mxu0 0
      %601 = vmatprep.subr.bf16.mxu0 0
      %602 = vmatpush1.bf16.xpose.msra.mxu0 0
      %603 = vmatprep.subr.bf16.mxu0 0
      %604 = vmatpush1.bf16.xpose.msra.mxu0 0
      %605 = vmatprep.subr.bf16.mxu0 0
      %606 = vmatpush1.bf16.xpose.msra.mxu0 0
      %607 = vmatprep.subr.bf16.mxu0 0
      %608 = vmatpush1.bf16.xpose.msra.mxu0 0
      %609 = vmatprep.subr.bf16.mxu0 0
      %610 = vmatpush1.bf16.xpose.msra.mxu0 0
      %611 = vmatprep.subr.bf16.mxu0 0
      %612 = vmatpush1.bf16.xpose.msra.mxu0 0
      %613 = vmatprep.subr.bf16.mxu0 0
      %614 = vmatpush1.bf16.xpose.msra.mxu0 0
      %615 = vmatprep.subr.bf16.mxu0 0
      %616 = vmatpush1.bf16.xpose.msra.mxu0 0
      %617 = vmatprep.subr.bf16.mxu0 0
      %618 = vmatpush1.bf16.xpose.msra.mxu0 0
      %619 = vmatprep.subr.bf16.mxu0 0
      %620 = vmatpush1.bf16.xpose.msra.mxu0 0
      %621 = vmatprep.subr.bf16.mxu0 0
      %622 = vmatpush1.bf16.xpose.msra.mxu0 0
      %623 = vmatprep.subr.bf16.mxu0 0
      %624 = vmatpush1.bf16.xpose.msra.mxu0 0
      %625 = vmatprep.mubr.bf16.mxu0 0
      %626 = vmatmul.mubr.bf16.gmra.mrb[0].mxu0 %v588
      %v627 = vpop.f32.mrb[0].mxu0
      %v628 = vadd.f32 0.0, %v627
      %v629 = vpop.f32.mrb[0].mxu0
      %v630 = vpop.f32.mrb[0].mxu0
      %v631 = vpop.f32.mrb[0].mxu0
      %632 = vdwg.mxu0
      %v633 = vmul.f32 %v628, 0.17677669
      %v634 = vsel %vm292, %v633, -inf
      %635 = vmax.xlane.f32.xlu0 %v634
      %v636 = vpop.xlane.xlu0 %635
      %v637 = vsub.f32 %v633, %v636
      %v638 = vmul.f32 %v637, 1.442695
      %v639 = vpow.pop %v638
      %v640 = vsel %vm292, %v639, 0.0
      %641 = vadd.xlane.f32.xlu0 %v640
      %v642 = vpop.xlane.xlu0 %641
      %v643 = vrcp.pop %v642
      %v644 = vmul.f32 %v639, %v643
      %v645 = vpack.c.bf16 %v644, %v644
      %646 = vrot.lane.b32.xlu0 %v423, 32
      %v647 = vpop.permute.xlu0 %646
      %v649 = vsel %vm292, %v645, 0
      %v652 = vsel %vm308, %v647, 0
      %654 = vmatprep.subr.bf16.mxu0 0
      %655 = vmatpush1.bf16.msra.mxu0 %v652
      %656 = vmatprep.subr.bf16.mxu0 0
      %657 = vmatpush1.bf16.msra.mxu0 0
      %658 = vmatprep.subr.bf16.mxu0 0
      %659 = vmatpush1.bf16.msra.mxu0 0
      %660 = vmatprep.subr.bf16.mxu0 0
      %661 = vmatpush1.bf16.msra.mxu0 0
      %662 = vmatprep.subr.bf16.mxu0 0
      %663 = vmatpush1.bf16.msra.mxu0 0
      %664 = vmatprep.subr.bf16.mxu0 0
      %665 = vmatpush1.bf16.msra.mxu0 0
      %666 = vmatprep.subr.bf16.mxu0 0
      %667 = vmatpush1.bf16.msra.mxu0 0
      %668 = vmatprep.subr.bf16.mxu0 0
      %669 = vmatpush1.bf16.msra.mxu0 0
      %670 = vmatprep.subr.bf16.mxu0 0
      %671 = vmatpush1.bf16.msra.mxu0 0
      %672 = vmatprep.subr.bf16.mxu0 0
      %673 = vmatpush1.bf16.msra.mxu0 0
      %674 = vmatprep.subr.bf16.mxu0 0
      %675 = vmatpush1.bf16.msra.mxu0 0
      %676 = vmatprep.subr.bf16.mxu0 0
      %677 = vmatpush1.bf16.msra.mxu0 0
      %678 = vmatprep.subr.bf16.mxu0 0
      %679 = vmatpush1.bf16.msra.mxu0 0
      %680 = vmatprep.subr.bf16.mxu0 0
      %681 = vmatpush1.bf16.msra.mxu0 0
      %682 = vmatprep.subr.bf16.mxu0 0
      %683 = vmatpush1.bf16.msra.mxu0 0
      %684 = vmatprep.subr.bf16.mxu0 0
      %685 = vmatpush1.bf16.msra.mxu0 0
      %686 = vmatprep.mubr.bf16.mxu0 0
      %687 = vmatmul.mubr.bf16.gmra.mrb[0].mxu0 %v649
      %v688 = vpop.f32.mrb[0].mxu0
      %v689 = vadd.f32 0.0, %v688
      %v690 = vpop.f32.mrb[0].mxu0
      %v691 = vpop.f32.mrb[0].mxu0
      %v692 = vpop.f32.mrb[0].mxu0
      %693 = vdwg.mxu0
      %695 = vrot.lane.b32.xlu0 %v467, 32
      %v696 = vpop.permute.xlu0 %695
      %699 = vrot.lane.b32.xlu0 %v578, 64
      %v700 = vpop.permute.xlu0 %699
      %703 = vrot.lane.b32.xlu0 %v689, 96
      %v704 = vpop.permute.xlu0 %703
      %v706 = vsel %vm244, %v347, %v696
      %vm707 = vcmask 523264
      %v708 = vsel %vm707, %v706, %v700
      %vm709 = vcmask 785408
      %v710 = vsel %vm709, %v708, %v704
      %v711 = vpack.c.bf16 %v710, %v710
      %712 = vst [vmem:[%s239] sm:$0xf] %v711
      %p713 = scmp.lt.s32.totalorder %s18, 1
      %s714 = scalar_select %p713, %s18, 1
      %p715 = scmp.lt.s32.totalorder %s19, 0
      %s716 = scalar_select %p715, %s19, 0
      %s717 = sadd.s32 %s716, %s714
      %s718 = smul.addr %s717, 4
      %s719 = scalar_lea.vmem %s3, %s718
      // Predicated region
      $region33: #{decoder_forward.22} parent=31 // pred_check
        %p720 = pneg %p126
      $region34: #{decoder_forward.22} parent=31 // pred_check_branch
        %722 = sbr.rel (%p720) target = $region36
      $region35: #{decoder_forward.22} parent=31 // pred_region
        _
      $region36: #{decoder_forward.22} parent=31 // pred_fallthru
        _
    $region32: #{decoder_forward.22} parent=5 // pred_fallthru
      _
    %p723 = scmp.le.s32.totalorder 2, %s9
    // Predicated region
    $region37: #{decoder_forward.22} parent=5 // pred_check
      %p724 = pneg %p723
    $region38: #{decoder_forward.22} parent=5 // pred_check_branch
      %726 = sbr.rel (%p724) target = $region40
    $region39: #{decoder_forward.22} parent=5 // pred_region
      %s727 = ssub.s32 %s9, 2
      // Predicated region
      $region41: #{decoder_forward.22} parent=39 // pred_check
        %p728 = pneg %p132
      $region42: #{decoder_forward.22} parent=39 // pred_check_branch
        %730 = sbr.rel (%p728) target = $region44
      $region43: #{decoder_forward.22} parent=39 // pred_region
        %p731 = scmp.lt.s32.totalorder %s20, 1
        %s732 = scalar_select %p731, %s20, 1
        %p733 = scmp.lt.s32.totalorder %s21, 0
        %s734 = scalar_select %p733, %s21, 0
        %s735 = sadd.s32 %s734, %s732
        %s736 = smul.addr %s735, 4
        %s737 = scalar_lea.vmem %s3, %s736
      $region44: #{decoder_forward.22} parent=39 // pred_fallthru
        _
    $region40: #{decoder_forward.22} parent=5 // pred_fallthru
      _
  $region6: #{decoder_forward.22} parent=0 // loop_footer
    %s13 = sadd.s32 1, %s9
  $region7: #{decoder_forward.22} parent=0 // loop_footer_branch
    %8 = sbr.rel target = $region3
  $region8: #{decoder_forward.22} parent=0 // loop_exit
    _

// kernel: decoder_forward.33
$region0: #{decoder_forward.33}
  #allocation0 [shape = 'u32[]', space=smem, size = 0x4, offset = 0x4, fixed_abs, tag = 'smem constant byte address 0x4 - core index']
  #allocation1 [shape = 'u32[144,128]{1,0:T(1,128)}', space=vmem, size = 0x12000, scoped, tag = 'internal scratch']
  %s0 = inlined_call_operand.vmem [shape: f32[16,128], index: 0, kind: input, shape index: {}]
  %s1 = inlined_call_operand.vmem [shape: f32[1,128], index: 1, kind: input, shape index: {}]
  %s2 = inlined_call_operand.vmem [shape: f32[1,128], index: 2, kind: input, shape index: {}]
  %s3 = inlined_call_operand.hbm [shape: f32[16,128], index: 3, kind: output, shape index: {}]
  %s4 = sld [smem:[#allocation0]]
  $region22: #{decoder_forward.33} parent=0
    _
  %s6 = ssub.s32 1, %s4
  %s7 = scalar_select 0, %s6, %s4
  $region1: #{decoder_forward.33} parent=0
    #allocation2 [shape = 'u8[8192]{0}', space=vmem, size = 0x2000, scoped, tag = 'output window, operand 0, single buffered']
    #allocation3 [shape = 's32[1]{0}', space=sflag, size = 0x4, scoped, tag = 'scoped memory for decoder_forward.33']
    %8 = vsyncpa [#allocation3], 0
    // Predicated region
    $region2: #{decoder_forward.33} parent=1 // pred_check
      _
    $region3: #{decoder_forward.33} parent=1 // pred_check_branch
      %10 = sbr.rel (0) target = $region5
    $region4: #{decoder_forward.33} parent=1 // pred_region
      _
    $region5: #{decoder_forward.33} parent=1 // pred_fallthru
      _
    // Predicated region
    $region6: #{decoder_forward.33} parent=1 // pred_check
      _
    $region7: #{decoder_forward.33} parent=1 // pred_check_branch
      %12 = sbr.rel (0) target = $region9
    $region8: #{decoder_forward.33} parent=1 // pred_region
      _
    $region9: #{decoder_forward.33} parent=1 // pred_fallthru
      _
    // Predicated region
    $region10: #{decoder_forward.33} parent=1 // pred_check
      _
    $region11: #{decoder_forward.33} parent=1 // pred_check_branch
      %14 = sbr.rel (0) target = $region13
    $region12: #{decoder_forward.33} parent=1 // pred_region
      _
    $region13: #{decoder_forward.33} parent=1 // pred_fallthru
      _
    %v15 = vld [vmem:[%s0] sm:$0xff]
    %v16 = vld [vmem:[%s0 + $0x8] sm:$0xff]
    %17 = vadd.xlane.f32.xlu0 %v15
    %v18 = vpop.xlane.xlu0 %17
    %19 = vadd.xlane.f32.xlu0 %v16
    %v20 = vpop.xlane.xlu0 %19
    %v21 = vrcp.pop 128.0
    %v22 = vmul.f32 %v18, %v21
    %v23 = vmul.f32 %v20, %v21
    %v24 = vsub.f32 %v15, %v22
    %v25 = vsub.f32 %v16, %v23
    %v26 = vmul.f32 %v24, %v24
    %v27 = vmul.f32 %v25, %v25
    %28 = vadd.xlane.f32.xlu0 %v26
    %v29 = vpop.xlane.xlu0 %28
    %30 = vadd.xlane.f32.xlu0 %v27
    %v31 = vpop.xlane.xlu0 %30
    %v32 = vmul.f32 %v29, %v21
    %v33 = vmul.f32 %v31, %v21
    %v34 = vadd.f32 %v32, 1e-06
    %v35 = vadd.f32 %v33, 1e-06
    %v36 = vrsqrt.pop %v34
    %v37 = vrsqrt.pop %v35
    %v38 = vmul.f32 %v24, %v36
    %v39 = vmul.f32 %v25, %v37
    %v40 = vld [vmem:[%s1] sm:$0x1]
    %v42 = vlaneseq
    %v43 = vshrl.u32 %v42, 7
    %v44 = vsub.s32 0, %v43
    %v45 = vrot.slane %v40, %v44
    %v47 = vmul.f32 %v38, %v45
    %v48 = vmul.f32 %v39, %v45
    %v49 = vld [vmem:[%s2] sm:$0x1]
    %v51 = vlaneseq
    %v52 = vshrl.u32 %v51, 7
    %v53 = vsub.s32 0, %v52
    %v54 = vrot.slane %v49, %v53
    %v56 = vadd.f32 %v47, %v54
    %v57 = vadd.f32 %v48, %v54
    %58 = vst [vmem:[#allocation2] sm:$0xff] %v56
    %59 = vst [vmem:[#allocation2 + $0x8] sm:$0xff] %v57
    // Predicated region
    $region14: #{decoder_forward.33} parent=1 // pred_check
      _
    $region15: #{decoder_forward.33} parent=1 // pred_check_branch
      %61 = sbr.rel (0) target = $region17
    $region16: #{decoder_forward.33} parent=1 // pred_region
      %s63 = ssub.s32 256, 256
      %64 = vsyncadd [#allocation3], %s63
      %s65 = sshll.u32 [#allocation2], 4
      %s66 = int_to_ptr.vmem [resolvable:$true] %s65
      %71 = dma.vmem_to_hbm [thread:$0]  %s66, 256, %s3, [#allocation3], 128, 128, 8
    $region17: #{decoder_forward.33} parent=1 // pred_fallthru
      _
    // Predicated region
    $region18: #{decoder_forward.33} parent=1 // pred_check
      _
    $region19: #{decoder_forward.33} parent=1 // pred_check_branch
      %73 = sbr.rel (0) target = $region21
    $region20: #{decoder_forward.33} parent=1 // pred_region
      %74 = dma.done [#allocation3], 256
    $region21: #{decoder_forward.33} parent=1 // pred_fallthru
      _
    %75 = vsyncpa [#allocation3], 1

// kernel: decoder_forward.24
$region0: #{decoder_forward.24}
  #allocation0 [shape = 'u32[]', space=smem, size = 0x4, offset = 0x4, fixed_abs, tag = 'smem constant byte address 0x4 - core index']
  #allocation1 [shape = 'u32[144,128]{1,0:T(1,128)}', space=vmem, size = 0x12000, scoped, tag = 'internal scratch']
  #allocation2 [shape = 'bf16[16,128]{1,0:T(16,128)(2,1)}', space=vmem, size = 0x1000, scoped, tag = 'scratch operand']
  #allocation3 [shape = 'f32[16,128]{1,0:T(8,128)}', space=vmem, size = 0x2000, scoped, tag = 'scratch operand']
  %s0 = inlined_call_operand.vmem [shape: f32[16,128], index: 0, kind: input, shape index: {}]
  %s1 = inlined_call_operand.vmem [shape: f32[1,128], index: 1, kind: input, shape index: {}]
  %s2 = inlined_call_operand.vmem [shape: f32[1,128], index: 2, kind: input, shape index: {}]
  %s3 = inlined_call_operand.vmem [shape: bf16[128,512], index: 3, kind: input, shape index: {}]
  %s4 = inlined_call_operand.vmem [shape: f32[1,512], index: 4, kind: input, shape index: {}]
  %s5 = inlined_call_operand.vmem [shape: bf16[512,128], index: 5, kind: input, shape index: {}]
  %s6 = inlined_call_operand.vmem [shape: f32[1,128], index: 6, kind: input, shape index: {}]
  %s7 = inlined_call_operand.vmem [shape: f32[16,128], index: 7, kind: output, shape index: {}]
  %s8 = sld [smem:[#allocation0]]
  $region46: #{decoder_forward.24} parent=0
    _
  %s10 = ssub.s32 1, %s8
  %s11 = scalar_select 0, %s10, %s8
  // Predicated region
  $region2: #{decoder_forward.24} parent=0 // pred_check
    _
  $region3: #{decoder_forward.24} parent=0 // pred_check_branch
    %13 = sbr.rel (0) target = $region5
  $region4: #{decoder_forward.24} parent=0 // pred_region
    _
  $region5: #{decoder_forward.24} parent=0 // pred_fallthru
    _
  // Predicated region
  $region6: #{decoder_forward.24} parent=0 // pred_check
    _
  $region7: #{decoder_forward.24} parent=0 // pred_check_branch
    %15 = sbr.rel (0) target = $region9
  $region8: #{decoder_forward.24} parent=0 // pred_region
    _
  $region9: #{decoder_forward.24} parent=0 // pred_fallthru
    _
  // Predicated region
  $region10: #{decoder_forward.24} parent=0 // pred_check
    _
  $region11: #{decoder_forward.24} parent=0 // pred_check_branch
    %17 = sbr.rel (0) target = $region13
  $region12: #{decoder_forward.24} parent=0 // pred_region
    _
  $region13: #{decoder_forward.24} parent=0 // pred_fallthru
    _
  // Predicated region
  $region14: #{decoder_forward.24} parent=0 // pred_check
    _
  $region15: #{decoder_forward.24} parent=0 // pred_check_branch
    %19 = sbr.rel (0) target = $region17
  $region16: #{decoder_forward.24} parent=0 // pred_region
    _
  $region17: #{decoder_forward.24} parent=0 // pred_fallthru
    _
  // Predicated region
  $region18: #{decoder_forward.24} parent=0 // pred_check
    _
  $region19: #{decoder_forward.24} parent=0 // pred_check_branch
    %21 = sbr.rel (0) target = $region21
  $region20: #{decoder_forward.24} parent=0 // pred_region
    _
  $region21: #{decoder_forward.24} parent=0 // pred_fallthru
    _
  // Predicated region
  $region22: #{decoder_forward.24} parent=0 // pred_check
    _
  $region23: #{decoder_forward.24} parent=0 // pred_check_branch
    %23 = sbr.rel (0) target = $region25
  $region24: #{decoder_forward.24} parent=0 // pred_region
    _
  $region25: #{decoder_forward.24} parent=0 // pred_fallthru
    _
  // Predicated region
  $region26: #{decoder_forward.24} parent=0 // pred_check
    _
  $region27: #{decoder_forward.24} parent=0 // pred_check_branch
    %25 = sbr.rel (0) target = $region29
  $region28: #{decoder_forward.24} parent=0 // pred_region
    _
  $region29: #{decoder_forward.24} parent=0 // pred_fallthru
    _
  %p27 = scmp.eq.s32.totalorder 0, 0
  // Predicated region
  $region30: #{decoder_forward.24} parent=0 // pred_check
    %p28 = pneg %p27
  $region31: #{decoder_forward.24} parent=0 // pred_check_branch
    %30 = sbr.rel (%p28) target = $region33
  $region32: #{decoder_forward.24} parent=0 // pred_region
    %v31 = vld [vmem:[%s0] sm:$0xff]
    %v32 = vld [vmem:[%s0 + $0x8] sm:$0xff]
    %33 = vadd.xlane.f32.xlu0 %v31
    %v34 = vpop.xlane.xlu0 %33
    %35 = vadd.xlane.f32.xlu0 %v32
    %v36 = vpop.xlane.xlu0 %35
    %v37 = vrcp.pop 128.0
    %v38 = vmul.f32 %v34, %v37
    %v39 = vmul.f32 %v36, %v37
    %v40 = vsub.f32 %v31, %v38
    %v41 = vsub.f32 %v32, %v39
    %v42 = vmul.f32 %v40, %v40
    %v43 = vmul.f32 %v41, %v41
    %44 = vadd.xlane.f32.xlu0 %v42
    %v45 = vpop.xlane.xlu0 %44
    %46 = vadd.xlane.f32.xlu0 %v43
    %v47 = vpop.xlane.xlu0 %46
    %v48 = vmul.f32 %v45, %v37
    %v49 = vmul.f32 %v47, %v37
    %v50 = vadd.f32 %v48, 1e-06
    %v51 = vadd.f32 %v49, 1e-06
    %v52 = vrsqrt.pop %v50
    %v53 = vrsqrt.pop %v51
    %v54 = vmul.f32 %v40, %v52
    %v55 = vmul.f32 %v41, %v53
    %v56 = vld [vmem:[%s1] sm:$0x1]
    %v58 = vlaneseq
    %v59 = vshrl.u32 %v58, 7
    %v60 = vsub.s32 0, %v59
    %v61 = vrot.slane %v56, %v60
    %v63 = vmul.f32 %v54, %v61
    %v64 = vmul.f32 %v55, %v61
    %v65 = vld [vmem:[%s2] sm:$0x1]
    %v67 = vlaneseq
    %v68 = vshrl.u32 %v67, 7
    %v69 = vsub.s32 0, %v68
    %v70 = vrot.slane %v65, %v69
    %v72 = vadd.f32 %v63, %v70
    %v73 = vadd.f32 %v64, %v70
    %v74 = vpack.c.bf16 %v73, %v72
    %75 = vst [vmem:[#allocation2] sm:$0xff] %v74
    %76 = vst [vmem:[#allocation3] sm:$0xff] 0.0
    %77 = vst [vmem:[#allocation3 + $0x8] sm:$0xff] 0.0
  $region33: #{decoder_forward.24} parent=0 // pred_fallthru
    _
  %v78 = vld [vmem:[#allocation2] sm:$0xff]
  %v79 = vld [vmem:[%s3] sm:$0xff]
  %v80 = vld [vmem:[%s3 + $0x8] sm:$0xff]
  %v81 = vld [vmem:[%s3 + $0x10] sm:$0xff]
  %v82 = vld [vmem:[%s3 + $0x18] sm:$0xff]
  %v83 = vld [vmem:[%s3 + $0x20] sm:$0xff]
  %v84 = vld [vmem:[%s3 + $0x28] sm:$0xff]
  %v85 = vld [vmem:[%s3 + $0x30] sm:$0xff]
  %v86 = vld [vmem:[%s3 + $0x38] sm:$0xff]
  %v87 = vld [vmem:[%s3 + $0x40] sm:$0xff]
  %v88 = vld [vmem:[%s3 + $0x48] sm:$0xff]
  %v89 = vld [vmem:[%s3 + $0x50] sm:$0xff]
  %v90 = vld [vmem:[%s3 + $0x58] sm:$0xff]
  %v91 = vld [vmem:[%s3 + $0x60] sm:$0xff]
  %v92 = vld [vmem:[%s3 + $0x68] sm:$0xff]
  %v93 = vld [vmem:[%s3 + $0x70] sm:$0xff]
  %v94 = vld [vmem:[%s3 + $0x78] sm:$0xff]
  %v95 = vld [vmem:[%s3 + $0x80] sm:$0xff]
  %v96 = vld [vmem:[%s3 + $0x88] sm:$0xff]
  %v97 = vld [vmem:[%s3 + $0x90] sm:$0xff]
  %v98 = vld [vmem:[%s3 + $0x98] sm:$0xff]
  %v99 = vld [vmem:[%s3 + $0xa0] sm:$0xff]
  %v100 = vld [vmem:[%s3 + $0xa8] sm:$0xff]
  %v101 = vld [vmem:[%s3 + $0xb0] sm:$0xff]
  %v102 = vld [vmem:[%s3 + $0xb8] sm:$0xff]
  %v103 = vld [vmem:[%s3 + $0xc0] sm:$0xff]
  %v104 = vld [vmem:[%s3 + $0xc8] sm:$0xff]
  %v105 = vld [vmem:[%s3 + $0xd0] sm:$0xff]
  %v106 = vld [vmem:[%s3 + $0xd8] sm:$0xff]
  %v107 = vld [vmem:[%s3 + $0xe0] sm:$0xff]
  %v108 = vld [vmem:[%s3 + $0xe8] sm:$0xff]
  %v109 = vld [vmem:[%s3 + $0xf0] sm:$0xff]
  %v110 = vld [vmem:[%s3 + $0xf8] sm:$0xff]
  %v111 = vld [vmem:[%s4] sm:$0xf]
  %v113 = vlaneseq
  %v114 = vshrl.u32 %v113, 7
  %v115 = vsub.s32 0, %v114
  %v116 = vrot.slane %v111, %v115
  %v117 = vlaneseq
  %v118 = vshrl.u32 %v117, 7
  %v119 = vsub.s32 1, %v118
  %v120 = vrot.slane %v111, %v119
  %v121 = vlaneseq
  %v122 = vshrl.u32 %v121, 7
  %v123 = vsub.s32 2, %v122
  %v124 = vrot.slane %v111, %v123
  %v125 = vlaneseq
  %v126 = vshrl.u32 %v125, 7
  %v127 = vsub.s32 3, %v126
  %v128 = vrot.slane %v111, %v127
  %v165 = vunpack.c.l.b16 %v79
  %v166 = vunpack.c.h.b16 %v79
  %v167 = vunpack.c.l.b16 %v80
  %v168 = vunpack.c.h.b16 %v80
  %v169 = vunpack.c.l.b16 %v81
  %v170 = vunpack.c.h.b16 %v81
  %v171 = vunpack.c.l.b16 %v82
  %v172 = vunpack.c.h.b16 %v82
  %v173 = vunpack.c.l.b16 %v83
  %v174 = vunpack.c.h.b16 %v83
  %v175 = vunpack.c.l.b16 %v84
  %v176 = vunpack.c.h.b16 %v84
  %v177 = vunpack.c.l.b16 %v85
  %v178 = vunpack.c.h.b16 %v85
  %v179 = vunpack.c.l.b16 %v86
  %v180 = vunpack.c.h.b16 %v86
  %v181 = vunpack.c.l.b16 %v87
  %v182 = vunpack.c.h.b16 %v87
  %v183 = vunpack.c.l.b16 %v88
  %v184 = vunpack.c.h.b16 %v88
  %v185 = vunpack.c.l.b16 %v89
  %v186 = vunpack.c.h.b16 %v89
  %v187 = vunpack.c.l.b16 %v90
  %v188 = vunpack.c.h.b16 %v90
  %v189 = vunpack.c.l.b16 %v91
  %v190 = vunpack.c.h.b16 %v91
  %v191 = vunpack.c.l.b16 %v92
  %v192 = vunpack.c.h.b16 %v92
  %v193 = vunpack.c.l.b16 %v93
  %v194 = vunpack.c.h.b16 %v93
  %v195 = vunpack.c.l.b16 %v94
  %v196 = vunpack.c.h.b16 %v94
  %v197 = vunpack.c.l.b16 %v95
  %v198 = vunpack.c.h.b16 %v95
  %v199 = vunpack.c.l.b16 %v96
  %v200 = vunpack.c.h.b16 %v96
  %v201 = vunpack.c.l.b16 %v97
  %v202 = vunpack.c.h.b16 %v97
  %v203 = vunpack.c.l.b16 %v98
  %v204 = vunpack.c.h.b16 %v98
  %v205 = vunpack.c.l.b16 %v99
  %v206 = vunpack.c.h.b16 %v99
  %v207 = vunpack.c.l.b16 %v100
  %v208 = vunpack.c.h.b16 %v100
  %v209 = vunpack.c.l.b16 %v101
  %v210 = vunpack.c.h.b16 %v101
  %v211 = vunpack.c.l.b16 %v102
  %v212 = vunpack.c.h.b16 %v102
  %v213 = vunpack.c.l.b16 %v103
  %v214 = vunpack.c.h.b16 %v103
  %v215 = vunpack.c.l.b16 %v104
  %v216 = vunpack.c.h.b16 %v104
  %v217 = vunpack.c.l.b16 %v105
  %v218 = vunpack.c.h.b16 %v105
  %v219 = vunpack.c.l.b16 %v106
  %v220 = vunpack.c.h.b16 %v106
  %v221 = vunpack.c.l.b16 %v107
  %v222 = vunpack.c.h.b16 %v107
  %v223 = vunpack.c.l.b16 %v108
  %v224 = vunpack.c.h.b16 %v108
  %v225 = vunpack.c.l.b16 %v109
  %v226 = vunpack.c.h.b16 %v109
  %v227 = vunpack.c.l.b16 %v110
  %v228 = vunpack.c.h.b16 %v110
  %v229 = vpack.c.b16 %v169, %v165
  %v230 = vpack.c.b16 %v170, %v166
  %v231 = vpack.c.b16 %v171, %v167
  %v232 = vpack.c.b16 %v172, %v168
  %v233 = vpack.c.b16 %v177, %v173
  %v234 = vpack.c.b16 %v178, %v174
  %v235 = vpack.c.b16 %v179, %v175
  %v236 = vpack.c.b16 %v180, %v176
  %v237 = vpack.c.b16 %v185, %v181
  %v238 = vpack.c.b16 %v186, %v182
  %v239 = vpack.c.b16 %v187, %v183
  %v240 = vpack.c.b16 %v188, %v184
  %v241 = vpack.c.b16 %v193, %v189
  %v242 = vpack.c.b16 %v194, %v190
  %v243 = vpack.c.b16 %v195, %v191
  %v244 = vpack.c.b16 %v196, %v192
  %v245 = vpack.c.b16 %v201, %v197
  %v246 = vpack.c.b16 %v202, %v198
  %v247 = vpack.c.b16 %v203, %v199
  %v248 = vpack.c.b16 %v204, %v200
  %v249 = vpack.c.b16 %v209, %v205
  %v250 = vpack.c.b16 %v210, %v206
  %v251 = vpack.c.b16 %v211, %v207
  %v252 = vpack.c.b16 %v212, %v208
  %v253 = vpack.c.b16 %v217, %v213
  %v254 = vpack.c.b16 %v218, %v214
  %v255 = vpack.c.b16 %v219, %v215
  %v256 = vpack.c.b16 %v220, %v216
  %v257 = vpack.c.b16 %v225, %v221
  %v258 = vpack.c.b16 %v226, %v222
  %v259 = vpack.c.b16 %v227, %v223
  %v260 = vpack.c.b16 %v228, %v224
  %293 = vmatprep.subr.bf16.mxu0 %v230
  %294 = vmatpush1.bf16.msra.mxu0 %v229
  %295 = vmatprep.subr.bf16.mxu0 %v234
  %296 = vmatpush1.bf16.msra.mxu0 %v233
  %297 = vmatprep.subr.bf16.mxu0 %v238
  %298 = vmatpush1.bf16.msra.mxu0 %v237
  %299 = vmatprep.subr.bf16.mxu0 %v242
  %300 = vmatpush1.bf16.msra.mxu0 %v241
  %301 = vmatprep.subr.bf16.mxu0 %v246
  %302 = vmatpush1.bf16.msra.mxu0 %v245
  %303 = vmatprep.subr.bf16.mxu0 %v250
  %304 = vmatpush1.bf16.msra.mxu0 %v249
  %305 = vmatprep.subr.bf16.mxu0 %v254
  %306 = vmatpush1.bf16.msra.mxu0 %v253
  %307 = vmatprep.subr.bf16.mxu0 %v258
  %308 = vmatpush1.bf16.msra.mxu0 %v257
  %309 = vmatprep.subr.bf16.mxu0 0
  %310 = vmatpush1.bf16.msra.mxu0 0
  %311 = vmatprep.subr.bf16.mxu0 0
  %312 = vmatpush1.bf16.msra.mxu0 0
  %313 = vmatprep.subr.bf16.mxu0 0
  %314 = vmatpush1.bf16.msra.mxu0 0
  %315 = vmatprep.subr.bf16.mxu0 0
  %316 = vmatpush1.bf16.msra.mxu0 0
  %317 = vmatprep.subr.bf16.mxu0 0
  %318 = vmatpush1.bf16.msra.mxu0 0
  %319 = vmatprep.subr.bf16.mxu0 0
  %320 = vmatpush1.bf16.msra.mxu0 0
  %321 = vmatprep.subr.bf16.mxu0 0
  %322 = vmatpush1.bf16.msra.mxu0 0
  %323 = vmatprep.subr.bf16.mxu0 0
  %324 = vmatpush1.bf16.msra.mxu0 0
  %325 = vmatprep.mubr.bf16.mxu0 0
  %326 = vmatmul.mubr.bf16.gmra.mrb[0].mxu0 %v78
  %v327 = vpop.f32.mrb[0].mxu0
  %v328 = vadd.f32 %v116, %v327
  %v329 = vpop.f32.mrb[0].mxu0
  %v330 = vadd.f32 %v120, %v329
  %v331 = vpop.f32.mrb[0].mxu0
  %v332 = vadd.f32 %v116, %v331
  %v333 = vpop.f32.mrb[0].mxu0
  %v334 = vadd.f32 %v120, %v333
  %335 = vdwg.mxu0
  %336 = vmatprep.subr.bf16.mxu0 %v232
  %337 = vmatpush1.bf16.msra.mxu0 %v231
  %338 = vmatprep.subr.bf16.mxu0 %v236
  %339 = vmatpush1.bf16.msra.mxu0 %v235
  %340 = vmatprep.subr.bf16.mxu0 %v240
  %341 = vmatpush1.bf16.msra.mxu0 %v239
  %342 = vmatprep.subr.bf16.mxu0 %v244
  %343 = vmatpush1.bf16.msra.mxu0 %v243
  %344 = vmatprep.subr.bf16.mxu0 %v248
  %345 = vmatpush1.bf16.msra.mxu0 %v247
  %346 = vmatprep.subr.bf16.mxu0 %v252
  %347 = vmatpush1.bf16.msra.mxu0 %v251
  %348 = vmatprep.subr.bf16.mxu0 %v256
  %349 = vmatpush1.bf16.msra.mxu0 %v255
  %350 = vmatprep.subr.bf16.mxu0 %v260
  %351 = vmatpush1.bf16.msra.mxu0 %v259
  %352 = vmatprep.subr.bf16.mxu0 0
  %353 = vmatpush1.bf16.msra.mxu0 0
  %354 = vmatprep.subr.bf16.mxu0 0
  %355 = vmatpush1.bf16.msra.mxu0 0
  %356 = vmatprep.subr.bf16.mxu0 0
  %357 = vmatpush1.bf16.msra.mxu0 0
  %358 = vmatprep.subr.bf16.mxu0 0
  %359 = vmatpush1.bf16.msra.mxu0 0
  %360 = vmatprep.subr.bf16.mxu0 0
  %361 = vmatpush1.bf16.msra.mxu0 0
  %362 = vmatprep.subr.bf16.mxu0 0
  %363 = vmatpush1.bf16.msra.mxu0 0
  %364 = vmatprep.subr.bf16.mxu0 0
  %365 = vmatpush1.bf16.msra.mxu0 0
  %366 = vmatprep.subr.bf16.mxu0 0
  %367 = vmatpush1.bf16.msra.mxu0 0
  %368 = vmatprep.mubr.bf16.mxu0 0
  %369 = vmatmul.mubr.bf16.gmra.mrb[0].mxu0 %v78
  %v370 = vpop.f32.mrb[0].mxu0
  %v371 = vadd.f32 %v124, %v370
  %v372 = vpop.f32.mrb[0].mxu0
  %v373 = vadd.f32 %v128, %v372
  %v374 = vpop.f32.mrb[0].mxu0
  %v375 = vadd.f32 %v124, %v374
  %v376 = vpop.f32.mrb[0].mxu0
  %v377 = vadd.f32 %v128, %v376
  %378 = vdwg.mxu0
  %v379 = vmax.f32 %v328, 0.0
  %v380 = vmax.f32 %v330, 0.0
  %v381 = vmax.f32 %v371, 0.0
  %v382 = vmax.f32 %v373, 0.0
  %v383 = vmax.f32 %v332, 0.0
  %v384 = vmax.f32 %v334, 0.0
  %v385 = vmax.f32 %v375, 0.0
  %v386 = vmax.f32 %v377, 0.0
  %v387 = vpack.c.bf16 %v383, %v379
  %v388 = vpack.c.bf16 %v384, %v380
  %v389 = vpack.c.bf16 %v385, %v381
  %v390 = vpack.c.bf16 %v386, %v382
  %v391 = vld [vmem:[#allocation3] sm:$0xff]
  %v392 = vld [vmem:[#allocation3 + $0x8] sm:$0xff]
  %v393 = vld [vmem:[%s5] sm:$0xf]
  %v394 = vld [vmem:[%s5 + $0x4] sm:$0xf]
  %v395 = vld [vmem:[%s5 + $0x8] sm:$0xf]
  %v396 = vld [vmem:[%s5 + $0xc] sm:$0xf]
  %v397 = vld [vmem:[%s5 + $0x10] sm:$0xf]
  %v398 = vld [vmem:[%s5 + $0x14] sm:$0xf]
  %v399 = vld [vmem:[%s5 + $0x18] sm:$0xf]
  %v400 = vld [vmem:[%s5 + $0x1c] sm:$0xf]
  %v401 = vld [vmem:[%s5 + $0x20] sm:$0xf]
  %v402 = vld [vmem:[%s5 + $0x24] sm:$0xf]
  %v403 = vld [vmem:[%s5 + $0x28] sm:$0xf]
  %v404 = vld [vmem:[%s5 + $0x2c] sm:$0xf]
  %v405 = vld [vmem:[%s5 + $0x30] sm:$0xf]
  %v406 = vld [vmem:[%s5 + $0x34] sm:$0xf]
  %v407 = vld [vmem:[%s5 + $0x38] sm:$0xf]
  %v408 = vld [vmem:[%s5 + $0x3c] sm:$0xf]
  %v409 = vld [vmem:[%s5 + $0x40] sm:$0xf]
  %v410 = vld [vmem:[%s5 + $0x44] sm:$0xf]
  %v411 = vld [vmem:[%s5 + $0x48] sm:$0xf]
  %v412 = vld [vmem:[%s5 + $0x4c] sm:$0xf]
  %v413 = vld [vmem:[%s5 + $0x50] sm:$0xf]
  %v414 = vld [vmem:[%s5 + $0x54] sm:$0xf]
  %v415 = vld [vmem:[%s5 + $0x58] sm:$0xf]
  %v416 = vld [vmem:[%s5 + $0x5c] sm:$0xf]
  %v417 = vld [vmem:[%s5 + $0x60] sm:$0xf]
  %v418 = vld [vmem:[%s5 + $0x64] sm:$0xf]
  %v419 = vld [vmem:[%s5 + $0x68] sm:$0xf]
  %v420 = vld [vmem:[%s5 + $0x6c] sm:$0xf]
  %v421 = vld [vmem:[%s5 + $0x70] sm:$0xf]
  %v422 = vld [vmem:[%s5 + $0x74] sm:$0xf]
  %v423 = vld [vmem:[%s5 + $0x78] sm:$0xf]
  %v424 = vld [vmem:[%s5 + $0x7c] sm:$0xf]
  %v425 = vld [vmem:[%s5 + $0x80] sm:$0xf]
  %v426 = vld [vmem:[%s5 + $0x84] sm:$0xf]
  %v427 = vld [vmem:[%s5 + $0x88] sm:$0xf]
  %v428 = vld [vmem:[%s5 + $0x8c] sm:$0xf]
  %v429 = vld [vmem:[%s5 + $0x90] sm:$0xf]
  %v430 = vld [vmem:[%s5 + $0x94] sm:$0xf]
  %v431 = vld [vmem:[%s5 + $0x98] sm:$0xf]
  %v432 = vld [vmem:[%s5 + $0x9c] sm:$0xf]
  %v433 = vld [vmem:[%s5 + $0xa0] sm:$0xf]
  %v434 = vld [vmem:[%s5 + $0xa4] sm:$0xf]
  %v435 = vld [vmem:[%s5 + $0xa8] sm:$0xf]
  %v436 = vld [vmem:[%s5 + $0xac] sm:$0xf]
  %v437 = vld [vmem:[%s5 + $0xb0] sm:$0xf]
  %v438 = vld [vmem:[%s5 + $0xb4] sm:$0xf]
  %v439 = vld [vmem:[%s5 + $0xb8] sm:$0xf]
  %v440 = vld [vmem:[%s5 + $0xbc] sm:$0xf]
  %v441 = vld [vmem:[%s5 + $0xc0] sm:$0xf]
  %v442 = vld [vmem:[%s5 + $0xc4] sm:$0xf]
  %v443 = vld [vmem:[%s5 + $0xc8] sm:$0xf]
  %v444 = vld [vmem:[%s5 + $0xcc] sm:$0xf]
  %v445 = vld [vmem:[%s5 + $0xd0] sm:$0xf]
  %v446 = vld [vmem:[%s5 + $0xd4] sm:$0xf]
  %v447 = vld [vmem:[%s5 + $0xd8] sm:$0xf]
  %v448 = vld [vmem:[%s5 + $0xdc] sm:$0xf]
  %v449 = vld [vmem:[%s5 + $0xe0] sm:$0xf]
  %v450 = vld [vmem:[%s5 + $0xe4] sm:$0xf]
  %v451 = vld [vmem:[%s5 + $0xe8] sm:$0xf]
  %v452 = vld [vmem:[%s5 + $0xec] sm:$0xf]
  %v453 = vld [vmem:[%s5 + $0xf0] sm:$0xf]
  %v454 = vld [vmem:[%s5 + $0xf4] sm:$0xf]
  %v455 = vld [vmem:[%s5 + $0xf8] sm:$0xf]
  %v456 = vld [vmem:[%s5 + $0xfc] sm:$0xf]
  %v521 = vunpack.c.l.b16 %v393
  %v522 = vunpack.c.l.b16 %v394
  %v523 = vunpack.c.l.b16 %v395
  %v524 = vunpack.c.l.b16 %v396
  %v525 = vunpack.c.l.b16 %v397
  %v526 = vunpack.c.l.b16 %v398
  %v527 = vunpack.c.l.b16 %v399
  %v528 = vunpack.c.l.b16 %v400
  %v529 = vunpack.c.l.b16 %v401
  %v530 = vunpack.c.l.b16 %v402
  %v531 = vunpack.c.l.b16 %v403
  %v532 = vunpack.c.l.b16 %v404
  %v533 = vunpack.c.l.b16 %v405
  %v534 = vunpack.c.l.b16 %v406
  %v535 = vunpack.c.l.b16 %v407
  %v536 = vunpack.c.l.b16 %v408
  %v537 = vunpack.c.l.b16 %v409
  %v538 = vunpack.c.l.b16 %v410
  %v539 = vunpack.c.l.b16 %v411
  %v540 = vunpack.c.l.b16 %v412
  %v541 = vunpack.c.l.b16 %v413
  %v542 = vunpack.c.l.b16 %v414
  %v543 = vunpack.c.l.b16 %v415
  %v544 = vunpack.c.l.b16 %v416
  %v545 = vunpack.c.l.b16 %v417
  %v546 = vunpack.c.l.b16 %v418
  %v547 = vunpack.c.l.b16 %v419
  %v548 = vunpack.c.l.b16 %v420
  %v549 = vunpack.c.l.b16 %v421
  %v550 = vunpack.c.l.b16 %v422
  %v551 = vunpack.c.l.b16 %v423
  %v552 = vunpack.c.l.b16 %v424
  %v553 = vunpack.c.l.b16 %v425
  %v554 = vunpack.c.l.b16 %v426
  %v555 = vunpack.c.l.b16 %v427
  %v556 = vunpack.c.l.b16 %v428
  %v557 = vunpack.c.l.b16 %v429
  %v558 = vunpack.c.l.b16 %v430
  %v559 = vunpack.c.l.b16 %v431
  %v560 = vunpack.c.l.b16 %v432
  %v561 = vunpack.c.l.b16 %v433
  %v562 = vunpack.c.l.b16 %v434
  %v563 = vunpack.c.l.b16 %v435
  %v564 = vunpack.c.l.b16 %v436
  %v565 = vunpack.c.l.b16 %v437
  %v566 = vunpack.c.l.b16 %v438
  %v567 = vunpack.c.l.b16 %v439
  %v568 = vunpack.c.l.b16 %v440
  %v569 = vunpack.c.l.b16 %v441
  %v570 = vunpack.c.l.b16 %v442
  %v571 = vunpack.c.l.b16 %v443
  %v572 = vunpack.c.l.b16 %v444
  %v573 = vunpack.c.l.b16 %v445
  %v574 = vunpack.c.l.b16 %v446
  %v575 = vunpack.c.l.b16 %v447
  %v576 = vunpack.c.l.b16 %v448
  %v577 = vunpack.c.l.b16 %v449
  %v578 = vunpack.c.l.b16 %v450
  %v579 = vunpack.c.l.b16 %v451
  %v580 = vunpack.c.l.b16 %v452
  %v581 = vunpack.c.l.b16 %v453
  %v582 = vunpack.c.l.b16 %v454
  %v583 = vunpack.c.l.b16 %v455
  %v584 = vunpack.c.l.b16 %v456
  %v585 = vpack.c.b16 %v522, %v521
  %v586 = vpack.c.b16 %v524, %v523
  %v587 = vpack.c.b16 %v526, %v525
  %v588 = vpack.c.b16 %v528, %v527
  %v589 = vpack.c.b16 %v530, %v529
  %v590 = vpack.c.b16 %v532, %v531
  %v591 = vpack.c.b16 %v534, %v533
  %v592 = vpack.c.b16 %v536, %v535
  %v593 = vpack.c.b16 %v538, %v537
  %v594 = vpack.c.b16 %v540, %v539
  %v595 = vpack.c.b16 %v542, %v541
  %v596 = vpack.c.b16 %v544, %v543
  %v597 = vpack.c.b16 %v546, %v545
  %v598 = vpack.c.b16 %v548, %v547
  %v599 = vpack.c.b16 %v550, %v549
  %v600 = vpack.c.b16 %v552, %v551
  %v601 = vpack.c.b16 %v554, %v553
  %v602 = vpack.c.b16 %v556, %v555
  %v603 = vpack.c.b16 %v558, %v557
  %v604 = vpack.c.b16 %v560, %v559
  %v605 = vpack.c.b16 %v562, %v561
  %v606 = vpack.c.b16 %v564, %v563
  %v607 = vpack.c.b16 %v566, %v565
  %v608 = vpack.c.b16 %v568, %v567
  %v609 = vpack.c.b16 %v570, %v569
  %v610 = vpack.c.b16 %v572, %v571
  %v611 = vpack.c.b16 %v574, %v573
  %v612 = vpack.c.b16 %v576, %v575
  %v613 = vpack.c.b16 %v578, %v577
  %v614 = vpack.c.b16 %v580, %v579
  %v615 = vpack.c.b16 %v582, %v581
  %v616 = vpack.c.b16 %v584, %v583
  %649 = vmatprep.subr.bf16.mxu0 0
  %650 = vmatpush1.bf16.msra.mxu0 %v585
  %651 = vmatprep.subr.bf16.mxu0 0
  %652 = vmatpush1.bf16.msra.mxu0 %v586
  %653 = vmatprep.subr.bf16.mxu0 0
  %654 = vmatpush1.bf16.msra.mxu0 %v587
  %655 = vmatprep.subr.bf16.mxu0 0
  %656 = vmatpush1.bf16.msra.mxu0 %v588
  %657 = vmatprep.subr.bf16.mxu0 0
  %658 = vmatpush1.bf16.msra.mxu0 %v589
  %659 = vmatprep.subr.bf16.mxu0 0
  %660 = vmatpush1.bf16.msra.mxu0 %v590
  %661 = vmatprep.subr.bf16.mxu0 0
  %662 = vmatpush1.bf16.msra.mxu0 %v591
  %663 = vmatprep.subr.bf16.mxu0 0
  %664 = vmatpush1.bf16.msra.mxu0 %v592
  %665 = vmatprep.subr.bf16.mxu0 0
  %666 = vmatpush1.bf16.msra.mxu0 %v593
  %667 = vmatprep.subr.bf16.mxu0 0
  %668 = vmatpush1.bf16.msra.mxu0 %v594
  %669 = vmatprep.subr.bf16.mxu0 0
  %670 = vmatpush1.bf16.msra.mxu0 %v595
  %671 = vmatprep.subr.bf16.mxu0 0
  %672 = vmatpush1.bf16.msra.mxu0 %v596
  %673 = vmatprep.subr.bf16.mxu0 0
  %674 = vmatpush1.bf16.msra.mxu0 %v597
  %675 = vmatprep.subr.bf16.mxu0 0
  %676 = vmatpush1.bf16.msra.mxu0 %v598
  %677 = vmatprep.subr.bf16.mxu0 0
  %678 = vmatpush1.bf16.msra.mxu0 %v599
  %679 = vmatprep.subr.bf16.mxu0 0
  %680 = vmatpush1.bf16.msra.mxu0 %v600
  %681 = vmatprep.mubr.bf16.mxu0 %v388
  %682 = vmatmul.mubr.bf16.gmra.mrb[0].mxu0 %v387
  %v683 = vpop.f32.mrb[0].mxu0
  %v684 = vadd.f32 0.0, %v683
  %v685 = vpop.f32.mrb[0].mxu0
  %v686 = vpop.f32.mrb[0].mxu0
  %v687 = vadd.f32 0.0, %v686
  %v688 = vpop.f32.mrb[0].mxu0
  %689 = vdwg.mxu0
  %690 = vmatprep.subr.bf16.mxu0 0
  %691 = vmatpush1.bf16.msra.mxu0 %v601
  %692 = vmatprep.subr.bf16.mxu0 0
  %693 = vmatpush1.bf16.msra.mxu0 %v602
  %694 = vmatprep.subr.bf16.mxu0 0
  %695 = vmatpush1.bf16.msra.mxu0 %v603
  %696 = vmatprep.subr.bf16.mxu0 0
  %697 = vmatpush1.bf16.msra.mxu0 %v604
  %698 = vmatprep.subr.bf16.mxu0 0
  %699 = vmatpush1.bf16.msra.mxu0 %v605
  %700 = vmatprep.subr.bf16.mxu0 0
  %701 = vmatpush1.bf16.msra.mxu0 %v606
  %702 = vmatprep.subr.bf16.mxu0 0
  %703 = vmatpush1.bf16.msra.mxu0 %v607
  %704 = vmatprep.subr.bf16.mxu0 0
  %705 = vmatpush1.bf16.msra.mxu0 %v608
  %706 = vmatprep.subr.bf16.mxu0 0
  %707 = vmatpush1.bf16.msra.mxu0 %v609
  %708 = vmatprep.subr.bf16.mxu0 0
  %709 = vmatpush1.bf16.msra.mxu0 %v610
  %710 = vmatprep.subr.bf16.mxu0 0
  %711 = vmatpush1.bf16.msra.mxu0 %v611
  %712 = vmatprep.subr.bf16.mxu0 0
  %713 = vmatpush1.bf16.msra.mxu0 %v612
  %714 = vmatprep.subr.bf16.mxu0 0
  %715 = vmatpush1.bf16.msra.mxu0 %v613
  %716 = vmatprep.subr.bf16.mxu0 0
  %717 = vmatpush1.bf16.msra.mxu0 %v614
  %718 = vmatprep.subr.bf16.mxu0 0
  %719 = vmatpush1.bf16.msra.mxu0 %v615
  %720 = vmatprep.subr.bf16.mxu0 0
  %721 = vmatpush1.bf16.msra.mxu0 %v616
  %722 = vmatprep.mubr.bf16.mxu0 %v390
  %723 = vmatmul.mubr.bf16.gmra.mrb[0].mxu0 %v389
  %v724 = vpop.f32.mrb[0].mxu0
  %v725 = vadd.f32 %v684, %v724
  %v726 = vpop.f32.mrb[0].mxu0
  %v727 = vpop.f32.mrb[0].mxu0
  %v728 = vadd.f32 %v687, %v727
  %v729 = vpop.f32.mrb[0].mxu0
  %730 = vdwg.mxu0
  %v731 = vadd.f32 %v391, %v725
  %v732 = vadd.f32 %v392, %v728
  %733 = vst [vmem:[#allocation3] sm:$0xff] %v731
  %734 = vst [vmem:[#allocation3 + $0x8] sm:$0xff] %v732
  // Predicated region
  $region34: #{decoder_forward.24} parent=0 // pred_check
    %p735 = pneg %p27
  $region35: #{decoder_forward.24} parent=0 // pred_check_branch
    %737 = sbr.rel (%p735) target = $region37
  $region36: #{decoder_forward.24} parent=0 // pred_region
    %v738 = vld [vmem:[%s0] sm:$0xff]
    %v739 = vld [vmem:[%s0 + $0x8] sm:$0xff]
    %v740 = vld [vmem:[#allocation3] sm:$0xff]
    %v741 = vld [vmem:[#allocation3 + $0x8] sm:$0xff]
    %v742 = vadd.f32 %v738, %v740
    %v743 = vadd.f32 %v739, %v741
    %v744 = vld [vmem:[%s6] sm:$0x1]
    %v746 = vlaneseq
    %v747 = vshrl.u32 %v746, 7
    %v748 = vsub.s32 0, %v747
    %v749 = vrot.slane %v744, %v748
    %v751 = vadd.f32 %v742, %v749
    %v752 = vadd.f32 %v743, %v749
    %753 = vst [vmem:[%s7] sm:$0xff] %v751
    %754 = vst [vmem:[%s7 + $0x8] sm:$0xff] %v752
  $region37: #{decoder_forward.24} parent=0 // pred_fallthru
    _
  // Predicated region
  $region38: #{decoder_forward.24} parent=0 // pred_check
    _
  $region39: #{decoder_forward.24} parent=0 // pred_check_branch
    %756 = sbr.rel (0) target = $region41
  $region40: #{decoder_forward.24} parent=0 // pred_region
    _
  $region41: #{decoder_forward.24} parent=0 // pred_fallthru
    _
  // Predicated region
  $region42: #{decoder_forward.24} parent=0 // pred_check
    _
  $region43: #{decoder_forward.24} parent=0 // pred_check_branch
    %758 = sbr.rel (0) target = $region45
  $region44: #{decoder_forward.24} parent=0 // pred_region
    _
  $region45: #{decoder_forward.24} parent=0 // pred_fallthru
    _

</llo_original>
